<compile_context>
chip_gen: v5e
topology: v5e:2x2
jax: 0.10.0
libtpu: 0.0.40
codegen_flags: <defaults>
</compile_context>

<pallas_src>
import functools
import math

import jax
import jax.numpy as jnp
from jax.experimental import pallas as pl
from jax.experimental.pallas import tpu as pltpu


CLS_PAD = 128   # classifier output padded to a full 128-lane vreg width


# ----------------------------- shared helpers ------------------------------

def _gelu(x):
    return 0.5 * x * (1.0 + jnp.tanh(math.sqrt(2.0 / math.pi) *
                                     (x + 0.044715 * x * x * x)))


def _layernorm(x, g, b, eps=1e-5):
    mu = jnp.mean(x, axis=-1, keepdims=True)
    var = jnp.mean((x - mu) ** 2, axis=-1, keepdims=True)
    return (x - mu) * jax.lax.rsqrt(var + eps) * g + b


def rope_tables(L, head_dim):
    inv_freq = 1.0 / (10000.0 ** (jnp.arange(0, head_dim, 2, dtype=jnp.float32)
                                  / head_dim))
    t = jnp.arange(L, dtype=jnp.float32)
    freqs = t[:, None] * inv_freq[None, :]
    emb = jnp.concatenate([freqs, freqs], axis=-1)          # (L, head_dim)
    return jnp.cos(emb), jnp.sin(emb)


# --------------------------- fused Pallas kernel ----------------------------

def fused_forward_kernel(x0_ref, cos_ref, sin_ref,
                         ln1g_ref, ln1b_ref, wqkv_ref, bqkv_ref,
                         wo_ref, bo_ref, ln2g_ref, ln2b_ref,
                         w1_ref, b1_ref, w2_ref, b2_ref,
                         clsw_ref, clsb_ref,
                         out_ref, act_ref, attn_ref,
                         *, num_heads, head_dim):
    li = pl.program_id(1)                      # layer index ("arbitrary" axis)
    Dh = num_heads * head_dim

    # layer-0 prologue: load the extractor activation into the resident scratch
    @pl.when(li == 0)
    def _():
        act_ref[...] = x0_ref[0]

    x = act_ref[...]                           # (L, D) f32, VMEM-resident
    L = x.shape[0]
    cos = cos_ref[...]                         # (L, H*hd) head-tiled RoPE tables
    sin = sin_ref[...]

    # --- multi-head rotary self-attention (pre-LN) ---------------------------
    # One wide packed matmul: [q*s | rot(q*s) | k | rot(k) | v]  (scale & RoPE
    # rotate folded into the weights at pack time).
    h = _layernorm(x, ln1g_ref[li], ln1b_ref[li])
    hb = h.astype(jnp.bfloat16)
    qkvr = (jnp.dot(hb, wqkv_ref[li], preferred_element_type=jnp.float32)
            + bqkv_ref[li])                    # (L, 5*Dh) f32
    q = qkvr[:, 0 * Dh:1 * Dh] * cos + qkvr[:, 1 * Dh:2 * Dh] * sin
    k = qkvr[:, 2 * Dh:3 * Dh] * cos + qkvr[:, 3 * Dh:4 * Dh] * sin
    v = qkvr[:, 4 * Dh:5 * Dh]

    # Per-head score/attend (static unroll over the small head count); each
    # head's output is written lane-dense into attn_ref at a static column.
    for hi in range(num_heads):
        sl = slice(hi * head_dim, (hi + 1) * head_dim)
        qh = q[:, sl].astype(jnp.bfloat16)
        kh = k[:, sl].astype(jnp.bfloat16)
        vh = v[:, sl].astype(jnp.bfloat16)
        s = jax.lax.dot_general(qh, kh, (((1,), (1,)), ((), ())),
                                preferred_element_type=jnp.float32)  # (L, L)
        s = s - jnp.max(s, axis=-1, keepdims=True)
        e = jnp.exp(s)
        o = jnp.dot(e.astype(jnp.bfloat16), vh,
                    preferred_element_type=jnp.float32)              # (L, hd)
        inv = pl.reciprocal(jnp.sum(e, axis=-1, keepdims=True), approx=True)
        attn_ref[:, sl] = o * inv              # normalize AFTER attend (L*hd muls)

    o_all = attn_ref[...].astype(jnp.bfloat16)                        # (L, D)
    x = (x + jnp.dot(o_all, wo_ref[li], preferred_element_type=jnp.float32)
         + bo_ref[li])

    # --- feed-forward (pre-LN) ----------------------------------------------
    h2 = _layernorm(x, ln2g_ref[li], ln2b_ref[li])
    f = _gelu(jnp.dot(h2.astype(jnp.bfloat16), w1_ref[li],
                      preferred_element_type=jnp.float32) + b1_ref[li])
    x = x + jnp.dot(f.astype(jnp.bfloat16), w2_ref[li],
                    preferred_element_type=jnp.float32) + b2_ref[li]
    act_ref[...] = x

    # --- last-layer epilogue: mean-pool + classifier (lane-padded output) ----
    @pl.when(li == pl.num_programs(1) - 1)
    def _():
        pooled = jnp.sum(x, axis=0, keepdims=True) * (1.0 / L)        # (1, D)
        out_ref[0] = (jnp.dot(pooled, clsw_ref[...],
                              preferred_element_type=jnp.float32)
                      + clsb_ref[...])


# ------------------------- parameter packing / prep -------------------------

def pack_params(params, num_heads, head_dim, seq_len):
    """Stack layers, fold the attention scale and RoPE rotate into a single
    packed (D, 5*D) QKV weight, build RoPE tables, cast matmul weights bf16."""
    H, hd = num_heads, head_dim
    Dh = H * hd
    NL = len(params["layers"])
    scale = 1.0 / math.sqrt(hd)

    def stack(name):
        return jnp.stack([lp[name] for lp in params["layers"]], axis=0)

    def pack_w(name):                         # (NL,H,D,hd) -> (NL,D,H*hd)
        w = stack(name)
        return w.transpose(0, 2, 1, 3).reshape(NL, -1, Dh)

    def pack_b(name):                         # (NL,H,1,hd) -> (NL,1,H*hd)
        b = stack(name)
        return b.transpose(0, 2, 1, 3).reshape(NL, 1, Dh)

    # rotate_half(t) == t @ P, block-diagonal over heads (exact +-1 entries).
    half = hd // 2
    idx = jnp.arange(half)
    P = jnp.zeros((hd, hd), jnp.float32)
    P = P.at[idx + half, idx].set(-1.0)
    P = P.at[idx, idx + half].set(1.0)
    rot = jnp.kron(jnp.eye(H, dtype=jnp.float32), P)          # (Dh, Dh)

    wq = pack_w("wq") * scale                 # fold 1/sqrt(hd) into q side
    bq = pack_b("bq") * scale
    wk, bk = pack_w("wk"), pack_b("bk")
    wv, bv = pack_w("wv"), pack_b("bv")

    # [ wq*s | (wq*s)@rot | wk | wk@rot | wv ]  -> one (D, 5*Dh) matmul per layer.
    wqkv = jnp.concatenate([wq, wq @ rot, wk, wk @ rot, wv], axis=-1)
    bqkv = jnp.concatenate([bq, bq @ rot, bk, bk @ rot, bv], axis=-1)

    wo = stack("wo").reshape(NL, Dh, -1)      # (NL,H,hd,D) -> (NL,H*hd,D)

    cos, sin = rope_tables(seq_len, hd)
    cos_pk = jnp.tile(cos, (1, H))            # (L, H*hd)
    sin_pk = jnp.tile(sin, (1, H))

    D = params["conv_w"].shape[1]
    C = params["cls_w"].shape[1]
    cls_w = jnp.zeros((D, CLS_PAD), jnp.float32).at[:, :C].set(params["cls_w"])
    cls_b = jnp.zeros((1, CLS_PAD), jnp.float32).at[:, :C].set(params["cls_b"])

    bf = jnp.bfloat16
    return dict(
        cos=cos_pk, sin=sin_pk,
        ln1_g=stack("ln1_g"), ln1_b=stack("ln1_b"),
        wqkv=wqkv.astype(bf), bqkv=bqkv,
        wo=wo.astype(bf), bo=stack("bo"),
        ln2_g=stack("ln2_g"), ln2_b=stack("ln2_b"),
        w1=stack("w1").astype(bf), b1=stack("b1"),
        w2=stack("w2").astype(bf), b2=stack("b2"),
        cls_w=cls_w, cls_b=cls_b,
    )


def _vmem_limit_bytes(inputs, scratch_bytes, out_block_bytes):
    """Derive the scoped-VMEM limit from actual buffer sizes (conservative:
    full arrays, double-buffered) + headroom for in-kernel intermediates,
    clamped to v7x's 64 MiB physical VMEM (v5e/v6e have 128 MiB)."""
    in_bytes = sum(int(a.size) * a.dtype.itemsize for a in inputs)
    need = 2 * in_bytes + scratch_bytes + 2 * out_block_bytes + (16 << 20)
    return int(min(need, 64 << 20))


# ------------------------------ model wrapper --------------------------------

def astro_conformer_classifier(x, mask, params, *, num_heads, head_dim,
                               num_classes, stride=2, kernel=3):
    assert kernel == 3 and stride == 2, "extractor fixed to Conv1d(k=3, s=2, p=1)"
    B = x.shape[0]
    xf = x.reshape(B, -1)                              # x.view(B, -1)
    mf = mask.reshape(B, -1)                           # mask.view(B, -1)
    xm = (xf * mf).astype(jnp.float32)                 # x * mask

    # Extractor Conv1d(1,D,k=3,s=2,p=1)+GELU done lane-dense in the wrapper
    # (tiny vs. the encoder; (L,1) taps inside the kernel waste 128x VMEM/DMA).
    L = xm.shape[1]
    pad = (kernel - 1) // 2
    xp = jnp.pad(xm, ((0, 0), (pad, pad)))
    Lp = (L + 2 * pad - kernel) // stride + 1
    win = jnp.stack([xp[:, k:k + stride * Lp:stride] for k in range(kernel)],
                    axis=-1)                           # (B, Lp, 3)
    act0 = _gelu(jnp.einsum("blk,kd->bld", win, params["conv_w"])
                 + params["conv_b"])                   # (B, Lp, D) lane-dense

    D = params["conv_w"].shape[1]
    NL = len(params["layers"])
    assert D == num_heads * head_dim
    pk = pack_params(params, num_heads, head_dim, Lp)

    def rep(shape):        # replicated / VMEM-resident across the whole grid
        nd = len(shape)
        return pl.BlockSpec(tuple(shape), lambda bi, li, _nd=nd: (0,) * _nd)

    def per_batch(shape):  # leading batch dim follows grid axis 0
        nd = len(shape)
        return pl.BlockSpec((1,) + tuple(shape[1:]),
                            lambda bi, li, _nd=nd: (bi,) + (0,) * (_nd - 1))

    inputs = [act0, pk["cos"], pk["sin"],
              pk["ln1_g"], pk["ln1_b"], pk["wqkv"], pk["bqkv"],
              pk["wo"], pk["bo"], pk["ln2_g"], pk["ln2_b"],
              pk["w1"], pk["b1"], pk["w2"], pk["b2"],
              pk["cls_w"], pk["cls_b"]]
    in_specs = [per_batch(act0.shape)] + [rep(a.shape) for a in inputs[1:]]

    scratch_bytes = 2 * Lp * D * 4                     # act + attn scratches
    vmem_limit = _vmem_limit_bytes(inputs, scratch_bytes, CLS_PAD * 4)

    kern = functools.partial(fused_forward_kernel,
                             num_heads=num_heads, head_dim=head_dim)

    logits_padded = pl.pallas_call(
        kern,
        out_shape=jax.ShapeDtypeStruct((B, 1, CLS_PAD), jnp.float32),
        grid=(B, NL),
        in_specs=in_specs,
        out_specs=pl.BlockSpec((1, 1, CLS_PAD), lambda bi, li: (bi, 0, 0)),
        scratch_shapes=[pltpu.VMEM((Lp, D), jnp.float32),   # resident activation
                        pltpu.VMEM((Lp, D), jnp.float32)],  # per-layer attn out
        compiler_params=pltpu.CompilerParams(
            dimension_semantics=("parallel", "arbitrary"),
            vmem_limit_bytes=vmem_limit),
    )(*inputs)

    return logits_padded[:, 0, :num_classes]


# ------------------------------ parameter init -------------------------------

def init_params(key, D, H, hd, F, K, C, n_layers):
    keys = iter(jax.random.split(key, 8 * n_layers + 8))

    def nrm(shape, scale):
        return jax.random.normal(next(keys), shape, jnp.float32) * scale

    params = {
        "conv_w": nrm((K, D), 1.0 / math.sqrt(K)),
        "conv_b": jnp.zeros((1, D), jnp.float32),
        "cls_w": nrm((D, C), 1.0 / math.sqrt(D)),
        "cls_b": jnp.zeros((1, C), jnp.float32),
        "layers": [],
    }
    for _ in range(n_layers):
        params["layers"].append({
            "ln1_g": jnp.ones((1, D), jnp.float32),
            "ln1_b": jnp.zeros((1, D), jnp.float32),
            "wq": nrm((H, D, hd), 1.0 / math.sqrt(D)),
            "bq": jnp.zeros((H, 1, hd), jnp.float32),
            "wk": nrm((H, D, hd), 1.0 / math.sqrt(D)),
            "bk": jnp.zeros((H, 1, hd), jnp.float32),
            "wv": nrm((H, D, hd), 1.0 / math.sqrt(D)),
            "bv": jnp.zeros((H, 1, hd), jnp.float32),
            "wo": nrm((H, hd, D), 1.0 / math.sqrt(D)),
            "bo": jnp.zeros((1, D), jnp.float32),
            "ln2_g": jnp.ones((1, D), jnp.float32),
            "ln2_b": jnp.zeros((1, D), jnp.float32),
            "w1": nrm((D, F), 1.0 / math.sqrt(D)),
            "b1": jnp.zeros((1, F), jnp.float32),
            "w2": nrm((F, D), 1.0 / math.sqrt(F)),
            "b2": jnp.zeros((1, D), jnp.float32),
        })
    return params


# --------------------------- pure-JAX f32 reference ---------------------------

def reference_forward(x, mask, params, *, num_heads, head_dim,
                      stride=2, kernel=3):
    B = x.shape[0]
    xm = (x.reshape(B, -1) * mask.reshape(B, -1)).astype(jnp.float32)
    L = xm.shape[1]
    pad = (kernel - 1) // 2
    xp = jnp.pad(xm, ((0, 0), (pad, pad)))
    Lp = (L + 2 * pad - kernel) // stride + 1
    starts = jnp.arange(Lp) * stride
    win = xp[:, starts[:, None] + jnp.arange(kernel)]
    out = _gelu(jnp.einsum("blk,kd->bld", win, params["conv_w"])
                + params["conv_b"])

    cos, sin = rope_tables(Lp, head_dim)
    half = head_dim // 2
    sign = jnp.where(jnp.arange(head_dim) < half, -1.0, 1.0)

    def rope(t):
        return t * cos + jnp.roll(t, half, axis=-1) * sign * sin

    for lp in params["layers"]:
        h = _layernorm(out, lp["ln1_g"], lp["ln1_b"])
        acc = jnp.zeros_like(out)
        for hi in range(num_heads):
            qh = rope(jnp.einsum("bld,de->ble", h, lp["wq"][hi]) + lp["bq"][hi])
            kh = rope(jnp.einsum("bld,de->ble", h, lp["wk"][hi]) + lp["bk"][hi])
            vh = jnp.einsum("bld,de->ble", h, lp["wv"][hi]) + lp["bv"][hi]
            s = jnp.einsum("bqe,bke->bqk", qh, kh) / math.sqrt(head_dim)
            p = jax.nn.softmax(s, axis=-1)
            oh = jnp.einsum("bqk,bke->bqe", p, vh)
            acc = acc + jnp.einsum("bqe,ed->bqd", oh, lp["wo"][hi])
        out = out + acc + lp["bo"]
        h2 = _layernorm(out, lp["ln2_g"], lp["ln2_b"])
        f = _gelu(jnp.einsum("bld,df->blf", h2, lp["w1"]) + lp["b1"])
        out = out + jnp.einsum("blf,fd->bld", f, lp["w2"]) + lp["b2"]

    pooled = jnp.mean(out, axis=1)
    return pooled @ params["cls_w"] + params["cls_b"]


# ----------------------------------- main ------------------------------------

if __name__ == "__main__":
    # Small but lane-dense hyperparameters (D and H*hd are multiples of 128).
    B, L_IN = 2, 256                 # batch, raw light-curve length
    D, H, HD = 128, 4, 32            # encoder_dim, heads, head_dim (H*HD == 128)
    F = 256                          # FFN hidden dim
    K, STRIDE = 3, 2                 # extractor conv kernel / stride
    NUM_CLASSES = 3
    N_LAYERS = 2

    key = jax.random.PRNGKey(0)
    kx, km, kp = jax.random.split(key, 3)
    # x has an extra dim (B, 1, L) -> exercises the .view(B, -1) flatten path
    x = jax.random.normal(kx, (B, 1, L_IN), jnp.float32)
    mask = (jax.random.uniform(km, (B, 1, L_IN)) > 0.2).astype(jnp.float32)

    params = init_params(kp, D, H, HD, F, K, NUM_CLASSES, N_LAYERS)

    logits = astro_conformer_classifier(x, mask, params,
                                        num_heads=H, head_dim=HD,
                                        num_classes=NUM_CLASSES,
                                        stride=STRIDE, kernel=K)
    logits = jax.block_until_ready(logits)

    ref = reference_forward(x, mask, params, num_heads=H, head_dim=HD,
                            stride=STRIDE, kernel=K)

    assert logits.shape == (B, NUM_CLASSES), logits.shape
    # Kernel uses bf16 MXU operands (f32 accumulation) + EUP approx reciprocal
    # in the softmax; compare against the pure-f32 reference accordingly.
    err = float(jnp.max(jnp.abs(logits - ref)))
    assert jnp.allclose(logits, ref, rtol=5e-2, atol=5e-2), ("mismatch", err)

    print("KERNEL_OK")
</pallas_src>

<mosaic_0001>
module attributes {stable_mosaic.version = 11 : i64} {
  func.func @fused_forward_kernel(%arg0: i32, %arg1: i32, %arg2: memref<1x128x128xf32, #tpu.memory_space<vmem>>, %arg3: memref<128x128xf32, #tpu.memory_space<vmem>>, %arg4: memref<128x128xf32, #tpu.memory_space<vmem>>, %arg5: memref<2x1x128xf32, #tpu.memory_space<vmem>>, %arg6: memref<2x1x128xf32, #tpu.memory_space<vmem>>, %arg7: memref<2x128x640xbf16, #tpu.memory_space<vmem>>, %arg8: memref<2x1x640xf32, #tpu.memory_space<vmem>>, %arg9: memref<2x128x128xbf16, #tpu.memory_space<vmem>>, %arg10: memref<2x1x128xf32, #tpu.memory_space<vmem>>, %arg11: memref<2x1x128xf32, #tpu.memory_space<vmem>>, %arg12: memref<2x1x128xf32, #tpu.memory_space<vmem>>, %arg13: memref<2x128x256xbf16, #tpu.memory_space<vmem>>, %arg14: memref<2x1x256xf32, #tpu.memory_space<vmem>>, %arg15: memref<2x256x128xbf16, #tpu.memory_space<vmem>>, %arg16: memref<2x1x128xf32, #tpu.memory_space<vmem>>, %arg17: memref<128x128xf32, #tpu.memory_space<vmem>>, %arg18: memref<1x128xf32, #tpu.memory_space<vmem>>, %arg19: memref<1x1x128xf32, #tpu.memory_space<vmem>>, %arg20: memref<128x128xf32, #tpu.memory_space<vmem>>, %arg21: memref<128x128xf32, #tpu.memory_space<vmem>>) attributes {dimension_semantics = [#tpu.dimension_semantics<parallel>, #tpu.dimension_semantics<arbitrary>], iteration_bounds = array<i64: 2, 2>, scalar_prefetch = 0 : i64, scratch_operands = 2 : i64, tpu.core_type = #tpu.core_type<tc>, window_params = [{transform_indices = @transform_0, window_bounds = array<i64: 1, 128, 128>}, {pipeline_mode = #tpu.pipeline_mode<synchronous>, transform_indices = @transform_1, window_bounds = array<i64: 128, 128>}, {pipeline_mode = #tpu.pipeline_mode<synchronous>, transform_indices = @transform_2, window_bounds = array<i64: 128, 128>}, {pipeline_mode = #tpu.pipeline_mode<synchronous>, transform_indices = @transform_3, window_bounds = array<i64: 2, 1, 128>}, {pipeline_mode = #tpu.pipeline_mode<synchronous>, transform_indices = @transform_4, window_bounds = array<i64: 2, 1, 128>}, {pipeline_mode = #tpu.pipeline_mode<synchronous>, transform_indices = @transform_5, window_bounds = array<i64: 2, 128, 640>}, {pipeline_mode = #tpu.pipeline_mode<synchronous>, transform_indices = @transform_6, window_bounds = array<i64: 2, 1, 640>}, {pipeline_mode = #tpu.pipeline_mode<synchronous>, transform_indices = @transform_7, window_bounds = array<i64: 2, 128, 128>}, {pipeline_mode = #tpu.pipeline_mode<synchronous>, transform_indices = @transform_8, window_bounds = array<i64: 2, 1, 128>}, {pipeline_mode = #tpu.pipeline_mode<synchronous>, transform_indices = @transform_9, window_bounds = array<i64: 2, 1, 128>}, {pipeline_mode = #tpu.pipeline_mode<synchronous>, transform_indices = @transform_10, window_bounds = array<i64: 2, 1, 128>}, {pipeline_mode = #tpu.pipeline_mode<synchronous>, transform_indices = @transform_11, window_bounds = array<i64: 2, 128, 256>}, {pipeline_mode = #tpu.pipeline_mode<synchronous>, transform_indices = @transform_12, window_bounds = array<i64: 2, 1, 256>}, {pipeline_mode = #tpu.pipeline_mode<synchronous>, transform_indices = @transform_13, window_bounds = array<i64: 2, 256, 128>}, {pipeline_mode = #tpu.pipeline_mode<synchronous>, transform_indices = @transform_14, window_bounds = array<i64: 2, 1, 128>}, {pipeline_mode = #tpu.pipeline_mode<synchronous>, transform_indices = @transform_15, window_bounds = array<i64: 128, 128>}, {pipeline_mode = #tpu.pipeline_mode<synchronous>, transform_indices = @transform_16, window_bounds = array<i64: 1, 128>}, {transform_indices = @transform_17, window_bounds = array<i64: 1, 1, 128>}]} {
    %c0_i32 = arith.constant 0 : i32
    %0 = arith.cmpi eq, %arg1, %c0_i32 : i32
    %1 = arith.extui %0 : i1 to i32
    %c0_i32_0 = arith.constant 0 : i32
    %2 = arith.cmpi ne, %1, %c0_i32_0 : i32
    scf.if %2 {
      %c0_73 = arith.constant 0 : index
      %c0_74 = arith.constant 0 : index
      %c0_75 = arith.constant 0 : index
      %213 = vector.load %arg2[%c0_73, %c0_74, %c0_75] : memref<1x128x128xf32, #tpu.memory_space<vmem>>, vector<1x128x128xf32>
      %214 = vector.shape_cast %213 : vector<1x128x128xf32> to vector<128x128xf32>
      %c0_76 = arith.constant 0 : index
      %c0_77 = arith.constant 0 : index
      %215 = vector.load %arg20[%c0_76, %c0_77] : memref<128x128xf32, #tpu.memory_space<vmem>>, vector<128x128xf32>
      tpu.vector_store %arg20[%c0_76, %c0_77], %214 {strides = array<i32>} : memref<128x128xf32, #tpu.memory_space<vmem>>, vector<128x128xf32>,
    } else {
    }
    %c0 = arith.constant 0 : index
    %c0_1 = arith.constant 0 : index
    %3 = vector.load %arg20[%c0, %c0_1] : memref<128x128xf32, #tpu.memory_space<vmem>>, vector<128x128xf32>
    %c0_2 = arith.constant 0 : index
    %c0_3 = arith.constant 0 : index
    %4 = vector.load %arg3[%c0_2, %c0_3] : memref<128x128xf32, #tpu.memory_space<vmem>>, vector<128x128xf32>
    %c0_4 = arith.constant 0 : index
    %c0_5 = arith.constant 0 : index
    %5 = vector.load %arg4[%c0_4, %c0_5] : memref<128x128xf32, #tpu.memory_space<vmem>>, vector<128x128xf32>
    %6 = arith.index_cast %arg1 : i32 to index
    %c0_6 = arith.constant 0 : index
    %c0_7 = arith.constant 0 : index
    %7 = vector.load %arg5[%6, %c0_6, %c0_7] : memref<2x1x128xf32, #tpu.memory_space<vmem>>, vector<1x1x128xf32>
    %8 = vector.shape_cast %7 : vector<1x1x128xf32> to vector<1x128xf32>
    %9 = arith.index_cast %arg1 : i32 to index
    %c0_8 = arith.constant 0 : index
    %c0_9 = arith.constant 0 : index
    %10 = vector.load %arg6[%9, %c0_8, %c0_9] : memref<2x1x128xf32, #tpu.memory_space<vmem>>, vector<1x1x128xf32>
    %11 = vector.shape_cast %10 : vector<1x1x128xf32> to vector<1x128xf32>
    %cst = arith.constant dense<0.000000e+00> : vector<128xf32>
    %12 = vector.multi_reduction <add>, %3, %cst [1] : vector<128x128xf32> to vector<128xf32>
    %13 = vector.shape_cast %12 : vector<128xf32> to vector<128x1xf32>
    %cst_10 = arith.constant 1.280000e+02 : f32
    %14 = vector.broadcast %cst_10 : f32 to vector<128x1xf32>
    %15 = arith.divf %13, %14 : vector<128x1xf32>
    %16 = vector.broadcast %15 : vector<128x1xf32> to vector<128x128xf32>
    %17 = arith.subf %3, %16 : vector<128x128xf32>
    %18 = arith.mulf %17, %17 : vector<128x128xf32>
    %cst_11 = arith.constant dense<0.000000e+00> : vector<128xf32>
    %19 = vector.multi_reduction <add>, %18, %cst_11 [1] : vector<128x128xf32> to vector<128xf32>
    %20 = vector.shape_cast %19 : vector<128xf32> to vector<128x1xf32>
    %cst_12 = arith.constant 1.280000e+02 : f32
    %21 = vector.broadcast %cst_12 : f32 to vector<128x1xf32>
    %22 = arith.divf %20, %21 : vector<128x1xf32>
    %23 = vector.broadcast %15 : vector<128x1xf32> to vector<128x128xf32>
    %24 = arith.subf %3, %23 : vector<128x128xf32>
    %cst_13 = arith.constant 9.99999974E-6 : f32
    %25 = vector.broadcast %cst_13 : f32 to vector<128x1xf32>
    %26 = arith.addf %22, %25 : vector<128x1xf32>
    %27 = math.rsqrt %26 : vector<128x1xf32>
    %28 = vector.broadcast %27 : vector<128x1xf32> to vector<128x128xf32>
    %29 = arith.mulf %24, %28 : vector<128x128xf32>
    %30 = vector.broadcast %8 : vector<1x128xf32> to vector<128x128xf32>
    %31 = arith.mulf %29, %30 : vector<128x128xf32>
    %32 = vector.broadcast %11 : vector<1x128xf32> to vector<128x128xf32>
    %33 = arith.addf %31, %32 : vector<128x128xf32>
    %34 = arith.truncf %33 : vector<128x128xf32> to vector<128x128xbf16>
    %35 = arith.index_cast %arg1 : i32 to index
    %c0_14 = arith.constant 0 : index
    %c0_15 = arith.constant 0 : index
    %36 = vector.load %arg7[%35, %c0_14, %c0_15] : memref<2x128x640xbf16, #tpu.memory_space<vmem>>, vector<1x128x640xbf16>
    %37 = vector.shape_cast %36 : vector<1x128x640xbf16> to vector<128x640xbf16>
    %cst_16 = arith.constant dense<0.000000e+00> : vector<128x640xf32>
    %38 = tpu.matmul %34, %37, %cst_16 {dimension_numbers = #tpu.dot_dimension_numbers<[1], [0], [0], [1], [0, 0, 1, 1], [], []>} : vector<128x128xbf16>, vector<128x640xbf16>, vector<128x640xf32> -> vector<128x640xf32>
    %39 = arith.index_cast %arg1 : i32 to index
    %c0_17 = arith.constant 0 : index
    %c0_18 = arith.constant 0 : index
    %40 = vector.load %arg8[%39, %c0_17, %c0_18] : memref<2x1x640xf32, #tpu.memory_space<vmem>>, vector<1x1x640xf32>
    %41 = vector.shape_cast %40 : vector<1x1x640xf32> to vector<1x640xf32>
    %42 = vector.broadcast %41 : vector<1x640xf32> to vector<128x640xf32>
    %43 = arith.addf %38, %42 : vector<128x640xf32>
    %44 = vector.extract_strided_slice %43 {offsets = [0, 0], sizes = [128, 128], strides = [1, 1]} : vector<128x640xf32> to vector<128x128xf32>
    %45 = arith.mulf %44, %4 : vector<128x128xf32>
    %46 = vector.extract_strided_slice %43 {offsets = [0, 128], sizes = [128, 128], strides = [1, 1]} : vector<128x640xf32> to vector<128x128xf32>
    %47 = arith.mulf %46, %5 : vector<128x128xf32>
    %48 = arith.addf %45, %47 : vector<128x128xf32>
    %49 = vector.extract_strided_slice %43 {offsets = [0, 256], sizes = [128, 128], strides = [1, 1]} : vector<128x640xf32> to vector<128x128xf32>
    %50 = arith.mulf %49, %4 : vector<128x128xf32>
    %51 = vector.extract_strided_slice %43 {offsets = [0, 384], sizes = [128, 128], strides = [1, 1]} : vector<128x640xf32> to vector<128x128xf32>
    %52 = arith.mulf %51, %5 : vector<128x128xf32>
    %53 = arith.addf %50, %52 : vector<128x128xf32>
    %54 = vector.extract_strided_slice %43 {offsets = [0, 512], sizes = [128, 128], strides = [1, 1]} : vector<128x640xf32> to vector<128x128xf32>
    %55 = vector.extract_strided_slice %48 {offsets = [0, 0], sizes = [128, 32], strides = [1, 1]} : vector<128x128xf32> to vector<128x32xf32>
    %56 = arith.truncf %55 : vector<128x32xf32> to vector<128x32xbf16>
    %57 = vector.extract_strided_slice %53 {offsets = [0, 0], sizes = [128, 32], strides = [1, 1]} : vector<128x128xf32> to vector<128x32xf32>
    %58 = arith.truncf %57 : vector<128x32xf32> to vector<128x32xbf16>
    %59 = vector.extract_strided_slice %54 {offsets = [0, 0], sizes = [128, 32], strides = [1, 1]} : vector<128x128xf32> to vector<128x32xf32>
    %60 = arith.truncf %59 : vector<128x32xf32> to vector<128x32xbf16>
    %cst_19 = arith.constant dense<0.000000e+00> : vector<128x128xf32>
    %61 = tpu.matmul %56, %58, %cst_19 {dimension_numbers = #tpu.dot_dimension_numbers<[1], [1], [0], [0], [0, 0, 1, 0], [], []>} : vector<128x32xbf16>, vector<128x32xbf16>, vector<128x128xf32> -> vector<128x128xf32>
    %cst_20 = arith.constant dense<0xFF800000> : vector<128xf32>
    %62 = vector.multi_reduction <maximumf>, %61, %cst_20 [1] : vector<128x128xf32> to vector<128xf32>
    %63 = vector.shape_cast %62 : vector<128xf32> to vector<128x1xf32>
    %64 = vector.broadcast %63 : vector<128x1xf32> to vector<128x128xf32>
    %65 = arith.subf %61, %64 : vector<128x128xf32>
    %66 = math.exp %65 : vector<128x128xf32>
    %67 = arith.truncf %66 : vector<128x128xf32> to vector<128x128xbf16>
    %cst_21 = arith.constant dense<0.000000e+00> : vector<128x32xf32>
    %68 = tpu.matmul %67, %60, %cst_21 {dimension_numbers = #tpu.dot_dimension_numbers<[1], [0], [0], [1], [0, 0, 1, 1], [], []>} : vector<128x128xbf16>, vector<128x32xbf16>, vector<128x32xf32> -> vector<128x32xf32>
    %cst_22 = arith.constant dense<0.000000e+00> : vector<128xf32>
    %69 = vector.multi_reduction <add>, %66, %cst_22 [1] : vector<128x128xf32> to vector<128xf32>
    %70 = vector.shape_cast %69 : vector<128xf32> to vector<128x1xf32>
    %71 = tpu.reciprocal %70 {approx = true} : vector<128x1xf32> -> vector<128x1xf32>
    %72 = vector.broadcast %71 : vector<128x1xf32> to vector<128x32xf32>
    %73 = arith.mulf %68, %72 : vector<128x32xf32>
    %c0_23 = arith.constant 0 : index
    %c0_24 = arith.constant 0 : index
    %74 = vector.load %arg21[%c0_23, %c0_24] : memref<128x128xf32, #tpu.memory_space<vmem>>, vector<128x32xf32>
    tpu.vector_store %arg21[%c0_23, %c0_24], %73 {strides = array<i32>} : memref<128x128xf32, #tpu.memory_space<vmem>>, vector<128x32xf32>,
    %75 = vector.extract_strided_slice %48 {offsets = [0, 32], sizes = [128, 32], strides = [1, 1]} : vector<128x128xf32> to vector<128x32xf32>
    %76 = arith.truncf %75 : vector<128x32xf32> to vector<128x32xbf16>
    %77 = vector.extract_strided_slice %53 {offsets = [0, 32], sizes = [128, 32], strides = [1, 1]} : vector<128x128xf32> to vector<128x32xf32>
    %78 = arith.truncf %77 : vector<128x32xf32> to vector<128x32xbf16>
    %79 = vector.extract_strided_slice %54 {offsets = [0, 32], sizes = [128, 32], strides = [1, 1]} : vector<128x128xf32> to vector<128x32xf32>
    %80 = arith.truncf %79 : vector<128x32xf32> to vector<128x32xbf16>
    %cst_25 = arith.constant dense<0.000000e+00> : vector<128x128xf32>
    %81 = tpu.matmul %76, %78, %cst_25 {dimension_numbers = #tpu.dot_dimension_numbers<[1], [1], [0], [0], [0, 0, 1, 0], [], []>} : vector<128x32xbf16>, vector<128x32xbf16>, vector<128x128xf32> -> vector<128x128xf32>
    %cst_26 = arith.constant dense<0xFF800000> : vector<128xf32>
    %82 = vector.multi_reduction <maximumf>, %81, %cst_26 [1] : vector<128x128xf32> to vector<128xf32>
    %83 = vector.shape_cast %82 : vector<128xf32> to vector<128x1xf32>
    %84 = vector.broadcast %83 : vector<128x1xf32> to vector<128x128xf32>
    %85 = arith.subf %81, %84 : vector<128x128xf32>
    %86 = math.exp %85 : vector<128x128xf32>
    %87 = arith.truncf %86 : vector<128x128xf32> to vector<128x128xbf16>
    %cst_27 = arith.constant dense<0.000000e+00> : vector<128x32xf32>
    %88 = tpu.matmul %87, %80, %cst_27 {dimension_numbers = #tpu.dot_dimension_numbers<[1], [0], [0], [1], [0, 0, 1, 1], [], []>} : vector<128x128xbf16>, vector<128x32xbf16>, vector<128x32xf32> -> vector<128x32xf32>
    %cst_28 = arith.constant dense<0.000000e+00> : vector<128xf32>
    %89 = vector.multi_reduction <add>, %86, %cst_28 [1] : vector<128x128xf32> to vector<128xf32>
    %90 = vector.shape_cast %89 : vector<128xf32> to vector<128x1xf32>
    %91 = tpu.reciprocal %90 {approx = true} : vector<128x1xf32> -> vector<128x1xf32>
    %92 = vector.broadcast %91 : vector<128x1xf32> to vector<128x32xf32>
    %93 = arith.mulf %88, %92 : vector<128x32xf32>
    %c0_29 = arith.constant 0 : index
    %c32 = arith.constant 32 : index
    %94 = vector.load %arg21[%c0_29, %c32] : memref<128x128xf32, #tpu.memory_space<vmem>>, vector<128x32xf32>
    tpu.vector_store %arg21[%c0_29, %c32], %93 {strides = array<i32>} : memref<128x128xf32, #tpu.memory_space<vmem>>, vector<128x32xf32>,
    %95 = vector.extract_strided_slice %48 {offsets = [0, 64], sizes = [128, 32], strides = [1, 1]} : vector<128x128xf32> to vector<128x32xf32>
    %96 = arith.truncf %95 : vector<128x32xf32> to vector<128x32xbf16>
    %97 = vector.extract_strided_slice %53 {offsets = [0, 64], sizes = [128, 32], strides = [1, 1]} : vector<128x128xf32> to vector<128x32xf32>
    %98 = arith.truncf %97 : vector<128x32xf32> to vector<128x32xbf16>
    %99 = vector.extract_strided_slice %54 {offsets = [0, 64], sizes = [128, 32], strides = [1, 1]} : vector<128x128xf32> to vector<128x32xf32>
    %100 = arith.truncf %99 : vector<128x32xf32> to vector<128x32xbf16>
    %cst_30 = arith.constant dense<0.000000e+00> : vector<128x128xf32>
    %101 = tpu.matmul %96, %98, %cst_30 {dimension_numbers = #tpu.dot_dimension_numbers<[1], [1], [0], [0], [0, 0, 1, 0], [], []>} : vector<128x32xbf16>, vector<128x32xbf16>, vector<128x128xf32> -> vector<128x128xf32>
    %cst_31 = arith.constant dense<0xFF800000> : vector<128xf32>
    %102 = vector.multi_reduction <maximumf>, %101, %cst_31 [1] : vector<128x128xf32> to vector<128xf32>
    %103 = vector.shape_cast %102 : vector<128xf32> to vector<128x1xf32>
    %104 = vector.broadcast %103 : vector<128x1xf32> to vector<128x128xf32>
    %105 = arith.subf %101, %104 : vector<128x128xf32>
    %106 = math.exp %105 : vector<128x128xf32>
    %107 = arith.truncf %106 : vector<128x128xf32> to vector<128x128xbf16>
    %cst_32 = arith.constant dense<0.000000e+00> : vector<128x32xf32>
    %108 = tpu.matmul %107, %100, %cst_32 {dimension_numbers = #tpu.dot_dimension_numbers<[1], [0], [0], [1], [0, 0, 1, 1], [], []>} : vector<128x128xbf16>, vector<128x32xbf16>, vector<128x32xf32> -> vector<128x32xf32>
    %cst_33 = arith.constant dense<0.000000e+00> : vector<128xf32>
    %109 = vector.multi_reduction <add>, %106, %cst_33 [1] : vector<128x128xf32> to vector<128xf32>
    %110 = vector.shape_cast %109 : vector<128xf32> to vector<128x1xf32>
    %111 = tpu.reciprocal %110 {approx = true} : vector<128x1xf32> -> vector<128x1xf32>
    %112 = vector.broadcast %111 : vector<128x1xf32> to vector<128x32xf32>
    %113 = arith.mulf %108, %112 : vector<128x32xf32>
    %c0_34 = arith.constant 0 : index
    %c64 = arith.constant 64 : index
    %114 = vector.load %arg21[%c0_34, %c64] : memref<128x128xf32, #tpu.memory_space<vmem>>, vector<128x32xf32>
    tpu.vector_store %arg21[%c0_34, %c64], %113 {strides = array<i32>} : memref<128x128xf32, #tpu.memory_space<vmem>>, vector<128x32xf32>,
    %115 = vector.extract_strided_slice %48 {offsets = [0, 96], sizes = [128, 32], strides = [1, 1]} : vector<128x128xf32> to vector<128x32xf32>
    %116 = arith.truncf %115 : vector<128x32xf32> to vector<128x32xbf16>
    %117 = vector.extract_strided_slice %53 {offsets = [0, 96], sizes = [128, 32], strides = [1, 1]} : vector<128x128xf32> to vector<128x32xf32>
    %118 = arith.truncf %117 : vector<128x32xf32> to vector<128x32xbf16>
    %119 = vector.extract_strided_slice %54 {offsets = [0, 96], sizes = [128, 32], strides = [1, 1]} : vector<128x128xf32> to vector<128x32xf32>
    %120 = arith.truncf %119 : vector<128x32xf32> to vector<128x32xbf16>
    %cst_35 = arith.constant dense<0.000000e+00> : vector<128x128xf32>
    %121 = tpu.matmul %116, %118, %cst_35 {dimension_numbers = #tpu.dot_dimension_numbers<[1], [1], [0], [0], [0, 0, 1, 0], [], []>} : vector<128x32xbf16>, vector<128x32xbf16>, vector<128x128xf32> -> vector<128x128xf32>
    %cst_36 = arith.constant dense<0xFF800000> : vector<128xf32>
    %122 = vector.multi_reduction <maximumf>, %121, %cst_36 [1] : vector<128x128xf32> to vector<128xf32>
    %123 = vector.shape_cast %122 : vector<128xf32> to vector<128x1xf32>
    %124 = vector.broadcast %123 : vector<128x1xf32> to vector<128x128xf32>
    %125 = arith.subf %121, %124 : vector<128x128xf32>
    %126 = math.exp %125 : vector<128x128xf32>
    %127 = arith.truncf %126 : vector<128x128xf32> to vector<128x128xbf16>
    %cst_37 = arith.constant dense<0.000000e+00> : vector<128x32xf32>
    %128 = tpu.matmul %127, %120, %cst_37 {dimension_numbers = #tpu.dot_dimension_numbers<[1], [0], [0], [1], [0, 0, 1, 1], [], []>} : vector<128x128xbf16>, vector<128x32xbf16>, vector<128x32xf32> -> vector<128x32xf32>
    %cst_38 = arith.constant dense<0.000000e+00> : vector<128xf32>
    %129 = vector.multi_reduction <add>, %126, %cst_38 [1] : vector<128x128xf32> to vector<128xf32>
    %130 = vector.shape_cast %129 : vector<128xf32> to vector<128x1xf32>
    %131 = tpu.reciprocal %130 {approx = true} : vector<128x1xf32> -> vector<128x1xf32>
    %132 = vector.broadcast %131 : vector<128x1xf32> to vector<128x32xf32>
    %133 = arith.mulf %128, %132 : vector<128x32xf32>
    %c0_39 = arith.constant 0 : index
    %c96 = arith.constant 96 : index
    %134 = vector.load %arg21[%c0_39, %c96] : memref<128x128xf32, #tpu.memory_space<vmem>>, vector<128x32xf32>
    tpu.vector_store %arg21[%c0_39, %c96], %133 {strides = array<i32>} : memref<128x128xf32, #tpu.memory_space<vmem>>, vector<128x32xf32>,
    %c0_40 = arith.constant 0 : index
    %c0_41 = arith.constant 0 : index
    %135 = vector.load %arg21[%c0_40, %c0_41] : memref<128x128xf32, #tpu.memory_space<vmem>>, vector<128x128xf32>
    %136 = arith.truncf %135 : vector<128x128xf32> to vector<128x128xbf16>
    %137 = arith.index_cast %arg1 : i32 to index
    %c0_42 = arith.constant 0 : index
    %c0_43 = arith.constant 0 : index
    %138 = vector.load %arg9[%137, %c0_42, %c0_43] : memref<2x128x128xbf16, #tpu.memory_space<vmem>>, vector<1x128x128xbf16>
    %139 = vector.shape_cast %138 : vector<1x128x128xbf16> to vector<128x128xbf16>
    %cst_44 = arith.constant dense<0.000000e+00> : vector<128x128xf32>
    %140 = tpu.matmul %136, %139, %cst_44 {dimension_numbers = #tpu.dot_dimension_numbers<[1], [0], [0], [1], [0, 0, 1, 1], [], []>} : vector<128x128xbf16>, vector<128x128xbf16>, vector<128x128xf32> -> vector<128x128xf32>
    %141 = arith.addf %3, %140 : vector<128x128xf32>
    %142 = arith.index_cast %arg1 : i32 to index
    %c0_45 = arith.constant 0 : index
    %c0_46 = arith.constant 0 : index
    %143 = vector.load %arg10[%142, %c0_45, %c0_46] : memref<2x1x128xf32, #tpu.memory_space<vmem>>, vector<1x1x128xf32>
    %144 = vector.shape_cast %143 : vector<1x1x128xf32> to vector<1x128xf32>
    %145 = vector.broadcast %144 : vector<1x128xf32> to vector<128x128xf32>
    %146 = arith.addf %141, %145 : vector<128x128xf32>
    %147 = arith.index_cast %arg1 : i32 to index
    %c0_47 = arith.constant 0 : index
    %c0_48 = arith.constant 0 : index
    %148 = vector.load %arg11[%147, %c0_47, %c0_48] : memref<2x1x128xf32, #tpu.memory_space<vmem>>, vector<1x1x128xf32>
    %149 = vector.shape_cast %148 : vector<1x1x128xf32> to vector<1x128xf32>
    %150 = arith.index_cast %arg1 : i32 to index
    %c0_49 = arith.constant 0 : index
    %c0_50 = arith.constant 0 : index
    %151 = vector.load %arg12[%150, %c0_49, %c0_50] : memref<2x1x128xf32, #tpu.memory_space<vmem>>, vector<1x1x128xf32>
    %152 = vector.shape_cast %151 : vector<1x1x128xf32> to vector<1x128xf32>
    %cst_51 = arith.constant dense<0.000000e+00> : vector<128xf32>
    %153 = vector.multi_reduction <add>, %146, %cst_51 [1] : vector<128x128xf32> to vector<128xf32>
    %154 = vector.shape_cast %153 : vector<128xf32> to vector<128x1xf32>
    %cst_52 = arith.constant 1.280000e+02 : f32
    %155 = vector.broadcast %cst_52 : f32 to vector<128x1xf32>
    %156 = arith.divf %154, %155 : vector<128x1xf32>
    %157 = vector.broadcast %156 : vector<128x1xf32> to vector<128x128xf32>
    %158 = arith.subf %146, %157 : vector<128x128xf32>
    %159 = arith.mulf %158, %158 : vector<128x128xf32>
    %cst_53 = arith.constant dense<0.000000e+00> : vector<128xf32>
    %160 = vector.multi_reduction <add>, %159, %cst_53 [1] : vector<128x128xf32> to vector<128xf32>
    %161 = vector.shape_cast %160 : vector<128xf32> to vector<128x1xf32>
    %cst_54 = arith.constant 1.280000e+02 : f32
    %162 = vector.broadcast %cst_54 : f32 to vector<128x1xf32>
    %163 = arith.divf %161, %162 : vector<128x1xf32>
    %164 = vector.broadcast %156 : vector<128x1xf32> to vector<128x128xf32>
    %165 = arith.subf %146, %164 : vector<128x128xf32>
    %cst_55 = arith.constant 9.99999974E-6 : f32
    %166 = vector.broadcast %cst_55 : f32 to vector<128x1xf32>
    %167 = arith.addf %163, %166 : vector<128x1xf32>
    %168 = math.rsqrt %167 : vector<128x1xf32>
    %169 = vector.broadcast %168 : vector<128x1xf32> to vector<128x128xf32>
    %170 = arith.mulf %165, %169 : vector<128x128xf32>
    %171 = vector.broadcast %149 : vector<1x128xf32> to vector<128x128xf32>
    %172 = arith.mulf %170, %171 : vector<128x128xf32>
    %173 = vector.broadcast %152 : vector<1x128xf32> to vector<128x128xf32>
    %174 = arith.addf %172, %173 : vector<128x128xf32>
    %175 = arith.truncf %174 : vector<128x128xf32> to vector<128x128xbf16>
    %176 = arith.index_cast %arg1 : i32 to index
    %c0_56 = arith.constant 0 : index
    %c0_57 = arith.constant 0 : index
    %177 = vector.load %arg13[%176, %c0_56, %c0_57] : memref<2x128x256xbf16, #tpu.memory_space<vmem>>, vector<1x128x256xbf16>
    %178 = vector.shape_cast %177 : vector<1x128x256xbf16> to vector<128x256xbf16>
    %cst_58 = arith.constant dense<0.000000e+00> : vector<128x256xf32>
    %179 = tpu.matmul %175, %178, %cst_58 {dimension_numbers = #tpu.dot_dimension_numbers<[1], [0], [0], [1], [0, 0, 1, 1], [], []>} : vector<128x128xbf16>, vector<128x256xbf16>, vector<128x256xf32> -> vector<128x256xf32>
    %180 = arith.index_cast %arg1 : i32 to index
    %c0_59 = arith.constant 0 : index
    %c0_60 = arith.constant 0 : index
    %181 = vector.load %arg14[%180, %c0_59, %c0_60] : memref<2x1x256xf32, #tpu.memory_space<vmem>>, vector<1x1x256xf32>
    %182 = vector.shape_cast %181 : vector<1x1x256xf32> to vector<1x256xf32>
    %183 = vector.broadcast %182 : vector<1x256xf32> to vector<128x256xf32>
    %184 = arith.addf %179, %183 : vector<128x256xf32>
    %cst_61 = arith.constant 5.000000e-01 : f32
    %185 = vector.broadcast %cst_61 : f32 to vector<128x256xf32>
    %186 = arith.mulf %185, %184 : vector<128x256xf32>
    %cst_62 = arith.constant 4.471500e-02 : f32
    %187 = vector.broadcast %cst_62 : f32 to vector<128x256xf32>
    %188 = arith.mulf %187, %184 : vector<128x256xf32>
    %189 = arith.mulf %188, %184 : vector<128x256xf32>
    %190 = arith.mulf %189, %184 : vector<128x256xf32>
    %191 = arith.addf %184, %190 : vector<128x256xf32>
    %cst_63 = arith.constant 0.797884583 : f32
    %192 = vector.broadcast %cst_63 : f32 to vector<128x256xf32>
    %193 = arith.mulf %192, %191 : vector<128x256xf32>
    %194 = math.tanh %193 : vector<128x256xf32>
    %cst_64 = arith.constant 1.000000e+00 : f32
    %195 = vector.broadcast %cst_64 : f32 to vector<128x256xf32>
    %196 = arith.addf %195, %194 : vector<128x256xf32>
    %197 = arith.mulf %186, %196 : vector<128x256xf32>
    %198 = arith.truncf %197 : vector<128x256xf32> to vector<128x256xbf16>
    %199 = arith.index_cast %arg1 : i32 to index
    %c0_65 = arith.constant 0 : index
    %c0_66 = arith.constant 0 : index
    %200 = vector.load %arg15[%199, %c0_65, %c0_66] : memref<2x256x128xbf16, #tpu.memory_space<vmem>>, vector<1x256x128xbf16>
    %201 = vector.shape_cast %200 : vector<1x256x128xbf16> to vector<256x128xbf16>
    %cst_67 = arith.constant dense<0.000000e+00> : vector<128x128xf32>
    %202 = tpu.matmul %198, %201, %cst_67 {dimension_numbers = #tpu.dot_dimension_numbers<[1], [0], [0], [1], [0, 0, 1, 1], [], []>} : vector<128x256xbf16>, vector<256x128xbf16>, vector<128x128xf32> -> vector<128x128xf32>
    %203 = arith.addf %146, %202 : vector<128x128xf32>
    %204 = arith.index_cast %arg1 : i32 to index
    %c0_68 = arith.constant 0 : index
    %c0_69 = arith.constant 0 : index
    %205 = vector.load %arg16[%204, %c0_68, %c0_69] : memref<2x1x128xf32, #tpu.memory_space<vmem>>, vector<1x1x128xf32>
    %206 = vector.shape_cast %205 : vector<1x1x128xf32> to vector<1x128xf32>
    %207 = vector.broadcast %206 : vector<1x128xf32> to vector<128x128xf32>
    %208 = arith.addf %203, %207 : vector<128x128xf32>
    %c0_70 = arith.constant 0 : index
    %c0_71 = arith.constant 0 : index
    %209 = vector.load %arg20[%c0_70, %c0_71] : memref<128x128xf32, #tpu.memory_space<vmem>>, vector<128x128xf32>
    tpu.vector_store %arg20[%c0_70, %c0_71], %208 {strides = array<i32>} : memref<128x128xf32, #tpu.memory_space<vmem>>, vector<128x128xf32>,
    %c1_i32 = arith.constant 1 : i32
    %210 = arith.cmpi eq, %arg1, %c1_i32 : i32
    %211 = arith.extui %210 : i1 to i32
    %c0_i32_72 = arith.constant 0 : i32
    %212 = arith.cmpi ne, %211, %c0_i32_72 : i32
    scf.if %212 {
      %cst_73 = arith.constant dense<0.000000e+00> : vector<128xf32>
      %213 = vector.multi_reduction <add>, %208, %cst_73 [0] : vector<128x128xf32> to vector<128xf32>
      %214 = vector.shape_cast %213 : vector<128xf32> to vector<1x128xf32>
      %cst_74 = arith.constant 7.812500e-03 : f32
      %215 = vector.broadcast %cst_74 : f32 to vector<1x128xf32>
      %216 = arith.mulf %214, %215 : vector<1x128xf32>
      %c0_75 = arith.constant 0 : index
      %c0_76 = arith.constant 0 : index
      %217 = vector.load %arg17[%c0_75, %c0_76] : memref<128x128xf32, #tpu.memory_space<vmem>>, vector<128x128xf32>
      %cst_77 = arith.constant dense<0.000000e+00> : vector<1x128xf32>
      %218 = tpu.matmul %216, %217, %cst_77 {dimension_numbers = #tpu.dot_dimension_numbers<[1], [0], [0], [1], [0, 0, 1, 1], [], []>} : vector<1x128xf32>, vector<128x128xf32>, vector<1x128xf32> -> vector<1x128xf32>
      %c0_78 = arith.constant 0 : index
      %c0_79 = arith.constant 0 : index
      %219 = vector.load %arg18[%c0_78, %c0_79] : memref<1x128xf32, #tpu.memory_space<vmem>>, vector<1x128xf32>
      %220 = arith.addf %218, %219 : vector<1x128xf32>
      %c0_80 = arith.constant 0 : index
      %c0_81 = arith.constant 0 : index
      %c0_82 = arith.constant 0 : index
      %221 = vector.load %arg19[%c0_80, %c0_81, %c0_82] : memref<1x1x128xf32, #tpu.memory_space<vmem>>, vector<1x1x128xf32>
      %222 = vector.shape_cast %221 : vector<1x1x128xf32> to vector<1x128xf32>
      %223 = vector.shape_cast %220 : vector<1x128xf32> to vector<1x1x128xf32>
      tpu.vector_store %arg19[%c0_80, %c0_81, %c0_82], %223 {strides = array<i32>} : memref<1x1x128xf32, #tpu.memory_space<vmem>>, vector<1x1x128xf32>,
    } else {
    }
    return
  }
  func.func @transform_0(%arg0: i32, %arg1: i32) -> (i32, i32, i32) {
    %c0_i32 = arith.constant 0 : i32
    %c0_i32_0 = arith.constant 0 : i32
    %c0_i32_1 = arith.constant 0 : i32
    return %arg0, %c0_i32, %c0_i32_0 : i32, i32, i32
  }
  func.func @transform_1(%arg0: i32, %arg1: i32) -> (i32, i32) {
    %c0_i32 = arith.constant 0 : i32
    %c0_i32_0 = arith.constant 0 : i32
    %c0_i32_1 = arith.constant 0 : i32
    return %c0_i32, %c0_i32_0 : i32, i32
  }
  func.func @transform_2(%arg0: i32, %arg1: i32) -> (i32, i32) {
    %c0_i32 = arith.constant 0 : i32
    %c0_i32_0 = arith.constant 0 : i32
    %c0_i32_1 = arith.constant 0 : i32
    return %c0_i32, %c0_i32_0 : i32, i32
  }
  func.func @transform_3(%arg0: i32, %arg1: i32) -> (i32, i32, i32) {
    %c0_i32 = arith.constant 0 : i32
    %c0_i32_0 = arith.constant 0 : i32
    %c0_i32_1 = arith.constant 0 : i32
    %c0_i32_2 = arith.constant 0 : i32
    return %c0_i32, %c0_i32_0, %c0_i32_1 : i32, i32, i32
  }
  func.func @transform_4(%arg0: i32, %arg1: i32) -> (i32, i32, i32) {
    %c0_i32 = arith.constant 0 : i32
    %c0_i32_0 = arith.constant 0 : i32
    %c0_i32_1 = arith.constant 0 : i32
    %c0_i32_2 = arith.constant 0 : i32
    return %c0_i32, %c0_i32_0, %c0_i32_1 : i32, i32, i32
  }
  func.func @transform_5(%arg0: i32, %arg1: i32) -> (i32, i32, i32) {
    %c0_i32 = arith.constant 0 : i32
    %c0_i32_0 = arith.constant 0 : i32
    %c0_i32_1 = arith.constant 0 : i32
    %c0_i32_2 = arith.constant 0 : i32
    return %c0_i32, %c0_i32_0, %c0_i32_1 : i32, i32, i32
  }
  func.func @transform_6(%arg0: i32, %arg1: i32) -> (i32, i32, i32) {
    %c0_i32 = arith.constant 0 : i32
    %c0_i32_0 = arith.constant 0 : i32
    %c0_i32_1 = arith.constant 0 : i32
    %c0_i32_2 = arith.constant 0 : i32
    return %c0_i32, %c0_i32_0, %c0_i32_1 : i32, i32, i32
  }
  func.func @transform_7(%arg0: i32, %arg1: i32) -> (i32, i32, i32) {
    %c0_i32 = arith.constant 0 : i32
    %c0_i32_0 = arith.constant 0 : i32
    %c0_i32_1 = arith.constant 0 : i32
    %c0_i32_2 = arith.constant 0 : i32
    return %c0_i32, %c0_i32_0, %c0_i32_1 : i32, i32, i32
  }
  func.func @transform_8(%arg0: i32, %arg1: i32) -> (i32, i32, i32) {
    %c0_i32 = arith.constant 0 : i32
    %c0_i32_0 = arith.constant 0 : i32
    %c0_i32_1 = arith.constant 0 : i32
    %c0_i32_2 = arith.constant 0 : i32
    return %c0_i32, %c0_i32_0, %c0_i32_1 : i32, i32, i32
  }
  func.func @transform_9(%arg0: i32, %arg1: i32) -> (i32, i32, i32) {
    %c0_i32 = arith.constant 0 : i32
    %c0_i32_0 = arith.constant 0 : i32
    %c0_i32_1 = arith.constant 0 : i32
    %c0_i32_2 = arith.constant 0 : i32
    return %c0_i32, %c0_i32_0, %c0_i32_1 : i32, i32, i32
  }
  func.func @transform_10(%arg0: i32, %arg1: i32) -> (i32, i32, i32) {
    %c0_i32 = arith.constant 0 : i32
    %c0_i32_0 = arith.constant 0 : i32
    %c0_i32_1 = arith.constant 0 : i32
    %c0_i32_2 = arith.constant 0 : i32
    return %c0_i32, %c0_i32_0, %c0_i32_1 : i32, i32, i32
  }
  func.func @transform_11(%arg0: i32, %arg1: i32) -> (i32, i32, i32) {
    %c0_i32 = arith.constant 0 : i32
    %c0_i32_0 = arith.constant 0 : i32
    %c0_i32_1 = arith.constant 0 : i32
    %c0_i32_2 = arith.constant 0 : i32
    return %c0_i32, %c0_i32_0, %c0_i32_1 : i32, i32, i32
  }
  func.func @transform_12(%arg0: i32, %arg1: i32) -> (i32, i32, i32) {
    %c0_i32 = arith.constant 0 : i32
    %c0_i32_0 = arith.constant 0 : i32
    %c0_i32_1 = arith.constant 0 : i32
    %c0_i32_2 = arith.constant 0 : i32
    return %c0_i32, %c0_i32_0, %c0_i32_1 : i32, i32, i32
  }
  func.func @transform_13(%arg0: i32, %arg1: i32) -> (i32, i32, i32) {
    %c0_i32 = arith.constant 0 : i32
    %c0_i32_0 = arith.constant 0 : i32
    %c0_i32_1 = arith.constant 0 : i32
    %c0_i32_2 = arith.constant 0 : i32
    return %c0_i32, %c0_i32_0, %c0_i32_1 : i32, i32, i32
  }
  func.func @transform_14(%arg0: i32, %arg1: i32) -> (i32, i32, i32) {
    %c0_i32 = arith.constant 0 : i32
    %c0_i32_0 = arith.constant 0 : i32
    %c0_i32_1 = arith.constant 0 : i32
    %c0_i32_2 = arith.constant 0 : i32
    return %c0_i32, %c0_i32_0, %c0_i32_1 : i32, i32, i32
  }
  func.func @transform_15(%arg0: i32, %arg1: i32) -> (i32, i32) {
    %c0_i32 = arith.constant 0 : i32
    %c0_i32_0 = arith.constant 0 : i32
    %c0_i32_1 = arith.constant 0 : i32
    return %c0_i32, %c0_i32_0 : i32, i32
  }
  func.func @transform_16(%arg0: i32, %arg1: i32) -> (i32, i32) {
    %c0_i32 = arith.constant 0 : i32
    %c0_i32_0 = arith.constant 0 : i32
    %c0_i32_1 = arith.constant 0 : i32
    return %c0_i32, %c0_i32_0 : i32, i32
  }
  func.func @transform_17(%arg0: i32, %arg1: i32) -> (i32, i32, i32) {
    %c0_i32 = arith.constant 0 : i32
    %c0_i32_0 = arith.constant 0 : i32
    %c0_i32_1 = arith.constant 0 : i32
    return %arg0, %c0_i32, %c0_i32_0 : i32, i32, i32
  }
}

</mosaic_0001>

<llo_original>
// kernel: tpu_custom_call.1
$region0: #{tpu_custom_call.1}
  #allocation0 [shape = 'u32[]', space=smem, size = 0x4, offset = 0x4, fixed_abs, tag = 'smem constant byte address 0x4 - core index']
  #allocation1 [shape = 'u32[72,128]{1,0:T(1,128)}', space=vmem, size = 0x9000, scoped, tag = 'internal scratch']
  #allocation2 [shape = 'f32[128,128]{1,0:T(8,128)}', space=vmem, size = 0x10000, scoped, tag = 'scratch operand']
  #allocation3 [shape = 'f32[128,128]{1,0:T(8,128)}', space=vmem, size = 0x10000, scoped, tag = 'scratch operand']
  %s0 = inlined_call_operand.hbm [shape: f32[2,128,128], index: 0, kind: input, shape index: {}]
  %s1 = inlined_call_operand.hbm [shape: f32[128,128], index: 1, kind: input, shape index: {}]
  %s2 = inlined_call_operand.hbm [shape: f32[128,128], index: 2, kind: input, shape index: {}]
  %s3 = inlined_call_operand.vmem [shape: f32[2,1,128], index: 3, kind: input, shape index: {}]
  %s4 = inlined_call_operand.hbm [shape: f32[2,1,128], index: 4, kind: input, shape index: {}]
  %s5 = inlined_call_operand.hbm [shape: bf16[2,128,640], index: 5, kind: input, shape index: {}]
  %s6 = inlined_call_operand.hbm [shape: f32[2,1,640], index: 6, kind: input, shape index: {}]
  %s7 = inlined_call_operand.hbm [shape: bf16[2,128,128], index: 7, kind: input, shape index: {}]
  %s8 = inlined_call_operand.hbm [shape: f32[2,1,128], index: 8, kind: input, shape index: {}]
  %s9 = inlined_call_operand.vmem [shape: f32[2,1,128], index: 9, kind: input, shape index: {}]
  %s10 = inlined_call_operand.hbm [shape: f32[2,1,128], index: 10, kind: input, shape index: {}]
  %s11 = inlined_call_operand.hbm [shape: bf16[2,128,256], index: 11, kind: input, shape index: {}]
  %s12 = inlined_call_operand.vmem [shape: f32[2,1,256], index: 12, kind: input, shape index: {}]
  %s13 = inlined_call_operand.hbm [shape: bf16[2,256,128], index: 13, kind: input, shape index: {}]
  %s14 = inlined_call_operand.vmem [shape: f32[2,1,128], index: 14, kind: input, shape index: {}]
  %s15 = inlined_call_operand.hbm [shape: f32[128,128], index: 15, kind: input, shape index: {}]
  %s16 = inlined_call_operand.vmem [shape: f32[1,128], index: 16, kind: input, shape index: {}]
  %s17 = inlined_call_operand.hbm [shape: f32[2,1,128], index: 17, kind: output, shape index: {}]
  %s18 = sld [smem:[#allocation0]]
  $region157: #{tpu_custom_call.1} parent=0
    _
  %s20 = ssub.s32 1, %s18
  %s21 = scalar_select 0, %s20, %s18
  $region1: #{tpu_custom_call.1} parent=0
    #allocation4 [shape = 'u8[131072]{0}', space=vmem, size = 0x20000, scoped, tag = 'input window, operand 0']
    #allocation5 [shape = 's32[2]{0}', space=sflag, size = 0x8, scoped, tag = 'scoped memory for tpu_custom_call.1']
    #allocation6 [shape = 's32[2]{0}', space=sflag, size = 0x8, scoped, tag = 'scoped memory for tpu_custom_call.1']
    #allocation7 [shape = 'u8[65536]{0}', space=vmem, size = 0x10000, scoped, tag = 'input window, operand 1, single buffered']
    #allocation8 [shape = 's32[1]{0}', space=sflag, size = 0x4, scoped, tag = 'scoped memory for tpu_custom_call.1']
    #allocation9 [shape = 'u8[65536]{0}', space=vmem, size = 0x10000, scoped, tag = 'input window, operand 2, single buffered']
    #allocation10 [shape = 'u8[1024]{0}', space=vmem, size = 0x400, scoped, tag = 'input window, operand 4, single buffered']
    #allocation11 [shape = 's32[1]{0}', space=sflag, size = 0x4, scoped, tag = 'scoped memory for tpu_custom_call.1']
    #allocation12 [shape = 'u8[327680]{0}', space=vmem, size = 0x50000, scoped, tag = 'input window, operand 5, single buffered']
    #allocation13 [shape = 'u8[5120]{0}', space=vmem, size = 0x1400, scoped, tag = 'input window, operand 6, single buffered']
    #allocation14 [shape = 's32[1]{0}', space=sflag, size = 0x4, scoped, tag = 'scoped memory for tpu_custom_call.1']
    #allocation15 [shape = 'u8[65536]{0}', space=vmem, size = 0x10000, scoped, tag = 'input window, operand 7, single buffered']
    #allocation16 [shape = 'u8[1024]{0}', space=vmem, size = 0x400, scoped, tag = 'input window, operand 8, single buffered']
    #allocation17 [shape = 's32[1]{0}', space=sflag, size = 0x4, scoped, tag = 'scoped memory for tpu_custom_call.1']
    #allocation18 [shape = 'u8[1024]{0}', space=vmem, size = 0x400, scoped, tag = 'input window, operand 10, single buffered']
    #allocation19 [shape = 'u8[131072]{0}', space=vmem, size = 0x20000, scoped, tag = 'input window, operand 11, single buffered']
    #allocation20 [shape = 's32[1]{0}', space=sflag, size = 0x4, scoped, tag = 'scoped memory for tpu_custom_call.1']
    #allocation21 [shape = 'u8[131072]{0}', space=vmem, size = 0x20000, scoped, tag = 'input window, operand 13, single buffered']
    #allocation22 [shape = 'u8[65536]{0}', space=vmem, size = 0x10000, scoped, tag = 'input window, operand 15, single buffered']
    #allocation23 [shape = 's32[1]{0}', space=sflag, size = 0x4, scoped, tag = 'scoped memory for tpu_custom_call.1']
    #allocation24 [shape = 'u8[1024]{0}', space=vmem, size = 0x400, scoped, tag = 'output window, operand 0']
    %22 = vsyncpa [#allocation5], 0
    %s23 = scalar_lea.sflag [#allocation5], 1
    %24 = vsyncpa %s23, 0
    %25 = vsyncpa [#allocation8], 0
    %26 = vsyncpa [#allocation11], 0
    %27 = vsyncpa [#allocation14], 0
    %28 = vsyncpa [#allocation17], 0
    %29 = vsyncpa [#allocation20], 0
    %30 = vsyncpa [#allocation23], 0
    %31 = vsyncpa [#allocation6], 0
    %s32 = scalar_lea.sflag [#allocation6], 1
    %33 = vsyncpa %s32, 0
    loop: start=0, step=1, limit=6
    $region2: #{tpu_custom_call.1} parent=1 // loop_pre_header
      _
    $region3: #{tpu_custom_call.1} parent=1 // loop_header
      %s35 = sphi 0, %s39
      %p36 = scmp.ge.s32.totalorder %s35, 6
      %s42 = sphi 0, %s54
      %s43 = sphi 0, %s50
      %s44 = sphi 0, %s42
      %s45 = sphi 0, %s43
      %s46 = sphi 0, %s44
      %s47 = sphi 0, %s45
      %s57 = sphi 0, %s59
      %s60 = sphi 0, %s57
      %s61 = sphi 0, %s60
      %s77 = sphi 0, %s61
      %s81 = sphi 0, %s81
      %s83 = sphi 0, %s81
      %s84 = sphi 0, %s83
      %s98 = sphi 0, %s84
      %s102 = sphi 0, %s102
      %s104 = sphi 0, %s102
      %s105 = sphi 0, %s104
      %s119 = sphi 0, %s105
      %s123 = sphi 0, %s123
      %s125 = sphi 0, %s123
      %s126 = sphi 0, %s125
      %s140 = sphi 0, %s126
      %s144 = sphi 0, %s144
      %s146 = sphi 0, %s144
      %s147 = sphi 0, %s146
      %s161 = sphi 0, %s147
      %s165 = sphi 0, %s165
      %s167 = sphi 0, %s165
      %s168 = sphi 0, %s167
      %s182 = sphi 0, %s168
      %s186 = sphi 0, %s186
      %s188 = sphi 0, %s186
      %s189 = sphi 0, %s188
      %s203 = sphi 0, %s189
      %s207 = sphi 0, %s207
      %s209 = sphi 0, %s207
      %s210 = sphi 0, %s209
      %s224 = sphi 0, %s210
      %s228 = sphi 0, %s228
      %s230 = sphi 0, %s228
      %s231 = sphi 0, %s230
      %s245 = sphi 0, %s231
      %s249 = sphi 0, %s249
      %s251 = sphi 0, %s249
      %s252 = sphi 0, %s251
      %s266 = sphi 0, %s252
      %s270 = sphi 0, %s270
      %s272 = sphi 0, %s270
      %s273 = sphi 0, %s272
      %s287 = sphi 0, %s273
      %s291 = sphi 0, %s291
      %s293 = sphi 0, %s291
      %s294 = sphi 0, %s293
      %s308 = sphi 0, %s294
      %s312 = sphi 0, %s312
      %s314 = sphi 0, %s312
      %s315 = sphi 0, %s314
      %s329 = sphi 0, %s315
      %s333 = sphi 0, %s333
      %s335 = sphi 0, %s333
      %s336 = sphi 0, %s335
      %s350 = sphi 0, %s336
      %s354 = sphi 0, %s354
      %s356 = sphi 0, %s354
      %s357 = sphi 0, %s356
      %s371 = sphi 0, %s357
      %s375 = sphi 0, %s375
      %s377 = sphi 0, %s375
      %s378 = sphi 0, %s377
      %s392 = sphi 0, %s378
      %s396 = sphi 0, %s396
      %s398 = sphi 0, %s396
      %s399 = sphi 0, %s398
      %s413 = sphi 0, %s399
      %s419 = sphi 0, %s421
      %s422 = sphi 0, %s419
      %s423 = sphi 0, %s422
      %s439 = sphi 0, %s423
    $region4: #{tpu_custom_call.1} parent=1 // loop_header_branch
      %38 = sbr.rel (%p36) target = $region8
    $region5: #{tpu_custom_call.1} parent=1 // loop_body
      %s40 = ssub.s32 %s35, 1
      %s41 = ssub.s32 %s35, 2
      %s48 = sadd.s32 1, %s43
      %p49 = scmp.ge.s32.totalorder %s48, 2
      %s50 = scalar_select %p49, 0, %s48
      %s51 = sadd.s32 1, %s42
      %s52 = scalar_select %p49, %s51, %s42
      %p53 = scmp.ge.s32.totalorder %s52, 2
      %s54 = scalar_select %p53, 0, %s52
      %s55 = ssub.s32 %s42, %s54
      %p56 = scmp.eq.s32.totalorder %s55, 0
      %s58 = sadd.s32 %s57, 1
      %s59 = scalar_select %p56, %s57, %s58
      %p62 = pneg %p56
      %p63 = scmp.eq.s32.totalorder %s35, 3
      %p64 = por %p62, %p63
      %p65 = scmp.ne.s32.totalorder %s57, %s60
      %p66 = scmp.eq.s32.totalorder %s35, 0
      %p67 = por %p65, %p66
      %p68 = scmp.ne.s32.totalorder %s57, %s60
      %p69 = scmp.eq.s32.totalorder %s40, 3
      %p70 = por %p68, %p69
      %p71 = scmp.ne.s32.totalorder %s60, %s61
      %p72 = scmp.eq.s32.totalorder %s40, 0
      %p73 = por %p71, %p72
      %p74 = scmp.ne.s32.totalorder %s60, %s61
      %p75 = scmp.eq.s32.totalorder %s41, 3
      %p76 = por %p74, %p75
      %p78 = scmp.ne.s32.totalorder %s61, %s77
      %p79 = scmp.eq.s32.totalorder %s41, 0
      %p80 = por %p78, %p79
      %s82 = sadd.s32 %s81, 1
      %p85 = scmp.eq.s32.totalorder %s35, 3
      %p86 = scmp.ne.s32.totalorder %s81, %s83
      %p87 = scmp.eq.s32.totalorder %s35, 0
      %p88 = por %p86, %p87
      %p89 = scmp.ne.s32.totalorder %s81, %s83
      %p90 = scmp.eq.s32.totalorder %s40, 3
      %p91 = por %p89, %p90
      %p92 = scmp.ne.s32.totalorder %s83, %s84
      %p93 = scmp.eq.s32.totalorder %s40, 0
      %p94 = por %p92, %p93
      %p95 = scmp.ne.s32.totalorder %s83, %s84
      %p96 = scmp.eq.s32.totalorder %s41, 3
      %p97 = por %p95, %p96
      %p99 = scmp.ne.s32.totalorder %s84, %s98
      %p100 = scmp.eq.s32.totalorder %s41, 0
      %p101 = por %p99, %p100
      %s103 = sadd.s32 %s102, 1
      %p106 = scmp.eq.s32.totalorder %s35, 3
      %p107 = scmp.ne.s32.totalorder %s102, %s104
      %p108 = scmp.eq.s32.totalorder %s35, 0
      %p109 = por %p107, %p108
      %p110 = scmp.ne.s32.totalorder %s102, %s104
      %p111 = scmp.eq.s32.totalorder %s40, 3
      %p112 = por %p110, %p111
      %p113 = scmp.ne.s32.totalorder %s104, %s105
      %p114 = scmp.eq.s32.totalorder %s40, 0
      %p115 = por %p113, %p114
      %p116 = scmp.ne.s32.totalorder %s104, %s105
      %p117 = scmp.eq.s32.totalorder %s41, 3
      %p118 = por %p116, %p117
      %p120 = scmp.ne.s32.totalorder %s105, %s119
      %p121 = scmp.eq.s32.totalorder %s41, 0
      %p122 = por %p120, %p121
      %s124 = sadd.s32 %s123, 1
      %p127 = scmp.eq.s32.totalorder %s35, 3
      %p128 = scmp.ne.s32.totalorder %s123, %s125
      %p129 = scmp.eq.s32.totalorder %s35, 0
      %p130 = por %p128, %p129
      %p131 = scmp.ne.s32.totalorder %s123, %s125
      %p132 = scmp.eq.s32.totalorder %s40, 3
      %p133 = por %p131, %p132
      %p134 = scmp.ne.s32.totalorder %s125, %s126
      %p135 = scmp.eq.s32.totalorder %s40, 0
      %p136 = por %p134, %p135
      %p137 = scmp.ne.s32.totalorder %s125, %s126
      %p138 = scmp.eq.s32.totalorder %s41, 3
      %p139 = por %p137, %p138
      %p141 = scmp.ne.s32.totalorder %s126, %s140
      %p142 = scmp.eq.s32.totalorder %s41, 0
      %p143 = por %p141, %p142
      %s145 = sadd.s32 %s144, 1
      %p148 = scmp.eq.s32.totalorder %s35, 3
      %p149 = scmp.ne.s32.totalorder %s144, %s146
      %p150 = scmp.eq.s32.totalorder %s35, 0
      %p151 = por %p149, %p150
      %p152 = scmp.ne.s32.totalorder %s144, %s146
      %p153 = scmp.eq.s32.totalorder %s40, 3
      %p154 = por %p152, %p153
      %p155 = scmp.ne.s32.totalorder %s146, %s147
      %p156 = scmp.eq.s32.totalorder %s40, 0
      %p157 = por %p155, %p156
      %p158 = scmp.ne.s32.totalorder %s146, %s147
      %p159 = scmp.eq.s32.totalorder %s41, 3
      %p160 = por %p158, %p159
      %p162 = scmp.ne.s32.totalorder %s147, %s161
      %p163 = scmp.eq.s32.totalorder %s41, 0
      %p164 = por %p162, %p163
      %s166 = sadd.s32 %s165, 1
      %p169 = scmp.eq.s32.totalorder %s35, 3
      %p170 = scmp.ne.s32.totalorder %s165, %s167
      %p171 = scmp.eq.s32.totalorder %s35, 0
      %p172 = por %p170, %p171
      %p173 = scmp.ne.s32.totalorder %s165, %s167
      %p174 = scmp.eq.s32.totalorder %s40, 3
      %p175 = por %p173, %p174
      %p176 = scmp.ne.s32.totalorder %s167, %s168
      %p177 = scmp.eq.s32.totalorder %s40, 0
      %p178 = por %p176, %p177
      %p179 = scmp.ne.s32.totalorder %s167, %s168
      %p180 = scmp.eq.s32.totalorder %s41, 3
      %p181 = por %p179, %p180
      %p183 = scmp.ne.s32.totalorder %s168, %s182
      %p184 = scmp.eq.s32.totalorder %s41, 0
      %p185 = por %p183, %p184
      %s187 = sadd.s32 %s186, 1
      %p190 = scmp.eq.s32.totalorder %s35, 3
      %p191 = scmp.ne.s32.totalorder %s186, %s188
      %p192 = scmp.eq.s32.totalorder %s35, 0
      %p193 = por %p191, %p192
      %p194 = scmp.ne.s32.totalorder %s186, %s188
      %p195 = scmp.eq.s32.totalorder %s40, 3
      %p196 = por %p194, %p195
      %p197 = scmp.ne.s32.totalorder %s188, %s189
      %p198 = scmp.eq.s32.totalorder %s40, 0
      %p199 = por %p197, %p198
      %p200 = scmp.ne.s32.totalorder %s188, %s189
      %p201 = scmp.eq.s32.totalorder %s41, 3
      %p202 = por %p200, %p201
      %p204 = scmp.ne.s32.totalorder %s189, %s203
      %p205 = scmp.eq.s32.totalorder %s41, 0
      %p206 = por %p204, %p205
      %s208 = sadd.s32 %s207, 1
      %p211 = scmp.eq.s32.totalorder %s35, 3
      %p212 = scmp.ne.s32.totalorder %s207, %s209
      %p213 = scmp.eq.s32.totalorder %s35, 0
      %p214 = por %p212, %p213
      %p215 = scmp.ne.s32.totalorder %s207, %s209
      %p216 = scmp.eq.s32.totalorder %s40, 3
      %p217 = por %p215, %p216
      %p218 = scmp.ne.s32.totalorder %s209, %s210
      %p219 = scmp.eq.s32.totalorder %s40, 0
      %p220 = por %p218, %p219
      %p221 = scmp.ne.s32.totalorder %s209, %s210
      %p222 = scmp.eq.s32.totalorder %s41, 3
      %p223 = por %p221, %p222
      %p225 = scmp.ne.s32.totalorder %s210, %s224
      %p226 = scmp.eq.s32.totalorder %s41, 0
      %p227 = por %p225, %p226
      %s229 = sadd.s32 %s228, 1
      %p232 = scmp.eq.s32.totalorder %s35, 3
      %p233 = scmp.ne.s32.totalorder %s228, %s230
      %p234 = scmp.eq.s32.totalorder %s35, 0
      %p235 = por %p233, %p234
      %p236 = scmp.ne.s32.totalorder %s228, %s230
      %p237 = scmp.eq.s32.totalorder %s40, 3
      %p238 = por %p236, %p237
      %p239 = scmp.ne.s32.totalorder %s230, %s231
      %p240 = scmp.eq.s32.totalorder %s40, 0
      %p241 = por %p239, %p240
      %p242 = scmp.ne.s32.totalorder %s230, %s231
      %p243 = scmp.eq.s32.totalorder %s41, 3
      %p244 = por %p242, %p243
      %p246 = scmp.ne.s32.totalorder %s231, %s245
      %p247 = scmp.eq.s32.totalorder %s41, 0
      %p248 = por %p246, %p247
      %s250 = sadd.s32 %s249, 1
      %p253 = scmp.eq.s32.totalorder %s35, 3
      %p254 = scmp.ne.s32.totalorder %s249, %s251
      %p255 = scmp.eq.s32.totalorder %s35, 0
      %p256 = por %p254, %p255
      %p257 = scmp.ne.s32.totalorder %s249, %s251
      %p258 = scmp.eq.s32.totalorder %s40, 3
      %p259 = por %p257, %p258
      %p260 = scmp.ne.s32.totalorder %s251, %s252
      %p261 = scmp.eq.s32.totalorder %s40, 0
      %p262 = por %p260, %p261
      %p263 = scmp.ne.s32.totalorder %s251, %s252
      %p264 = scmp.eq.s32.totalorder %s41, 3
      %p265 = por %p263, %p264
      %p267 = scmp.ne.s32.totalorder %s252, %s266
      %p268 = scmp.eq.s32.totalorder %s41, 0
      %p269 = por %p267, %p268
      %s271 = sadd.s32 %s270, 1
      %p274 = scmp.eq.s32.totalorder %s35, 3
      %p275 = scmp.ne.s32.totalorder %s270, %s272
      %p276 = scmp.eq.s32.totalorder %s35, 0
      %p277 = por %p275, %p276
      %p278 = scmp.ne.s32.totalorder %s270, %s272
      %p279 = scmp.eq.s32.totalorder %s40, 3
      %p280 = por %p278, %p279
      %p281 = scmp.ne.s32.totalorder %s272, %s273
      %p282 = scmp.eq.s32.totalorder %s40, 0
      %p283 = por %p281, %p282
      %p284 = scmp.ne.s32.totalorder %s272, %s273
      %p285 = scmp.eq.s32.totalorder %s41, 3
      %p286 = por %p284, %p285
      %p288 = scmp.ne.s32.totalorder %s273, %s287
      %p289 = scmp.eq.s32.totalorder %s41, 0
      %p290 = por %p288, %p289
      %s292 = sadd.s32 %s291, 1
      %p295 = scmp.eq.s32.totalorder %s35, 3
      %p296 = scmp.ne.s32.totalorder %s291, %s293
      %p297 = scmp.eq.s32.totalorder %s35, 0
      %p298 = por %p296, %p297
      %p299 = scmp.ne.s32.totalorder %s291, %s293
      %p300 = scmp.eq.s32.totalorder %s40, 3
      %p301 = por %p299, %p300
      %p302 = scmp.ne.s32.totalorder %s293, %s294
      %p303 = scmp.eq.s32.totalorder %s40, 0
      %p304 = por %p302, %p303
      %p305 = scmp.ne.s32.totalorder %s293, %s294
      %p306 = scmp.eq.s32.totalorder %s41, 3
      %p307 = por %p305, %p306
      %p309 = scmp.ne.s32.totalorder %s294, %s308
      %p310 = scmp.eq.s32.totalorder %s41, 0
      %p311 = por %p309, %p310
      %s313 = sadd.s32 %s312, 1
      %p316 = scmp.eq.s32.totalorder %s35, 3
      %p317 = scmp.ne.s32.totalorder %s312, %s314
      %p318 = scmp.eq.s32.totalorder %s35, 0
      %p319 = por %p317, %p318
      %p320 = scmp.ne.s32.totalorder %s312, %s314
      %p321 = scmp.eq.s32.totalorder %s40, 3
      %p322 = por %p320, %p321
      %p323 = scmp.ne.s32.totalorder %s314, %s315
      %p324 = scmp.eq.s32.totalorder %s40, 0
      %p325 = por %p323, %p324
      %p326 = scmp.ne.s32.totalorder %s314, %s315
      %p327 = scmp.eq.s32.totalorder %s41, 3
      %p328 = por %p326, %p327
      %p330 = scmp.ne.s32.totalorder %s315, %s329
      %p331 = scmp.eq.s32.totalorder %s41, 0
      %p332 = por %p330, %p331
      %s334 = sadd.s32 %s333, 1
      %p337 = scmp.eq.s32.totalorder %s35, 3
      %p338 = scmp.ne.s32.totalorder %s333, %s335
      %p339 = scmp.eq.s32.totalorder %s35, 0
      %p340 = por %p338, %p339
      %p341 = scmp.ne.s32.totalorder %s333, %s335
      %p342 = scmp.eq.s32.totalorder %s40, 3
      %p343 = por %p341, %p342
      %p344 = scmp.ne.s32.totalorder %s335, %s336
      %p345 = scmp.eq.s32.totalorder %s40, 0
      %p346 = por %p344, %p345
      %p347 = scmp.ne.s32.totalorder %s335, %s336
      %p348 = scmp.eq.s32.totalorder %s41, 3
      %p349 = por %p347, %p348
      %p351 = scmp.ne.s32.totalorder %s336, %s350
      %p352 = scmp.eq.s32.totalorder %s41, 0
      %p353 = por %p351, %p352
      %s355 = sadd.s32 %s354, 1
      %p358 = scmp.eq.s32.totalorder %s35, 3
      %p359 = scmp.ne.s32.totalorder %s354, %s356
      %p360 = scmp.eq.s32.totalorder %s35, 0
      %p361 = por %p359, %p360
      %p362 = scmp.ne.s32.totalorder %s354, %s356
      %p363 = scmp.eq.s32.totalorder %s40, 3
      %p364 = por %p362, %p363
      %p365 = scmp.ne.s32.totalorder %s356, %s357
      %p366 = scmp.eq.s32.totalorder %s40, 0
      %p367 = por %p365, %p366
      %p368 = scmp.ne.s32.totalorder %s356, %s357
      %p369 = scmp.eq.s32.totalorder %s41, 3
      %p370 = por %p368, %p369
      %p372 = scmp.ne.s32.totalorder %s357, %s371
      %p373 = scmp.eq.s32.totalorder %s41, 0
      %p374 = por %p372, %p373
      %s376 = sadd.s32 %s375, 1
      %p379 = scmp.eq.s32.totalorder %s35, 3
      %p380 = scmp.ne.s32.totalorder %s375, %s377
      %p381 = scmp.eq.s32.totalorder %s35, 0
      %p382 = por %p380, %p381
      %p383 = scmp.ne.s32.totalorder %s375, %s377
      %p384 = scmp.eq.s32.totalorder %s40, 3
      %p385 = por %p383, %p384
      %p386 = scmp.ne.s32.totalorder %s377, %s378
      %p387 = scmp.eq.s32.totalorder %s40, 0
      %p388 = por %p386, %p387
      %p389 = scmp.ne.s32.totalorder %s377, %s378
      %p390 = scmp.eq.s32.totalorder %s41, 3
      %p391 = por %p389, %p390
      %p393 = scmp.ne.s32.totalorder %s378, %s392
      %p394 = scmp.eq.s32.totalorder %s41, 0
      %p395 = por %p393, %p394
      %s397 = sadd.s32 %s396, 1
      %p400 = scmp.eq.s32.totalorder %s35, 3
      %p401 = scmp.ne.s32.totalorder %s396, %s398
      %p402 = scmp.eq.s32.totalorder %s35, 0
      %p403 = por %p401, %p402
      %p404 = scmp.ne.s32.totalorder %s396, %s398
      %p405 = scmp.eq.s32.totalorder %s40, 3
      %p406 = por %p404, %p405
      %p407 = scmp.ne.s32.totalorder %s398, %s399
      %p408 = scmp.eq.s32.totalorder %s40, 0
      %p409 = por %p407, %p408
      %p410 = scmp.ne.s32.totalorder %s398, %s399
      %p411 = scmp.eq.s32.totalorder %s41, 3
      %p412 = por %p410, %p411
      %p414 = scmp.ne.s32.totalorder %s399, %s413
      %p415 = scmp.eq.s32.totalorder %s41, 0
      %p416 = por %p414, %p415
      %s417 = ssub.s32 %s42, %s54
      %p418 = scmp.eq.s32.totalorder %s417, 0
      %s420 = sadd.s32 %s419, 1
      %s421 = scalar_select %p418, %s419, %s420
      %p424 = pneg %p418
      %p425 = scmp.eq.s32.totalorder %s35, 3
      %p426 = por %p424, %p425
      %p427 = scmp.ne.s32.totalorder %s419, %s422
      %p428 = scmp.eq.s32.totalorder %s35, 0
      %p429 = por %p427, %p428
      %p430 = scmp.ne.s32.totalorder %s419, %s422
      %p431 = scmp.eq.s32.totalorder %s40, 3
      %p432 = por %p430, %p431
      %p433 = scmp.ne.s32.totalorder %s422, %s423
      %p434 = scmp.eq.s32.totalorder %s40, 0
      %p435 = por %p433, %p434
      %p436 = scmp.ne.s32.totalorder %s422, %s423
      %p437 = scmp.eq.s32.totalorder %s41, 3
      %p438 = por %p436, %p437
      %p440 = scmp.ne.s32.totalorder %s423, %s439
      %p441 = scmp.eq.s32.totalorder %s41, 0
      %p442 = por %p440, %p441
      %p443 = scmp.le.s32.totalorder 1, %s35
      %p444 = scmp.lt.s32.totalorder %s35, 5
      %p445 = pnand %p443, %p444
      %p446 = pneg %p445
      // Predicated region
      $region9: #{tpu_custom_call.1} parent=5 // pred_check
        _
      $region10: #{tpu_custom_call.1} parent=5 // pred_check_branch
        %448 = sbr.rel (%p445) target = $region12
      $region11: #{tpu_custom_call.1} parent=5 // pred_region
        %s449 = ssub.s32 %s35, 1
        // Predicated region
        $region13: #{tpu_custom_call.1} parent=11 // pred_check
          %p450 = pneg %p94
        $region14: #{tpu_custom_call.1} parent=11 // pred_check_branch
          %452 = sbr.rel (%p450) target = $region16
        $region15: #{tpu_custom_call.1} parent=11 // pred_region
          %454 = vsyncadd [#allocation8], 0
          %s455 = sshll.u32 %s1, 4
          %s456 = int_to_ptr.hbm [resolvable:$true] %s455
          %s457 = sshll.u32 [#allocation7], 4
          %s458 = int_to_ptr.vmem [resolvable:$true] %s457
          %463 = dma.hbm_to_vmem [thread:$0]  %s456, 2048, %s458, [#allocation8], 128, 128, 8
        $region16: #{tpu_custom_call.1} parent=11 // pred_fallthru
          _
        // Predicated region
        $region17: #{tpu_custom_call.1} parent=11 // pred_check
          %p464 = pneg %p115
        $region18: #{tpu_custom_call.1} parent=11 // pred_check_branch
          %466 = sbr.rel (%p464) target = $region20
        $region19: #{tpu_custom_call.1} parent=11 // pred_region
          %468 = vsyncadd [#allocation8], 0
          %s469 = sshll.u32 %s2, 4
          %s470 = int_to_ptr.hbm [resolvable:$true] %s469
          %s471 = sshll.u32 [#allocation9], 4
          %s472 = int_to_ptr.vmem [resolvable:$true] %s471
          %477 = dma.hbm_to_vmem [thread:$0]  %s470, 2048, %s472, [#allocation8], 128, 128, 8
        $region20: #{tpu_custom_call.1} parent=11 // pred_fallthru
          _
        // Predicated region
        $region21: #{tpu_custom_call.1} parent=11 // pred_check
          %p478 = pneg %p136
        $region22: #{tpu_custom_call.1} parent=11 // pred_check_branch
          %480 = sbr.rel (%p478) target = $region24
        $region23: #{tpu_custom_call.1} parent=11 // pred_region
          _
        $region24: #{tpu_custom_call.1} parent=11 // pred_fallthru
          _
        // Predicated region
        $region25: #{tpu_custom_call.1} parent=11 // pred_check
          %p481 = pneg %p157
        $region26: #{tpu_custom_call.1} parent=11 // pred_check_branch
          %483 = sbr.rel (%p481) target = $region28
        $region27: #{tpu_custom_call.1} parent=11 // pred_region
          %485 = vsyncadd [#allocation11], 0
          %s486 = sshll.u32 %s4, 4
          %s487 = int_to_ptr.hbm [resolvable:$true] %s486
          %s488 = sshll.u32 [#allocation10], 4
          %s489 = int_to_ptr.vmem [resolvable:$true] %s488
          %494 = dma.hbm_to_vmem [thread:$0]  %s487, 32, %s489, [#allocation11], 16, 16, 1
        $region28: #{tpu_custom_call.1} parent=11 // pred_fallthru
          _
        // Predicated region
        $region29: #{tpu_custom_call.1} parent=11 // pred_check
          %p495 = pneg %p178
        $region30: #{tpu_custom_call.1} parent=11 // pred_check_branch
          %497 = sbr.rel (%p495) target = $region32
        $region31: #{tpu_custom_call.1} parent=11 // pred_region
          %499 = vsyncadd [#allocation11], 0
          %s500 = sshll.u32 %s5, 4
          %s501 = int_to_ptr.hbm [resolvable:$true] %s500
          %s502 = sshll.u32 [#allocation12], 4
          %s503 = int_to_ptr.vmem [resolvable:$true] %s502
          %508 = dma.hbm_to_vmem [thread:$0]  %s501, 10240, %s503, [#allocation11], 320, 320, 20
        $region32: #{tpu_custom_call.1} parent=11 // pred_fallthru
          _
        // Predicated region
        $region33: #{tpu_custom_call.1} parent=11 // pred_check
          %p509 = pneg %p199
        $region34: #{tpu_custom_call.1} parent=11 // pred_check_branch
          %511 = sbr.rel (%p509) target = $region36
        $region35: #{tpu_custom_call.1} parent=11 // pred_region
          %513 = vsyncadd [#allocation14], 0
          %s514 = sshll.u32 %s6, 4
          %s515 = int_to_ptr.hbm [resolvable:$true] %s514
          %s516 = sshll.u32 [#allocation13], 4
          %s517 = int_to_ptr.vmem [resolvable:$true] %s516
          %522 = dma.hbm_to_vmem [thread:$0]  %s515, 160, %s517, [#allocation14], 80, 80, 5
        $region36: #{tpu_custom_call.1} parent=11 // pred_fallthru
          _
        // Predicated region
        $region37: #{tpu_custom_call.1} parent=11 // pred_check
          %p523 = pneg %p220
        $region38: #{tpu_custom_call.1} parent=11 // pred_check_branch
          %525 = sbr.rel (%p523) target = $region40
        $region39: #{tpu_custom_call.1} parent=11 // pred_region
          %527 = vsyncadd [#allocation14], 0
          %s528 = sshll.u32 %s7, 4
          %s529 = int_to_ptr.hbm [resolvable:$true] %s528
          %s530 = sshll.u32 [#allocation15], 4
          %s531 = int_to_ptr.vmem [resolvable:$true] %s530
          %536 = dma.hbm_to_vmem [thread:$0]  %s529, 2048, %s531, [#allocation14], 64, 64, 4
        $region40: #{tpu_custom_call.1} parent=11 // pred_fallthru
          _
        // Predicated region
        $region41: #{tpu_custom_call.1} parent=11 // pred_check
          %p537 = pneg %p241
        $region42: #{tpu_custom_call.1} parent=11 // pred_check_branch
          %539 = sbr.rel (%p537) target = $region44
        $region43: #{tpu_custom_call.1} parent=11 // pred_region
          %541 = vsyncadd [#allocation17], 0
          %s542 = sshll.u32 %s8, 4
          %s543 = int_to_ptr.hbm [resolvable:$true] %s542
          %s544 = sshll.u32 [#allocation16], 4
          %s545 = int_to_ptr.vmem [resolvable:$true] %s544
          %550 = dma.hbm_to_vmem [thread:$0]  %s543, 32, %s545, [#allocation17], 16, 16, 1
        $region44: #{tpu_custom_call.1} parent=11 // pred_fallthru
          _
        // Predicated region
        $region45: #{tpu_custom_call.1} parent=11 // pred_check
          %p551 = pneg %p262
        $region46: #{tpu_custom_call.1} parent=11 // pred_check_branch
          %553 = sbr.rel (%p551) target = $region48
        $region47: #{tpu_custom_call.1} parent=11 // pred_region
          _
        $region48: #{tpu_custom_call.1} parent=11 // pred_fallthru
          _
        // Predicated region
        $region49: #{tpu_custom_call.1} parent=11 // pred_check
          %p554 = pneg %p283
        $region50: #{tpu_custom_call.1} parent=11 // pred_check_branch
          %556 = sbr.rel (%p554) target = $region52
        $region51: #{tpu_custom_call.1} parent=11 // pred_region
          %558 = vsyncadd [#allocation17], 0
          %s559 = sshll.u32 %s10, 4
          %s560 = int_to_ptr.hbm [resolvable:$true] %s559
          %s561 = sshll.u32 [#allocation18], 4
          %s562 = int_to_ptr.vmem [resolvable:$true] %s561
          %567 = dma.hbm_to_vmem [thread:$0]  %s560, 32, %s562, [#allocation17], 16, 16, 1
        $region52: #{tpu_custom_call.1} parent=11 // pred_fallthru
          _
        // Predicated region
        $region53: #{tpu_custom_call.1} parent=11 // pred_check
          %p568 = pneg %p304
        $region54: #{tpu_custom_call.1} parent=11 // pred_check_branch
          %570 = sbr.rel (%p568) target = $region56
        $region55: #{tpu_custom_call.1} parent=11 // pred_region
          %572 = vsyncadd [#allocation20], 0
          %s573 = sshll.u32 %s11, 4
          %s574 = int_to_ptr.hbm [resolvable:$true] %s573
          %s575 = sshll.u32 [#allocation19], 4
          %s576 = int_to_ptr.vmem [resolvable:$true] %s575
          %581 = dma.hbm_to_vmem [thread:$0]  %s574, 4096, %s576, [#allocation20], 128, 128, 8
        $region56: #{tpu_custom_call.1} parent=11 // pred_fallthru
          _
        // Predicated region
        $region57: #{tpu_custom_call.1} parent=11 // pred_check
          %p582 = pneg %p325
        $region58: #{tpu_custom_call.1} parent=11 // pred_check_branch
          %584 = sbr.rel (%p582) target = $region60
        $region59: #{tpu_custom_call.1} parent=11 // pred_region
          _
        $region60: #{tpu_custom_call.1} parent=11 // pred_fallthru
          _
        // Predicated region
        $region61: #{tpu_custom_call.1} parent=11 // pred_check
          %p585 = pneg %p346
        $region62: #{tpu_custom_call.1} parent=11 // pred_check_branch
          %587 = sbr.rel (%p585) target = $region64
        $region63: #{tpu_custom_call.1} parent=11 // pred_region
          %589 = vsyncadd [#allocation20], 0
          %s590 = sshll.u32 %s13, 4
          %s591 = int_to_ptr.hbm [resolvable:$true] %s590
          %s592 = sshll.u32 [#allocation21], 4
          %s593 = int_to_ptr.vmem [resolvable:$true] %s592
          %598 = dma.hbm_to_vmem [thread:$0]  %s591, 4096, %s593, [#allocation20], 64, 64, 4
        $region64: #{tpu_custom_call.1} parent=11 // pred_fallthru
          _
        // Predicated region
        $region65: #{tpu_custom_call.1} parent=11 // pred_check
          %p599 = pneg %p367
        $region66: #{tpu_custom_call.1} parent=11 // pred_check_branch
          %601 = sbr.rel (%p599) target = $region68
        $region67: #{tpu_custom_call.1} parent=11 // pred_region
          _
        $region68: #{tpu_custom_call.1} parent=11 // pred_fallthru
          _
        // Predicated region
        $region69: #{tpu_custom_call.1} parent=11 // pred_check
          %p602 = pneg %p388
        $region70: #{tpu_custom_call.1} parent=11 // pred_check_branch
          %604 = sbr.rel (%p602) target = $region72
        $region71: #{tpu_custom_call.1} parent=11 // pred_region
          %606 = vsyncadd [#allocation23], 0
          %s607 = sshll.u32 %s15, 4
          %s608 = int_to_ptr.hbm [resolvable:$true] %s607
          %s609 = sshll.u32 [#allocation22], 4
          %s610 = int_to_ptr.vmem [resolvable:$true] %s609
          %615 = dma.hbm_to_vmem [thread:$0]  %s608, 2048, %s610, [#allocation23], 128, 128, 8
        $region72: #{tpu_custom_call.1} parent=11 // pred_fallthru
          _
        // Predicated region
        $region73: #{tpu_custom_call.1} parent=11 // pred_check
          %p616 = pneg %p409
        $region74: #{tpu_custom_call.1} parent=11 // pred_check_branch
          %618 = sbr.rel (%p616) target = $region76
        $region75: #{tpu_custom_call.1} parent=11 // pred_region
          _
        $region76: #{tpu_custom_call.1} parent=11 // pred_fallthru
          _
      $region12: #{tpu_custom_call.1} parent=5 // pred_fallthru
        _
      %p619 = scmp.lt.s32.totalorder %s35, 4
      // Predicated region
      $region77: #{tpu_custom_call.1} parent=5 // pred_check
        %p620 = pneg %p619
      $region78: #{tpu_custom_call.1} parent=5 // pred_check_branch
        %622 = sbr.rel (%p620) target = $region80
      $region79: #{tpu_custom_call.1} parent=5 // pred_region
        // Predicated region
        $region81: #{tpu_custom_call.1} parent=79 // pred_check
          %p623 = pneg %p67
        $region82: #{tpu_custom_call.1} parent=79 // pred_check_branch
          %625 = sbr.rel (%p623) target = $region84
        $region83: #{tpu_custom_call.1} parent=79 // pred_region
          %s626 = sand.u32 %s57, 1
          %s627 = scalar_lea.sflag [#allocation5], %s626
          %s628 = sand.u32 %s57, 1
          %s629 = smul.addr %s628, 128
          %s630 = scalar_lea.vmem [#allocation4], %s629
          %632 = vsyncadd %s627, 0
          %s633 = smul.addr %s42, 16
          %s634 = smul.addr %s633, 8
          %s635 = scalar_lea.hbm %s0, %s634
          %s636 = sshll.u32 %s635, 4
          %s637 = int_to_ptr.hbm [resolvable:$true] %s636
          %s638 = sshll.u32 %s630, 4
          %s639 = int_to_ptr.vmem [resolvable:$true] %s638
          %644 = dma.hbm_to_vmem [thread:$0]  %s637, 2048, %s639, %s627, 128, 128, 8
        $region84: #{tpu_custom_call.1} parent=79 // pred_fallthru
          _
      $region80: #{tpu_custom_call.1} parent=5 // pred_fallthru
        _
      %p645 = scmp.le.s32.totalorder 1, %s35
      %p646 = scmp.lt.s32.totalorder %s35, 5
      %p647 = pnand %p645, %p646
      %p648 = pneg %p647
      // Predicated region
      $region85: #{tpu_custom_call.1} parent=5 // pred_check
        _
      $region86: #{tpu_custom_call.1} parent=5 // pred_check_branch
        %650 = sbr.rel (%p647) target = $region88
      $region87: #{tpu_custom_call.1} parent=5 // pred_region
        %s651 = ssub.s32 %s35, 1
        %s652 = sand.u32 %s60, 1
        %s653 = scalar_lea.sflag [#allocation5], %s652
        %s654 = sand.u32 %s60, 1
        %s655 = smul.addr %s654, 128
        %s656 = scalar_lea.vmem [#allocation4], %s655
        // Predicated region
        $region89: #{tpu_custom_call.1} parent=87 // pred_check
          %p657 = pneg %p73
        $region90: #{tpu_custom_call.1} parent=87 // pred_check_branch
          %659 = sbr.rel (%p657) target = $region92
        $region91: #{tpu_custom_call.1} parent=87 // pred_region
          %661 = dma.done %s653, 2048
        $region92: #{tpu_custom_call.1} parent=87 // pred_fallthru
          _
        // Predicated region
        $region93: #{tpu_custom_call.1} parent=87 // pred_check
          %p662 = pneg %p94
        $region94: #{tpu_custom_call.1} parent=87 // pred_check_branch
          %664 = sbr.rel (%p662) target = $region96
        $region95: #{tpu_custom_call.1} parent=87 // pred_region
          %666 = dma.done [#allocation8], 2048
        $region96: #{tpu_custom_call.1} parent=87 // pred_fallthru
          _
        // Predicated region
        $region97: #{tpu_custom_call.1} parent=87 // pred_check
          %p667 = pneg %p115
        $region98: #{tpu_custom_call.1} parent=87 // pred_check_branch
          %669 = sbr.rel (%p667) target = $region100
        $region99: #{tpu_custom_call.1} parent=87 // pred_region
          %671 = dma.done [#allocation8], 2048
        $region100: #{tpu_custom_call.1} parent=87 // pred_fallthru
          _
        // Predicated region
        $region101: #{tpu_custom_call.1} parent=87 // pred_check
          %p672 = pneg %p157
        $region102: #{tpu_custom_call.1} parent=87 // pred_check_branch
          %674 = sbr.rel (%p672) target = $region104
        $region103: #{tpu_custom_call.1} parent=87 // pred_region
          %676 = dma.done [#allocation11], 32
        $region104: #{tpu_custom_call.1} parent=87 // pred_fallthru
          _
        // Predicated region
        $region105: #{tpu_custom_call.1} parent=87 // pred_check
          %p677 = pneg %p178
        $region106: #{tpu_custom_call.1} parent=87 // pred_check_branch
          %679 = sbr.rel (%p677) target = $region108
        $region107: #{tpu_custom_call.1} parent=87 // pred_region
          %681 = dma.done [#allocation11], 10240
        $region108: #{tpu_custom_call.1} parent=87 // pred_fallthru
          _
        // Predicated region
        $region109: #{tpu_custom_call.1} parent=87 // pred_check
          %p682 = pneg %p199
        $region110: #{tpu_custom_call.1} parent=87 // pred_check_branch
          %684 = sbr.rel (%p682) target = $region112
        $region111: #{tpu_custom_call.1} parent=87 // pred_region
          %686 = dma.done [#allocation14], 160
        $region112: #{tpu_custom_call.1} parent=87 // pred_fallthru
          _
        // Predicated region
        $region113: #{tpu_custom_call.1} parent=87 // pred_check
          %p687 = pneg %p220
        $region114: #{tpu_custom_call.1} parent=87 // pred_check_branch
          %689 = sbr.rel (%p687) target = $region116
        $region115: #{tpu_custom_call.1} parent=87 // pred_region
          %691 = dma.done [#allocation14], 2048
        $region116: #{tpu_custom_call.1} parent=87 // pred_fallthru
          _
        // Predicated region
        $region117: #{tpu_custom_call.1} parent=87 // pred_check
          %p692 = pneg %p241
        $region118: #{tpu_custom_call.1} parent=87 // pred_check_branch
          %694 = sbr.rel (%p692) target = $region120
        $region119: #{tpu_custom_call.1} parent=87 // pred_region
          %696 = dma.done [#allocation17], 32
        $region120: #{tpu_custom_call.1} parent=87 // pred_fallthru
          _
        // Predicated region
        $region121: #{tpu_custom_call.1} parent=87 // pred_check
          %p697 = pneg %p283
        $region122: #{tpu_custom_call.1} parent=87 // pred_check_branch
          %699 = sbr.rel (%p697) target = $region124
        $region123: #{tpu_custom_call.1} parent=87 // pred_region
          %701 = dma.done [#allocation17], 32
        $region124: #{tpu_custom_call.1} parent=87 // pred_fallthru
          _
        // Predicated region
        $region125: #{tpu_custom_call.1} parent=87 // pred_check
          %p702 = pneg %p304
        $region126: #{tpu_custom_call.1} parent=87 // pred_check_branch
          %704 = sbr.rel (%p702) target = $region128
        $region127: #{tpu_custom_call.1} parent=87 // pred_region
          %706 = dma.done [#allocation20], 4096
        $region128: #{tpu_custom_call.1} parent=87 // pred_fallthru
          _
        // Predicated region
        $region129: #{tpu_custom_call.1} parent=87 // pred_check
          %p707 = pneg %p346
        $region130: #{tpu_custom_call.1} parent=87 // pred_check_branch
          %709 = sbr.rel (%p707) target = $region132
        $region131: #{tpu_custom_call.1} parent=87 // pred_region
          %711 = dma.done [#allocation20], 4096
        $region132: #{tpu_custom_call.1} parent=87 // pred_fallthru
          _
        // Predicated region
        $region133: #{tpu_custom_call.1} parent=87 // pred_check
          %p712 = pneg %p388
        $region134: #{tpu_custom_call.1} parent=87 // pred_check_branch
          %714 = sbr.rel (%p712) target = $region136
        $region135: #{tpu_custom_call.1} parent=87 // pred_region
          %716 = dma.done [#allocation23], 2048
        $region136: #{tpu_custom_call.1} parent=87 // pred_fallthru
          _
        %s717 = sand.u32 %s60, 1
        %s718 = scalar_lea.sflag [#allocation5], %s717
        %s719 = sand.u32 %s60, 1
        %s720 = smul.addr %s719, 128
        %s721 = scalar_lea.vmem [#allocation4], %s720
        %p722 = pneg %p73
        %p723 = pneg %p70
        %p724 = pneg %p94
        %p725 = pneg %p91
        %p726 = pneg %p115
        %p727 = pneg %p112
        %p728 = pneg %p136
        %p729 = pneg %p133
        %p730 = pneg %p157
        %p731 = pneg %p154
        %p732 = pneg %p178
        %p733 = pneg %p175
        %p734 = pneg %p199
        %p735 = pneg %p196
        %p736 = pneg %p220
        %p737 = pneg %p217
        %p738 = pneg %p241
        %p739 = pneg %p238
        %p740 = pneg %p262
        %p741 = pneg %p259
        %p742 = pneg %p283
        %p743 = pneg %p280
        %p744 = pneg %p304
        %p745 = pneg %p301
        %p746 = pneg %p325
        %p747 = pneg %p322
        %p748 = pneg %p346
        %p749 = pneg %p343
        %p750 = pneg %p367
        %p751 = pneg %p364
        %p752 = pneg %p388
        %p753 = pneg %p385
        %p754 = pneg %p409
        %p755 = pneg %p406
        %p756 = pneg %p435
        %p757 = pneg %p432
        %s758 = sand.u32 %s422, 1
        %s759 = scalar_lea.sflag [#allocation6], %s758
        %s760 = sand.u32 %s422, 1
        %s761 = scalar_lea.vmem [#allocation24], %s760
        %p762 = scmp.eq.s32.totalorder %s45, 0
        // Predicated region
        $region137: #{tpu_custom_call.1} parent=87 // pred_check
          %p763 = pneg %p762
        $region138: #{tpu_custom_call.1} parent=87 // pred_check_branch
          %765 = sbr.rel (%p763) target = $region140
        $region139: #{tpu_custom_call.1} parent=87 // pred_region
          %v766 = vld [vmem:[%s656] sm:$0xff]
          %v767 = vld [vmem:[%s656 + $0x8] sm:$0xff]
          %v768 = vld [vmem:[%s656 + $0x10] sm:$0xff]
          %v769 = vld [vmem:[%s656 + $0x18] sm:$0xff]
          %v770 = vld [vmem:[%s656 + $0x20] sm:$0xff]
          %v771 = vld [vmem:[%s656 + $0x28] sm:$0xff]
          %v772 = vld [vmem:[%s656 + $0x30] sm:$0xff]
          %v773 = vld [vmem:[%s656 + $0x38] sm:$0xff]
          %v774 = vld [vmem:[%s656 + $0x40] sm:$0xff]
          %v775 = vld [vmem:[%s656 + $0x48] sm:$0xff]
          %v776 = vld [vmem:[%s656 + $0x50] sm:$0xff]
          %v777 = vld [vmem:[%s656 + $0x58] sm:$0xff]
          %v778 = vld [vmem:[%s656 + $0x60] sm:$0xff]
          %v779 = vld [vmem:[%s656 + $0x68] sm:$0xff]
          %v780 = vld [vmem:[%s656 + $0x70] sm:$0xff]
          %v781 = vld [vmem:[%s656 + $0x78] sm:$0xff]
          %782 = vst [vmem:[#allocation2] sm:$0xff] %v766
          %783 = vst [vmem:[#allocation2 + $0x8] sm:$0xff] %v767
          %784 = vst [vmem:[#allocation2 + $0x10] sm:$0xff] %v768
          %785 = vst [vmem:[#allocation2 + $0x18] sm:$0xff] %v769
          %786 = vst [vmem:[#allocation2 + $0x20] sm:$0xff] %v770
          %787 = vst [vmem:[#allocation2 + $0x28] sm:$0xff] %v771
          %788 = vst [vmem:[#allocation2 + $0x30] sm:$0xff] %v772
          %789 = vst [vmem:[#allocation2 + $0x38] sm:$0xff] %v773
          %790 = vst [vmem:[#allocation2 + $0x40] sm:$0xff] %v774
          %791 = vst [vmem:[#allocation2 + $0x48] sm:$0xff] %v775
          %792 = vst [vmem:[#allocation2 + $0x50] sm:$0xff] %v776
          %793 = vst [vmem:[#allocation2 + $0x58] sm:$0xff] %v777
          %794 = vst [vmem:[#allocation2 + $0x60] sm:$0xff] %v778
          %795 = vst [vmem:[#allocation2 + $0x68] sm:$0xff] %v779
          %796 = vst [vmem:[#allocation2 + $0x70] sm:$0xff] %v780
          %797 = vst [vmem:[#allocation2 + $0x78] sm:$0xff] %v781
        $region140: #{tpu_custom_call.1} parent=87 // pred_fallthru
          _
        %v798 = vld [vmem:[#allocation2] sm:$0xff]
        %v799 = vld [vmem:[#allocation2 + $0x8] sm:$0xff]
        %v800 = vld [vmem:[#allocation2 + $0x10] sm:$0xff]
        %v801 = vld [vmem:[#allocation2 + $0x18] sm:$0xff]
        %v802 = vld [vmem:[#allocation2 + $0x20] sm:$0xff]
        %v803 = vld [vmem:[#allocation2 + $0x28] sm:$0xff]
        %v804 = vld [vmem:[#allocation2 + $0x30] sm:$0xff]
        %v805 = vld [vmem:[#allocation2 + $0x38] sm:$0xff]
        %v806 = vld [vmem:[#allocation2 + $0x40] sm:$0xff]
        %v807 = vld [vmem:[#allocation2 + $0x48] sm:$0xff]
        %v808 = vld [vmem:[#allocation2 + $0x50] sm:$0xff]
        %v809 = vld [vmem:[#allocation2 + $0x58] sm:$0xff]
        %v810 = vld [vmem:[#allocation2 + $0x60] sm:$0xff]
        %v811 = vld [vmem:[#allocation2 + $0x68] sm:$0xff]
        %v812 = vld [vmem:[#allocation2 + $0x70] sm:$0xff]
        %v813 = vld [vmem:[#allocation2 + $0x78] sm:$0xff]
        %v814 = vld [vmem:[#allocation7] sm:$0xff]
        %v815 = vld [vmem:[#allocation7 + $0x8] sm:$0xff]
        %v816 = vld [vmem:[#allocation7 + $0x10] sm:$0xff]
        %v817 = vld [vmem:[#allocation7 + $0x18] sm:$0xff]
        %v818 = vld [vmem:[#allocation7 + $0x20] sm:$0xff]
        %v819 = vld [vmem:[#allocation7 + $0x28] sm:$0xff]
        %v820 = vld [vmem:[#allocation7 + $0x30] sm:$0xff]
        %v821 = vld [vmem:[#allocation7 + $0x38] sm:$0xff]
        %v822 = vld [vmem:[#allocation7 + $0x40] sm:$0xff]
        %v823 = vld [vmem:[#allocation7 + $0x48] sm:$0xff]
        %v824 = vld [vmem:[#allocation7 + $0x50] sm:$0xff]
        %v825 = vld [vmem:[#allocation7 + $0x58] sm:$0xff]
        %v826 = vld [vmem:[#allocation7 + $0x60] sm:$0xff]
        %v827 = vld [vmem:[#allocation7 + $0x68] sm:$0xff]
        %v828 = vld [vmem:[#allocation7 + $0x70] sm:$0xff]
        %v829 = vld [vmem:[#allocation7 + $0x78] sm:$0xff]
        %v830 = vld [vmem:[#allocation9] sm:$0xff]
        %v831 = vld [vmem:[#allocation9 + $0x8] sm:$0xff]
        %v832 = vld [vmem:[#allocation9 + $0x10] sm:$0xff]
        %v833 = vld [vmem:[#allocation9 + $0x18] sm:$0xff]
        %v834 = vld [vmem:[#allocation9 + $0x20] sm:$0xff]
        %v835 = vld [vmem:[#allocation9 + $0x28] sm:$0xff]
        %v836 = vld [vmem:[#allocation9 + $0x30] sm:$0xff]
        %v837 = vld [vmem:[#allocation9 + $0x38] sm:$0xff]
        %v838 = vld [vmem:[#allocation9 + $0x40] sm:$0xff]
        %v839 = vld [vmem:[#allocation9 + $0x48] sm:$0xff]
        %v840 = vld [vmem:[#allocation9 + $0x50] sm:$0xff]
        %v841 = vld [vmem:[#allocation9 + $0x58] sm:$0xff]
        %v842 = vld [vmem:[#allocation9 + $0x60] sm:$0xff]
        %v843 = vld [vmem:[#allocation9 + $0x68] sm:$0xff]
        %v844 = vld [vmem:[#allocation9 + $0x70] sm:$0xff]
        %v845 = vld [vmem:[#allocation9 + $0x78] sm:$0xff]
        %s846 = scalar_lea.vmem %s3, %s45
        %v847 = vld [vmem:[%s846] sm:$0x1]
        %s848 = scalar_lea.vmem [#allocation10], %s45
        %v849 = vld [vmem:[%s848] sm:$0x1]
        %850 = vadd.xlane.f32.xlu0 %v798
        %v851 = vpop.xlane.xlu0 %850
        %852 = vadd.xlane.f32.xlu0 %v799
        %v853 = vpop.xlane.xlu0 %852
        %854 = vadd.xlane.f32.xlu0 %v800
        %v855 = vpop.xlane.xlu0 %854
        %856 = vadd.xlane.f32.xlu0 %v801
        %v857 = vpop.xlane.xlu0 %856
        %858 = vadd.xlane.f32.xlu0 %v802
        %v859 = vpop.xlane.xlu0 %858
        %860 = vadd.xlane.f32.xlu0 %v803
        %v861 = vpop.xlane.xlu0 %860
        %862 = vadd.xlane.f32.xlu0 %v804
        %v863 = vpop.xlane.xlu0 %862
        %864 = vadd.xlane.f32.xlu0 %v805
        %v865 = vpop.xlane.xlu0 %864
        %866 = vadd.xlane.f32.xlu0 %v806
        %v867 = vpop.xlane.xlu0 %866
        %868 = vadd.xlane.f32.xlu0 %v807
        %v869 = vpop.xlane.xlu0 %868
        %870 = vadd.xlane.f32.xlu0 %v808
        %v871 = vpop.xlane.xlu0 %870
        %872 = vadd.xlane.f32.xlu0 %v809
        %v873 = vpop.xlane.xlu0 %872
        %874 = vadd.xlane.f32.xlu0 %v810
        %v875 = vpop.xlane.xlu0 %874
        %876 = vadd.xlane.f32.xlu0 %v811
        %v877 = vpop.xlane.xlu0 %876
        %878 = vadd.xlane.f32.xlu0 %v812
        %v879 = vpop.xlane.xlu0 %878
        %880 = vadd.xlane.f32.xlu0 %v813
        %v881 = vpop.xlane.xlu0 %880
        %v882 = vrcp.pop 128.0
        %v883 = vmul.f32 128.0, %v882
        %v884 = vsub.f32 1.0, %v883
        %v885 = vmul.f32 %v882, %v884
        %v886 = vadd.f32 %v882, %v885
        %vm887 = vweird.f32 %v882
        %v888 = vsel %vm887, %v882, %v886
        %v889 = vmul.f32 %v851, %v888
        %v890 = vmul.f32 %v853, %v888
        %v891 = vmul.f32 %v855, %v888
        %v892 = vmul.f32 %v857, %v888
        %v893 = vmul.f32 %v859, %v888
        %v894 = vmul.f32 %v861, %v888
        %v895 = vmul.f32 %v863, %v888
        %v896 = vmul.f32 %v865, %v888
        %v897 = vmul.f32 %v867, %v888
        %v898 = vmul.f32 %v869, %v888
        %v899 = vmul.f32 %v871, %v888
        %v900 = vmul.f32 %v873, %v888
        %v901 = vmul.f32 %v875, %v888
        %v902 = vmul.f32 %v877, %v888
        %v903 = vmul.f32 %v879, %v888
        %v904 = vmul.f32 %v881, %v888
        %v905 = vsub.f32 %v798, %v889
        %v906 = vsub.f32 %v799, %v890
        %v907 = vsub.f32 %v800, %v891
        %v908 = vsub.f32 %v801, %v892
        %v909 = vsub.f32 %v802, %v893
        %v910 = vsub.f32 %v803, %v894
        %v911 = vsub.f32 %v804, %v895
        %v912 = vsub.f32 %v805, %v896
        %v913 = vsub.f32 %v806, %v897
        %v914 = vsub.f32 %v807, %v898
        %v915 = vsub.f32 %v808, %v899
        %v916 = vsub.f32 %v809, %v900
        %v917 = vsub.f32 %v810, %v901
        %v918 = vsub.f32 %v811, %v902
        %v919 = vsub.f32 %v812, %v903
        %v920 = vsub.f32 %v813, %v904
        %v921 = vmul.f32 %v905, %v905
        %v922 = vmul.f32 %v906, %v906
        %v923 = vmul.f32 %v907, %v907
        %v924 = vmul.f32 %v908, %v908
        %v925 = vmul.f32 %v909, %v909
        %v926 = vmul.f32 %v910, %v910
        %v927 = vmul.f32 %v911, %v911
        %v928 = vmul.f32 %v912, %v912
        %v929 = vmul.f32 %v913, %v913
        %v930 = vmul.f32 %v914, %v914
        %v931 = vmul.f32 %v915, %v915
        %v932 = vmul.f32 %v916, %v916
        %v933 = vmul.f32 %v917, %v917
        %v934 = vmul.f32 %v918, %v918
        %v935 = vmul.f32 %v919, %v919
        %v936 = vmul.f32 %v920, %v920
        %937 = vadd.xlane.f32.xlu0 %v921
        %v938 = vpop.xlane.xlu0 %937
        %939 = vadd.xlane.f32.xlu0 %v922
        %v940 = vpop.xlane.xlu0 %939
        %941 = vadd.xlane.f32.xlu0 %v923
        %v942 = vpop.xlane.xlu0 %941
        %943 = vadd.xlane.f32.xlu0 %v924
        %v944 = vpop.xlane.xlu0 %943
        %945 = vadd.xlane.f32.xlu0 %v925
        %v946 = vpop.xlane.xlu0 %945
        %947 = vadd.xlane.f32.xlu0 %v926
        %v948 = vpop.xlane.xlu0 %947
        %949 = vadd.xlane.f32.xlu0 %v927
        %v950 = vpop.xlane.xlu0 %949
        %951 = vadd.xlane.f32.xlu0 %v928
        %v952 = vpop.xlane.xlu0 %951
        %953 = vadd.xlane.f32.xlu0 %v929
        %v954 = vpop.xlane.xlu0 %953
        %955 = vadd.xlane.f32.xlu0 %v930
        %v956 = vpop.xlane.xlu0 %955
        %957 = vadd.xlane.f32.xlu0 %v931
        %v958 = vpop.xlane.xlu0 %957
        %959 = vadd.xlane.f32.xlu0 %v932
        %v960 = vpop.xlane.xlu0 %959
        %961 = vadd.xlane.f32.xlu0 %v933
        %v962 = vpop.xlane.xlu0 %961
        %963 = vadd.xlane.f32.xlu0 %v934
        %v964 = vpop.xlane.xlu0 %963
        %965 = vadd.xlane.f32.xlu0 %v935
        %v966 = vpop.xlane.xlu0 %965
        %967 = vadd.xlane.f32.xlu0 %v936
        %v968 = vpop.xlane.xlu0 %967
        %v969 = vmul.f32 %v938, %v888
        %v970 = vmul.f32 %v940, %v888
        %v971 = vmul.f32 %v942, %v888
        %v972 = vmul.f32 %v944, %v888
        %v973 = vmul.f32 %v946, %v888
        %v974 = vmul.f32 %v948, %v888
        %v975 = vmul.f32 %v950, %v888
        %v976 = vmul.f32 %v952, %v888
        %v977 = vmul.f32 %v954, %v888
        %v978 = vmul.f32 %v956, %v888
        %v979 = vmul.f32 %v958, %v888
        %v980 = vmul.f32 %v960, %v888
        %v981 = vmul.f32 %v962, %v888
        %v982 = vmul.f32 %v964, %v888
        %v983 = vmul.f32 %v966, %v888
        %v984 = vmul.f32 %v968, %v888
        %v985 = vadd.f32 %v969, 1e-05
        %v986 = vadd.f32 %v970, 1e-05
        %v987 = vadd.f32 %v971, 1e-05
        %v988 = vadd.f32 %v972, 1e-05
        %v989 = vadd.f32 %v973, 1e-05
        %v990 = vadd.f32 %v974, 1e-05
        %v991 = vadd.f32 %v975, 1e-05
        %v992 = vadd.f32 %v976, 1e-05
        %v993 = vadd.f32 %v977, 1e-05
        %v994 = vadd.f32 %v978, 1e-05
        %v995 = vadd.f32 %v979, 1e-05
        %v996 = vadd.f32 %v980, 1e-05
        %v997 = vadd.f32 %v981, 1e-05
        %v998 = vadd.f32 %v982, 1e-05
        %v999 = vadd.f32 %v983, 1e-05
        %v1000 = vadd.f32 %v984, 1e-05
        %v1001 = vrsqrt.pop %v985
        %v1002 = vmul.f32 %v1001, %v985
        %v1003 = vmul.f32 %v1002, %v1001
        %v1004 = vmul.f32 0.5, %v1003
        %v1005 = vsub.f32 1.5, %v1004
        %v1006 = vmul.f32 %v1001, %v1005
        %vm1007 = vweird.f32 %v985
        %vm1008 = vweird.f32 %v1001
        %vm1009 = vmor %vm1007, %vm1008
        %v1010 = vsel %vm1009, %v1001, %v1006
        %v1011 = vrsqrt.pop %v986
        %v1012 = vmul.f32 %v1011, %v986
        %v1013 = vmul.f32 %v1012, %v1011
        %v1014 = vmul.f32 0.5, %v1013
        %v1015 = vsub.f32 1.5, %v1014
        %v1016 = vmul.f32 %v1011, %v1015
        %vm1017 = vweird.f32 %v986
        %vm1018 = vweird.f32 %v1011
        %vm1019 = vmor %vm1017, %vm1018
        %v1020 = vsel %vm1019, %v1011, %v1016
        %v1021 = vrsqrt.pop %v987
        %v1022 = vmul.f32 %v1021, %v987
        %v1023 = vmul.f32 %v1022, %v1021
        %v1024 = vmul.f32 0.5, %v1023
        %v1025 = vsub.f32 1.5, %v1024
        %v1026 = vmul.f32 %v1021, %v1025
        %vm1027 = vweird.f32 %v987
        %vm1028 = vweird.f32 %v1021
        %vm1029 = vmor %vm1027, %vm1028
        %v1030 = vsel %vm1029, %v1021, %v1026
        %v1031 = vrsqrt.pop %v988
        %v1032 = vmul.f32 %v1031, %v988
        %v1033 = vmul.f32 %v1032, %v1031
        %v1034 = vmul.f32 0.5, %v1033
        %v1035 = vsub.f32 1.5, %v1034
        %v1036 = vmul.f32 %v1031, %v1035
        %vm1037 = vweird.f32 %v988
        %vm1038 = vweird.f32 %v1031
        %vm1039 = vmor %vm1037, %vm1038
        %v1040 = vsel %vm1039, %v1031, %v1036
        %v1041 = vrsqrt.pop %v989
        %v1042 = vmul.f32 %v1041, %v989
        %v1043 = vmul.f32 %v1042, %v1041
        %v1044 = vmul.f32 0.5, %v1043
        %v1045 = vsub.f32 1.5, %v1044
        %v1046 = vmul.f32 %v1041, %v1045
        %vm1047 = vweird.f32 %v989
        %vm1048 = vweird.f32 %v1041
        %vm1049 = vmor %vm1047, %vm1048
        %v1050 = vsel %vm1049, %v1041, %v1046
        %v1051 = vrsqrt.pop %v990
        %v1052 = vmul.f32 %v1051, %v990
        %v1053 = vmul.f32 %v1052, %v1051
        %v1054 = vmul.f32 0.5, %v1053
        %v1055 = vsub.f32 1.5, %v1054
        %v1056 = vmul.f32 %v1051, %v1055
        %vm1057 = vweird.f32 %v990
        %vm1058 = vweird.f32 %v1051
        %vm1059 = vmor %vm1057, %vm1058
        %v1060 = vsel %vm1059, %v1051, %v1056
        %v1061 = vrsqrt.pop %v991
        %v1062 = vmul.f32 %v1061, %v991
        %v1063 = vmul.f32 %v1062, %v1061
        %v1064 = vmul.f32 0.5, %v1063
        %v1065 = vsub.f32 1.5, %v1064
        %v1066 = vmul.f32 %v1061, %v1065
        %vm1067 = vweird.f32 %v991
        %vm1068 = vweird.f32 %v1061
        %vm1069 = vmor %vm1067, %vm1068
        %v1070 = vsel %vm1069, %v1061, %v1066
        %v1071 = vrsqrt.pop %v992
        %v1072 = vmul.f32 %v1071, %v992
        %v1073 = vmul.f32 %v1072, %v1071
        %v1074 = vmul.f32 0.5, %v1073
        %v1075 = vsub.f32 1.5, %v1074
        %v1076 = vmul.f32 %v1071, %v1075
        %vm1077 = vweird.f32 %v992
        %vm1078 = vweird.f32 %v1071
        %vm1079 = vmor %vm1077, %vm1078
        %v1080 = vsel %vm1079, %v1071, %v1076
        %v1081 = vrsqrt.pop %v993
        %v1082 = vmul.f32 %v1081, %v993
        %v1083 = vmul.f32 %v1082, %v1081
        %v1084 = vmul.f32 0.5, %v1083
        %v1085 = vsub.f32 1.5, %v1084
        %v1086 = vmul.f32 %v1081, %v1085
        %vm1087 = vweird.f32 %v993
        %vm1088 = vweird.f32 %v1081
        %vm1089 = vmor %vm1087, %vm1088
        %v1090 = vsel %vm1089, %v1081, %v1086
        %v1091 = vrsqrt.pop %v994
        %v1092 = vmul.f32 %v1091, %v994
        %v1093 = vmul.f32 %v1092, %v1091
        %v1094 = vmul.f32 0.5, %v1093
        %v1095 = vsub.f32 1.5, %v1094
        %v1096 = vmul.f32 %v1091, %v1095
        %vm1097 = vweird.f32 %v994
        %vm1098 = vweird.f32 %v1091
        %vm1099 = vmor %vm1097, %vm1098
        %v1100 = vsel %vm1099, %v1091, %v1096
        %v1101 = vrsqrt.pop %v995
        %v1102 = vmul.f32 %v1101, %v995
        %v1103 = vmul.f32 %v1102, %v1101
        %v1104 = vmul.f32 0.5, %v1103
        %v1105 = vsub.f32 1.5, %v1104
        %v1106 = vmul.f32 %v1101, %v1105
        %vm1107 = vweird.f32 %v995
        %vm1108 = vweird.f32 %v1101
        %vm1109 = vmor %vm1107, %vm1108
        %v1110 = vsel %vm1109, %v1101, %v1106
        %v1111 = vrsqrt.pop %v996
        %v1112 = vmul.f32 %v1111, %v996
        %v1113 = vmul.f32 %v1112, %v1111
        %v1114 = vmul.f32 0.5, %v1113
        %v1115 = vsub.f32 1.5, %v1114
        %v1116 = vmul.f32 %v1111, %v1115
        %vm1117 = vweird.f32 %v996
        %vm1118 = vweird.f32 %v1111
        %vm1119 = vmor %vm1117, %vm1118
        %v1120 = vsel %vm1119, %v1111, %v1116
        %v1121 = vrsqrt.pop %v997
        %v1122 = vmul.f32 %v1121, %v997
        %v1123 = vmul.f32 %v1122, %v1121
        %v1124 = vmul.f32 0.5, %v1123
        %v1125 = vsub.f32 1.5, %v1124
        %v1126 = vmul.f32 %v1121, %v1125
        %vm1127 = vweird.f32 %v997
        %vm1128 = vweird.f32 %v1121
        %vm1129 = vmor %vm1127, %vm1128
        %v1130 = vsel %vm1129, %v1121, %v1126
        %v1131 = vrsqrt.pop %v998
        %v1132 = vmul.f32 %v1131, %v998
        %v1133 = vmul.f32 %v1132, %v1131
        %v1134 = vmul.f32 0.5, %v1133
        %v1135 = vsub.f32 1.5, %v1134
        %v1136 = vmul.f32 %v1131, %v1135
        %vm1137 = vweird.f32 %v998
        %vm1138 = vweird.f32 %v1131
        %vm1139 = vmor %vm1137, %vm1138
        %v1140 = vsel %vm1139, %v1131, %v1136
        %v1141 = vrsqrt.pop %v999
        %v1142 = vmul.f32 %v1141, %v999
        %v1143 = vmul.f32 %v1142, %v1141
        %v1144 = vmul.f32 0.5, %v1143
        %v1145 = vsub.f32 1.5, %v1144
        %v1146 = vmul.f32 %v1141, %v1145
        %vm1147 = vweird.f32 %v999
        %vm1148 = vweird.f32 %v1141
        %vm1149 = vmor %vm1147, %vm1148
        %v1150 = vsel %vm1149, %v1141, %v1146
        %v1151 = vrsqrt.pop %v1000
        %v1152 = vmul.f32 %v1151, %v1000
        %v1153 = vmul.f32 %v1152, %v1151
        %v1154 = vmul.f32 0.5, %v1153
        %v1155 = vsub.f32 1.5, %v1154
        %v1156 = vmul.f32 %v1151, %v1155
        %vm1157 = vweird.f32 %v1000
        %vm1158 = vweird.f32 %v1151
        %vm1159 = vmor %vm1157, %vm1158
        %v1160 = vsel %vm1159, %v1151, %v1156
        %v1161 = vmul.f32 %v905, %v1010
        %v1162 = vmul.f32 %v906, %v1020
        %v1163 = vmul.f32 %v907, %v1030
        %v1164 = vmul.f32 %v908, %v1040
        %v1165 = vmul.f32 %v909, %v1050
        %v1166 = vmul.f32 %v910, %v1060
        %v1167 = vmul.f32 %v911, %v1070
        %v1168 = vmul.f32 %v912, %v1080
        %v1169 = vmul.f32 %v913, %v1090
        %v1170 = vmul.f32 %v914, %v1100
        %v1171 = vmul.f32 %v915, %v1110
        %v1172 = vmul.f32 %v916, %v1120
        %v1173 = vmul.f32 %v917, %v1130
        %v1174 = vmul.f32 %v918, %v1140
        %v1175 = vmul.f32 %v919, %v1150
        %v1176 = vmul.f32 %v920, %v1160
        %v1178 = vperm.slane %v847, 0
        %v1180 = vmul.f32 %v1161, %v1178
        %v1181 = vmul.f32 %v1162, %v1178
        %v1182 = vmul.f32 %v1163, %v1178
        %v1183 = vmul.f32 %v1164, %v1178
        %v1184 = vmul.f32 %v1165, %v1178
        %v1185 = vmul.f32 %v1166, %v1178
        %v1186 = vmul.f32 %v1167, %v1178
        %v1187 = vmul.f32 %v1168, %v1178
        %v1188 = vmul.f32 %v1169, %v1178
        %v1189 = vmul.f32 %v1170, %v1178
        %v1190 = vmul.f32 %v1171, %v1178
        %v1191 = vmul.f32 %v1172, %v1178
        %v1192 = vmul.f32 %v1173, %v1178
        %v1193 = vmul.f32 %v1174, %v1178
        %v1194 = vmul.f32 %v1175, %v1178
        %v1195 = vmul.f32 %v1176, %v1178
        %v1197 = vperm.slane %v849, 0
        %v1199 = vadd.f32 %v1180, %v1197
        %v1200 = vadd.f32 %v1181, %v1197
        %v1201 = vadd.f32 %v1182, %v1197
        %v1202 = vadd.f32 %v1183, %v1197
        %v1203 = vadd.f32 %v1184, %v1197
        %v1204 = vadd.f32 %v1185, %v1197
        %v1205 = vadd.f32 %v1186, %v1197
        %v1206 = vadd.f32 %v1187, %v1197
        %v1207 = vadd.f32 %v1188, %v1197
        %v1208 = vadd.f32 %v1189, %v1197
        %v1209 = vadd.f32 %v1190, %v1197
        %v1210 = vadd.f32 %v1191, %v1197
        %v1211 = vadd.f32 %v1192, %v1197
        %v1212 = vadd.f32 %v1193, %v1197
        %v1213 = vadd.f32 %v1194, %v1197
        %v1214 = vadd.f32 %v1195, %v1197
        %v1215 = vpack.c.bf16 %v1200, %v1199
        %v1216 = vpack.c.bf16 %v1202, %v1201
        %v1217 = vpack.c.bf16 %v1204, %v1203
        %v1218 = vpack.c.bf16 %v1206, %v1205
        %v1219 = vpack.c.bf16 %v1208, %v1207
        %v1220 = vpack.c.bf16 %v1210, %v1209
        %v1221 = vpack.c.bf16 %v1212, %v1211
        %v1222 = vpack.c.bf16 %v1214, %v1213
        %s1223 = smul.u32 %s45, 80
        %s1224 = smul.addr %s1223, 4
        %s1225 = scalar_lea.vmem [#allocation12], %s1224
        %v1226 = vld [vmem:[%s1225] sm:$0xff]
        %v1227 = vld [vmem:[%s1225 + $0x8] sm:$0xff]
        %v1228 = vld [vmem:[%s1225 + $0x10] sm:$0xf]
        %v1229 = vld [vmem:[%s1225 + $0x14] sm:$0xff]
        %v1230 = vld [vmem:[%s1225 + $0x1c] sm:$0xff]
        %v1231 = vld [vmem:[%s1225 + $0x24] sm:$0xf]
        %v1232 = vld [vmem:[%s1225 + $0x28] sm:$0xff]
        %v1233 = vld [vmem:[%s1225 + $0x30] sm:$0xff]
        %v1234 = vld [vmem:[%s1225 + $0x38] sm:$0xf]
        %v1235 = vld [vmem:[%s1225 + $0x3c] sm:$0xff]
        %v1236 = vld [vmem:[%s1225 + $0x44] sm:$0xff]
        %v1237 = vld [vmem:[%s1225 + $0x4c] sm:$0xf]
        %v1238 = vld [vmem:[%s1225 + $0x50] sm:$0xff]
        %v1239 = vld [vmem:[%s1225 + $0x58] sm:$0xff]
        %v1240 = vld [vmem:[%s1225 + $0x60] sm:$0xf]
        %v1241 = vld [vmem:[%s1225 + $0x64] sm:$0xff]
        %v1242 = vld [vmem:[%s1225 + $0x6c] sm:$0xff]
        %v1243 = vld [vmem:[%s1225 + $0x74] sm:$0xf]
        %v1244 = vld [vmem:[%s1225 + $0x78] sm:$0xff]
        %v1245 = vld [vmem:[%s1225 + $0x80] sm:$0xff]
        %v1246 = vld [vmem:[%s1225 + $0x88] sm:$0xf]
        %v1247 = vld [vmem:[%s1225 + $0x8c] sm:$0xff]
        %v1248 = vld [vmem:[%s1225 + $0x94] sm:$0xff]
        %v1249 = vld [vmem:[%s1225 + $0x9c] sm:$0xf]
        %v1250 = vld [vmem:[%s1225 + $0xa0] sm:$0xff]
        %v1251 = vld [vmem:[%s1225 + $0xa8] sm:$0xff]
        %v1252 = vld [vmem:[%s1225 + $0xb0] sm:$0xf]
        %v1253 = vld [vmem:[%s1225 + $0xb4] sm:$0xff]
        %v1254 = vld [vmem:[%s1225 + $0xbc] sm:$0xff]
        %v1255 = vld [vmem:[%s1225 + $0xc4] sm:$0xf]
        %v1256 = vld [vmem:[%s1225 + $0xc8] sm:$0xff]
        %v1257 = vld [vmem:[%s1225 + $0xd0] sm:$0xff]
        %v1258 = vld [vmem:[%s1225 + $0xd8] sm:$0xf]
        %v1259 = vld [vmem:[%s1225 + $0xdc] sm:$0xff]
        %v1260 = vld [vmem:[%s1225 + $0xe4] sm:$0xff]
        %v1261 = vld [vmem:[%s1225 + $0xec] sm:$0xf]
        %v1262 = vld [vmem:[%s1225 + $0xf0] sm:$0xff]
        %v1263 = vld [vmem:[%s1225 + $0xf8] sm:$0xff]
        %v1264 = vld [vmem:[%s1225 + $0x100] sm:$0xf]
        %v1265 = vld [vmem:[%s1225 + $0x104] sm:$0xff]
        %v1266 = vld [vmem:[%s1225 + $0x10c] sm:$0xff]
        %v1267 = vld [vmem:[%s1225 + $0x114] sm:$0xf]
        %v1268 = vld [vmem:[%s1225 + $0x118] sm:$0xff]
        %v1269 = vld [vmem:[%s1225 + $0x120] sm:$0xff]
        %v1270 = vld [vmem:[%s1225 + $0x128] sm:$0xf]
        %v1271 = vld [vmem:[%s1225 + $0x12c] sm:$0xff]
        %v1272 = vld [vmem:[%s1225 + $0x134] sm:$0xff]
        %v1273 = vld [vmem:[%s1225 + $0x13c] sm:$0xf]
        %s1274 = smul.u32 %s45, 5
        %s1275 = scalar_lea.vmem [#allocation13], %s1274
        %v1276 = vld [vmem:[%s1275] sm:$0x1f]
        %v1278 = vperm.slane %v1276, 0
        %v1279 = vperm.slane %v1276, 1
        %v1280 = vperm.slane %v1276, 2
        %v1281 = vperm.slane %v1276, 3
        %v1282 = vperm.slane %v1276, 4
        %v1336 = vunpack.c.l.b16 %v1226
        %v1337 = vunpack.c.h.b16 %v1226
        %v1338 = vunpack.c.l.b16 %v1227
        %v1339 = vunpack.c.h.b16 %v1227
        %v1340 = vunpack.c.l.b16 %v1228
        %v1341 = vunpack.c.l.b16 %v1229
        %v1342 = vunpack.c.h.b16 %v1229
        %v1343 = vunpack.c.l.b16 %v1230
        %v1344 = vunpack.c.h.b16 %v1230
        %v1345 = vunpack.c.l.b16 %v1231
        %v1346 = vunpack.c.l.b16 %v1232
        %v1347 = vunpack.c.h.b16 %v1232
        %v1348 = vunpack.c.l.b16 %v1233
        %v1349 = vunpack.c.h.b16 %v1233
        %v1350 = vunpack.c.l.b16 %v1234
        %v1351 = vunpack.c.l.b16 %v1235
        %v1352 = vunpack.c.h.b16 %v1235
        %v1353 = vunpack.c.l.b16 %v1236
        %v1354 = vunpack.c.h.b16 %v1236
        %v1355 = vunpack.c.l.b16 %v1237
        %v1356 = vunpack.c.l.b16 %v1238
        %v1357 = vunpack.c.h.b16 %v1238
        %v1358 = vunpack.c.l.b16 %v1239
        %v1359 = vunpack.c.h.b16 %v1239
        %v1360 = vunpack.c.l.b16 %v1240
        %v1361 = vunpack.c.l.b16 %v1241
        %v1362 = vunpack.c.h.b16 %v1241
        %v1363 = vunpack.c.l.b16 %v1242
        %v1364 = vunpack.c.h.b16 %v1242
        %v1365 = vunpack.c.l.b16 %v1243
        %v1366 = vunpack.c.l.b16 %v1244
        %v1367 = vunpack.c.h.b16 %v1244
        %v1368 = vunpack.c.l.b16 %v1245
        %v1369 = vunpack.c.h.b16 %v1245
        %v1370 = vunpack.c.l.b16 %v1246
        %v1371 = vunpack.c.l.b16 %v1247
        %v1372 = vunpack.c.h.b16 %v1247
        %v1373 = vunpack.c.l.b16 %v1248
        %v1374 = vunpack.c.h.b16 %v1248
        %v1375 = vunpack.c.l.b16 %v1249
        %v1376 = vunpack.c.l.b16 %v1250
        %v1377 = vunpack.c.h.b16 %v1250
        %v1378 = vunpack.c.l.b16 %v1251
        %v1379 = vunpack.c.h.b16 %v1251
        %v1380 = vunpack.c.l.b16 %v1252
        %v1381 = vunpack.c.l.b16 %v1253
        %v1382 = vunpack.c.h.b16 %v1253
        %v1383 = vunpack.c.l.b16 %v1254
        %v1384 = vunpack.c.h.b16 %v1254
        %v1385 = vunpack.c.l.b16 %v1255
        %v1386 = vunpack.c.l.b16 %v1256
        %v1387 = vunpack.c.h.b16 %v1256
        %v1388 = vunpack.c.l.b16 %v1257
        %v1389 = vunpack.c.h.b16 %v1257
        %v1390 = vunpack.c.l.b16 %v1258
        %v1391 = vunpack.c.l.b16 %v1259
        %v1392 = vunpack.c.h.b16 %v1259
        %v1393 = vunpack.c.l.b16 %v1260
        %v1394 = vunpack.c.h.b16 %v1260
        %v1395 = vunpack.c.l.b16 %v1261
        %v1396 = vunpack.c.l.b16 %v1262
        %v1397 = vunpack.c.h.b16 %v1262
        %v1398 = vunpack.c.l.b16 %v1263
        %v1399 = vunpack.c.h.b16 %v1263
        %v1400 = vunpack.c.l.b16 %v1264
        %v1401 = vunpack.c.l.b16 %v1265
        %v1402 = vunpack.c.h.b16 %v1265
        %v1403 = vunpack.c.l.b16 %v1266
        %v1404 = vunpack.c.h.b16 %v1266
        %v1405 = vunpack.c.l.b16 %v1267
        %v1406 = vunpack.c.l.b16 %v1268
        %v1407 = vunpack.c.h.b16 %v1268
        %v1408 = vunpack.c.l.b16 %v1269
        %v1409 = vunpack.c.h.b16 %v1269
        %v1410 = vunpack.c.l.b16 %v1270
        %v1411 = vunpack.c.l.b16 %v1271
        %v1412 = vunpack.c.h.b16 %v1271
        %v1413 = vunpack.c.l.b16 %v1272
        %v1414 = vunpack.c.h.b16 %v1272
        %v1415 = vunpack.c.l.b16 %v1273
        %v1416 = vpack.c.b16 %v1341, %v1336
        %v1417 = vpack.c.b16 %v1342, %v1337
        %v1418 = vpack.c.b16 %v1343, %v1338
        %v1419 = vpack.c.b16 %v1344, %v1339
        %v1420 = vpack.c.b16 %v1345, %v1340
        %v1421 = vpack.c.b16 %v1351, %v1346
        %v1422 = vpack.c.b16 %v1352, %v1347
        %v1423 = vpack.c.b16 %v1353, %v1348
        %v1424 = vpack.c.b16 %v1354, %v1349
        %v1425 = vpack.c.b16 %v1355, %v1350
        %v1426 = vpack.c.b16 %v1361, %v1356
        %v1427 = vpack.c.b16 %v1362, %v1357
        %v1428 = vpack.c.b16 %v1363, %v1358
        %v1429 = vpack.c.b16 %v1364, %v1359
        %v1430 = vpack.c.b16 %v1365, %v1360
        %v1431 = vpack.c.b16 %v1371, %v1366
        %v1432 = vpack.c.b16 %v1372, %v1367
        %v1433 = vpack.c.b16 %v1373, %v1368
        %v1434 = vpack.c.b16 %v1374, %v1369
        %v1435 = vpack.c.b16 %v1375, %v1370
        %v1436 = vpack.c.b16 %v1381, %v1376
        %v1437 = vpack.c.b16 %v1382, %v1377
        %v1438 = vpack.c.b16 %v1383, %v1378
        %v1439 = vpack.c.b16 %v1384, %v1379
        %v1440 = vpack.c.b16 %v1385, %v1380
        %v1441 = vpack.c.b16 %v1391, %v1386
        %v1442 = vpack.c.b16 %v1392, %v1387
        %v1443 = vpack.c.b16 %v1393, %v1388
        %v1444 = vpack.c.b16 %v1394, %v1389
        %v1445 = vpack.c.b16 %v1395, %v1390
        %v1446 = vpack.c.b16 %v1401, %v1396
        %v1447 = vpack.c.b16 %v1402, %v1397
        %v1448 = vpack.c.b16 %v1403, %v1398
        %v1449 = vpack.c.b16 %v1404, %v1399
        %v1450 = vpack.c.b16 %v1405, %v1400
        %v1451 = vpack.c.b16 %v1411, %v1406
        %v1452 = vpack.c.b16 %v1412, %v1407
        %v1453 = vpack.c.b16 %v1413, %v1408
        %v1454 = vpack.c.b16 %v1414, %v1409
        %v1455 = vpack.c.b16 %v1415, %v1410
        %1496 = vmatpush.bf16.msra.mxu0 %v1451
        %1497 = vmatpush.bf16.msra.mxu0 %v1446
        %1498 = vmatpush.bf16.msra.mxu0 %v1441
        %1499 = vmatpush.bf16.msra.mxu0 %v1436
        %1500 = vmatpush.bf16.msra.mxu0 %v1431
        %1501 = vmatpush.bf16.msra.mxu0 %v1426
        %1502 = vmatpush.bf16.msra.mxu0 %v1421
        %1503 = vmatpush.bf16.msra.mxu0 %v1416
        %1504 = vmatmul.bf16.gmra.mxu0 %v1215
        %v1505 = vpop.f32.mrf.mxu0
        %v1506 = vadd.f32 %v1278, %v1505
        %v1507 = vpop.f32.mrf.mxu0
        %v1508 = vadd.f32 %v1278, %v1507
        %1509 = vmatmul.bf16.gmra.mxu0 %v1216
        %v1510 = vpop.f32.mrf.mxu0
        %v1511 = vadd.f32 %v1278, %v1510
        %v1512 = vpop.f32.mrf.mxu0
        %v1513 = vadd.f32 %v1278, %v1512
        %1514 = vmatmul.bf16.gmra.mxu0 %v1217
        %v1515 = vpop.f32.mrf.mxu0
        %v1516 = vadd.f32 %v1278, %v1515
        %v1517 = vpop.f32.mrf.mxu0
        %v1518 = vadd.f32 %v1278, %v1517
        %1519 = vmatmul.bf16.gmra.mxu0 %v1218
        %v1520 = vpop.f32.mrf.mxu0
        %v1521 = vadd.f32 %v1278, %v1520
        %v1522 = vpop.f32.mrf.mxu0
        %v1523 = vadd.f32 %v1278, %v1522
        %1524 = vmatmul.bf16.gmra.mxu0 %v1219
        %v1525 = vpop.f32.mrf.mxu0
        %v1526 = vadd.f32 %v1278, %v1525
        %v1527 = vpop.f32.mrf.mxu0
        %v1528 = vadd.f32 %v1278, %v1527
        %1529 = vmatmul.bf16.gmra.mxu0 %v1220
        %v1530 = vpop.f32.mrf.mxu0
        %v1531 = vadd.f32 %v1278, %v1530
        %v1532 = vpop.f32.mrf.mxu0
        %v1533 = vadd.f32 %v1278, %v1532
        %1534 = vmatmul.bf16.gmra.mxu0 %v1221
        %v1535 = vpop.f32.mrf.mxu0
        %v1536 = vadd.f32 %v1278, %v1535
        %v1537 = vpop.f32.mrf.mxu0
        %v1538 = vadd.f32 %v1278, %v1537
        %1539 = vmatmul.bf16.gmra.mxu0 %v1222
        %v1540 = vpop.f32.mrf.mxu0
        %v1541 = vadd.f32 %v1278, %v1540
        %v1542 = vpop.f32.mrf.mxu0
        %v1543 = vadd.f32 %v1278, %v1542
        %1544 = vdwg.mxu0
        %1545 = vmatpush.bf16.msra.mxu0 %v1452
        %1546 = vmatpush.bf16.msra.mxu0 %v1447
        %1547 = vmatpush.bf16.msra.mxu0 %v1442
        %1548 = vmatpush.bf16.msra.mxu0 %v1437
        %1549 = vmatpush.bf16.msra.mxu0 %v1432
        %1550 = vmatpush.bf16.msra.mxu0 %v1427
        %1551 = vmatpush.bf16.msra.mxu0 %v1422
        %1552 = vmatpush.bf16.msra.mxu0 %v1417
        %1553 = vmatmul.bf16.gmra.mxu0 %v1215
        %v1554 = vpop.f32.mrf.mxu0
        %v1555 = vadd.f32 %v1279, %v1554
        %v1556 = vpop.f32.mrf.mxu0
        %v1557 = vadd.f32 %v1279, %v1556
        %1558 = vmatmul.bf16.gmra.mxu0 %v1216
        %v1559 = vpop.f32.mrf.mxu0
        %v1560 = vadd.f32 %v1279, %v1559
        %v1561 = vpop.f32.mrf.mxu0
        %v1562 = vadd.f32 %v1279, %v1561
        %1563 = vmatmul.bf16.gmra.mxu0 %v1217
        %v1564 = vpop.f32.mrf.mxu0
        %v1565 = vadd.f32 %v1279, %v1564
        %v1566 = vpop.f32.mrf.mxu0
        %v1567 = vadd.f32 %v1279, %v1566
        %1568 = vmatmul.bf16.gmra.mxu0 %v1218
        %v1569 = vpop.f32.mrf.mxu0
        %v1570 = vadd.f32 %v1279, %v1569
        %v1571 = vpop.f32.mrf.mxu0
        %v1572 = vadd.f32 %v1279, %v1571
        %1573 = vmatmul.bf16.gmra.mxu0 %v1219
        %v1574 = vpop.f32.mrf.mxu0
        %v1575 = vadd.f32 %v1279, %v1574
        %v1576 = vpop.f32.mrf.mxu0
        %v1577 = vadd.f32 %v1279, %v1576
        %1578 = vmatmul.bf16.gmra.mxu0 %v1220
        %v1579 = vpop.f32.mrf.mxu0
        %v1580 = vadd.f32 %v1279, %v1579
        %v1581 = vpop.f32.mrf.mxu0
        %v1582 = vadd.f32 %v1279, %v1581
        %1583 = vmatmul.bf16.gmra.mxu0 %v1221
        %v1584 = vpop.f32.mrf.mxu0
        %v1585 = vadd.f32 %v1279, %v1584
        %v1586 = vpop.f32.mrf.mxu0
        %v1587 = vadd.f32 %v1279, %v1586
        %1588 = vmatmul.bf16.gmra.mxu0 %v1222
        %v1589 = vpop.f32.mrf.mxu0
        %v1590 = vadd.f32 %v1279, %v1589
        %v1591 = vpop.f32.mrf.mxu0
        %v1592 = vadd.f32 %v1279, %v1591
        %1593 = vdwg.mxu0
        %1594 = vmatpush.bf16.msra.mxu0 %v1453
        %1595 = vmatpush.bf16.msra.mxu0 %v1448
        %1596 = vmatpush.bf16.msra.mxu0 %v1443
        %1597 = vmatpush.bf16.msra.mxu0 %v1438
        %1598 = vmatpush.bf16.msra.mxu0 %v1433
        %1599 = vmatpush.bf16.msra.mxu0 %v1428
        %1600 = vmatpush.bf16.msra.mxu0 %v1423
        %1601 = vmatpush.bf16.msra.mxu0 %v1418
        %1602 = vmatmul.bf16.gmra.mxu0 %v1215
        %v1603 = vpop.f32.mrf.mxu0
        %v1604 = vadd.f32 %v1280, %v1603
        %v1605 = vpop.f32.mrf.mxu0
        %v1606 = vadd.f32 %v1280, %v1605
        %1607 = vmatmul.bf16.gmra.mxu0 %v1216
        %v1608 = vpop.f32.mrf.mxu0
        %v1609 = vadd.f32 %v1280, %v1608
        %v1610 = vpop.f32.mrf.mxu0
        %v1611 = vadd.f32 %v1280, %v1610
        %1612 = vmatmul.bf16.gmra.mxu0 %v1217
        %v1613 = vpop.f32.mrf.mxu0
        %v1614 = vadd.f32 %v1280, %v1613
        %v1615 = vpop.f32.mrf.mxu0
        %v1616 = vadd.f32 %v1280, %v1615
        %1617 = vmatmul.bf16.gmra.mxu0 %v1218
        %v1618 = vpop.f32.mrf.mxu0
        %v1619 = vadd.f32 %v1280, %v1618
        %v1620 = vpop.f32.mrf.mxu0
        %v1621 = vadd.f32 %v1280, %v1620
        %1622 = vmatmul.bf16.gmra.mxu0 %v1219
        %v1623 = vpop.f32.mrf.mxu0
        %v1624 = vadd.f32 %v1280, %v1623
        %v1625 = vpop.f32.mrf.mxu0
        %v1626 = vadd.f32 %v1280, %v1625
        %1627 = vmatmul.bf16.gmra.mxu0 %v1220
        %v1628 = vpop.f32.mrf.mxu0
        %v1629 = vadd.f32 %v1280, %v1628
        %v1630 = vpop.f32.mrf.mxu0
        %v1631 = vadd.f32 %v1280, %v1630
        %1632 = vmatmul.bf16.gmra.mxu0 %v1221
        %v1633 = vpop.f32.mrf.mxu0
        %v1634 = vadd.f32 %v1280, %v1633
        %v1635 = vpop.f32.mrf.mxu0
        %v1636 = vadd.f32 %v1280, %v1635
        %1637 = vmatmul.bf16.gmra.mxu0 %v1222
        %v1638 = vpop.f32.mrf.mxu0
        %v1639 = vadd.f32 %v1280, %v1638
        %v1640 = vpop.f32.mrf.mxu0
        %v1641 = vadd.f32 %v1280, %v1640
        %1642 = vdwg.mxu0
        %1643 = vmatpush.bf16.msra.mxu0 %v1454
        %1644 = vmatpush.bf16.msra.mxu0 %v1449
        %1645 = vmatpush.bf16.msra.mxu0 %v1444
        %1646 = vmatpush.bf16.msra.mxu0 %v1439
        %1647 = vmatpush.bf16.msra.mxu0 %v1434
        %1648 = vmatpush.bf16.msra.mxu0 %v1429
        %1649 = vmatpush.bf16.msra.mxu0 %v1424
        %1650 = vmatpush.bf16.msra.mxu0 %v1419
        %1651 = vmatmul.bf16.gmra.mxu0 %v1215
        %v1652 = vpop.f32.mrf.mxu0
        %v1653 = vadd.f32 %v1281, %v1652
        %v1654 = vpop.f32.mrf.mxu0
        %v1655 = vadd.f32 %v1281, %v1654
        %1656 = vmatmul.bf16.gmra.mxu0 %v1216
        %v1657 = vpop.f32.mrf.mxu0
        %v1658 = vadd.f32 %v1281, %v1657
        %v1659 = vpop.f32.mrf.mxu0
        %v1660 = vadd.f32 %v1281, %v1659
        %1661 = vmatmul.bf16.gmra.mxu0 %v1217
        %v1662 = vpop.f32.mrf.mxu0
        %v1663 = vadd.f32 %v1281, %v1662
        %v1664 = vpop.f32.mrf.mxu0
        %v1665 = vadd.f32 %v1281, %v1664
        %1666 = vmatmul.bf16.gmra.mxu0 %v1218
        %v1667 = vpop.f32.mrf.mxu0
        %v1668 = vadd.f32 %v1281, %v1667
        %v1669 = vpop.f32.mrf.mxu0
        %v1670 = vadd.f32 %v1281, %v1669
        %1671 = vmatmul.bf16.gmra.mxu0 %v1219
        %v1672 = vpop.f32.mrf.mxu0
        %v1673 = vadd.f32 %v1281, %v1672
        %v1674 = vpop.f32.mrf.mxu0
        %v1675 = vadd.f32 %v1281, %v1674
        %1676 = vmatmul.bf16.gmra.mxu0 %v1220
        %v1677 = vpop.f32.mrf.mxu0
        %v1678 = vadd.f32 %v1281, %v1677
        %v1679 = vpop.f32.mrf.mxu0
        %v1680 = vadd.f32 %v1281, %v1679
        %1681 = vmatmul.bf16.gmra.mxu0 %v1221
        %v1682 = vpop.f32.mrf.mxu0
        %v1683 = vadd.f32 %v1281, %v1682
        %v1684 = vpop.f32.mrf.mxu0
        %v1685 = vadd.f32 %v1281, %v1684
        %1686 = vmatmul.bf16.gmra.mxu0 %v1222
        %v1687 = vpop.f32.mrf.mxu0
        %v1688 = vadd.f32 %v1281, %v1687
        %v1689 = vpop.f32.mrf.mxu0
        %v1690 = vadd.f32 %v1281, %v1689
        %1691 = vdwg.mxu0
        %1692 = vmatpush.bf16.msra.mxu0 %v1455
        %1693 = vmatpush.bf16.msra.mxu0 %v1450
        %1694 = vmatpush.bf16.msra.mxu0 %v1445
        %1695 = vmatpush.bf16.msra.mxu0 %v1440
        %1696 = vmatpush.bf16.msra.mxu0 %v1435
        %1697 = vmatpush.bf16.msra.mxu0 %v1430
        %1698 = vmatpush.bf16.msra.mxu0 %v1425
        %1699 = vmatpush.bf16.msra.mxu0 %v1420
        %1700 = vmatmul.bf16.gmra.mxu0 %v1215
        %v1701 = vpop.f32.mrf.mxu0
        %v1702 = vadd.f32 %v1282, %v1701
        %v1703 = vpop.f32.mrf.mxu0
        %v1704 = vadd.f32 %v1282, %v1703
        %1705 = vmatmul.bf16.gmra.mxu0 %v1216
        %v1706 = vpop.f32.mrf.mxu0
        %v1707 = vadd.f32 %v1282, %v1706
        %v1708 = vpop.f32.mrf.mxu0
        %v1709 = vadd.f32 %v1282, %v1708
        %1710 = vmatmul.bf16.gmra.mxu0 %v1217
        %v1711 = vpop.f32.mrf.mxu0
        %v1712 = vadd.f32 %v1282, %v1711
        %v1713 = vpop.f32.mrf.mxu0
        %v1714 = vadd.f32 %v1282, %v1713
        %1715 = vmatmul.bf16.gmra.mxu0 %v1218
        %v1716 = vpop.f32.mrf.mxu0
        %v1717 = vadd.f32 %v1282, %v1716
        %v1718 = vpop.f32.mrf.mxu0
        %v1719 = vadd.f32 %v1282, %v1718
        %1720 = vmatmul.bf16.gmra.mxu0 %v1219
        %v1721 = vpop.f32.mrf.mxu0
        %v1722 = vadd.f32 %v1282, %v1721
        %v1723 = vpop.f32.mrf.mxu0
        %v1724 = vadd.f32 %v1282, %v1723
        %1725 = vmatmul.bf16.gmra.mxu0 %v1220
        %v1726 = vpop.f32.mrf.mxu0
        %v1727 = vadd.f32 %v1282, %v1726
        %v1728 = vpop.f32.mrf.mxu0
        %v1729 = vadd.f32 %v1282, %v1728
        %1730 = vmatmul.bf16.gmra.mxu0 %v1221
        %v1731 = vpop.f32.mrf.mxu0
        %v1732 = vadd.f32 %v1282, %v1731
        %v1733 = vpop.f32.mrf.mxu0
        %v1734 = vadd.f32 %v1282, %v1733
        %1735 = vmatmul.bf16.gmra.mxu0 %v1222
        %v1736 = vpop.f32.mrf.mxu0
        %v1737 = vadd.f32 %v1282, %v1736
        %v1738 = vpop.f32.mrf.mxu0
        %v1739 = vadd.f32 %v1282, %v1738
        %1740 = vdwg.mxu0
        %v1741 = vmul.f32 %v1506, %v814
        %v1742 = vmul.f32 %v1508, %v815
        %v1743 = vmul.f32 %v1511, %v816
        %v1744 = vmul.f32 %v1513, %v817
        %v1745 = vmul.f32 %v1516, %v818
        %v1746 = vmul.f32 %v1518, %v819
        %v1747 = vmul.f32 %v1521, %v820
        %v1748 = vmul.f32 %v1523, %v821
        %v1749 = vmul.f32 %v1526, %v822
        %v1750 = vmul.f32 %v1528, %v823
        %v1751 = vmul.f32 %v1531, %v824
        %v1752 = vmul.f32 %v1533, %v825
        %v1753 = vmul.f32 %v1536, %v826
        %v1754 = vmul.f32 %v1538, %v827
        %v1755 = vmul.f32 %v1541, %v828
        %v1756 = vmul.f32 %v1543, %v829
        %v1757 = vmul.f32 %v1555, %v830
        %v1758 = vmul.f32 %v1557, %v831
        %v1759 = vmul.f32 %v1560, %v832
        %v1760 = vmul.f32 %v1562, %v833
        %v1761 = vmul.f32 %v1565, %v834
        %v1762 = vmul.f32 %v1567, %v835
        %v1763 = vmul.f32 %v1570, %v836
        %v1764 = vmul.f32 %v1572, %v837
        %v1765 = vmul.f32 %v1575, %v838
        %v1766 = vmul.f32 %v1577, %v839
        %v1767 = vmul.f32 %v1580, %v840
        %v1768 = vmul.f32 %v1582, %v841
        %v1769 = vmul.f32 %v1585, %v842
        %v1770 = vmul.f32 %v1587, %v843
        %v1771 = vmul.f32 %v1590, %v844
        %v1772 = vmul.f32 %v1592, %v845
        %v1773 = vadd.f32 %v1741, %v1757
        %v1774 = vadd.f32 %v1742, %v1758
        %v1775 = vadd.f32 %v1743, %v1759
        %v1776 = vadd.f32 %v1744, %v1760
        %v1777 = vadd.f32 %v1745, %v1761
        %v1778 = vadd.f32 %v1746, %v1762
        %v1779 = vadd.f32 %v1747, %v1763
        %v1780 = vadd.f32 %v1748, %v1764
        %v1781 = vadd.f32 %v1749, %v1765
        %v1782 = vadd.f32 %v1750, %v1766
        %v1783 = vadd.f32 %v1751, %v1767
        %v1784 = vadd.f32 %v1752, %v1768
        %v1785 = vadd.f32 %v1753, %v1769
        %v1786 = vadd.f32 %v1754, %v1770
        %v1787 = vadd.f32 %v1755, %v1771
        %v1788 = vadd.f32 %v1756, %v1772
        %v1789 = vmul.f32 %v1604, %v814
        %v1790 = vmul.f32 %v1606, %v815
        %v1791 = vmul.f32 %v1609, %v816
        %v1792 = vmul.f32 %v1611, %v817
        %v1793 = vmul.f32 %v1614, %v818
        %v1794 = vmul.f32 %v1616, %v819
        %v1795 = vmul.f32 %v1619, %v820
        %v1796 = vmul.f32 %v1621, %v821
        %v1797 = vmul.f32 %v1624, %v822
        %v1798 = vmul.f32 %v1626, %v823
        %v1799 = vmul.f32 %v1629, %v824
        %v1800 = vmul.f32 %v1631, %v825
        %v1801 = vmul.f32 %v1634, %v826
        %v1802 = vmul.f32 %v1636, %v827
        %v1803 = vmul.f32 %v1639, %v828
        %v1804 = vmul.f32 %v1641, %v829
        %v1805 = vmul.f32 %v1653, %v830
        %v1806 = vmul.f32 %v1655, %v831
        %v1807 = vmul.f32 %v1658, %v832
        %v1808 = vmul.f32 %v1660, %v833
        %v1809 = vmul.f32 %v1663, %v834
        %v1810 = vmul.f32 %v1665, %v835
        %v1811 = vmul.f32 %v1668, %v836
        %v1812 = vmul.f32 %v1670, %v837
        %v1813 = vmul.f32 %v1673, %v838
        %v1814 = vmul.f32 %v1675, %v839
        %v1815 = vmul.f32 %v1678, %v840
        %v1816 = vmul.f32 %v1680, %v841
        %v1817 = vmul.f32 %v1683, %v842
        %v1818 = vmul.f32 %v1685, %v843
        %v1819 = vmul.f32 %v1688, %v844
        %v1820 = vmul.f32 %v1690, %v845
        %v1821 = vadd.f32 %v1789, %v1805
        %v1822 = vadd.f32 %v1790, %v1806
        %v1823 = vadd.f32 %v1791, %v1807
        %v1824 = vadd.f32 %v1792, %v1808
        %v1825 = vadd.f32 %v1793, %v1809
        %v1826 = vadd.f32 %v1794, %v1810
        %v1827 = vadd.f32 %v1795, %v1811
        %v1828 = vadd.f32 %v1796, %v1812
        %v1829 = vadd.f32 %v1797, %v1813
        %v1830 = vadd.f32 %v1798, %v1814
        %v1831 = vadd.f32 %v1799, %v1815
        %v1832 = vadd.f32 %v1800, %v1816
        %v1833 = vadd.f32 %v1801, %v1817
        %v1834 = vadd.f32 %v1802, %v1818
        %v1835 = vadd.f32 %v1803, %v1819
        %v1836 = vadd.f32 %v1804, %v1820
        %v1837 = vpack.c.bf16 %v1774, %v1773
        %v1838 = vpack.c.bf16 %v1776, %v1775
        %v1839 = vpack.c.bf16 %v1778, %v1777
        %v1840 = vpack.c.bf16 %v1780, %v1779
        %v1841 = vpack.c.bf16 %v1782, %v1781
        %v1842 = vpack.c.bf16 %v1784, %v1783
        %v1843 = vpack.c.bf16 %v1786, %v1785
        %v1844 = vpack.c.bf16 %v1788, %v1787
        %v1845 = vpack.c.bf16 %v1822, %v1821
        %v1846 = vpack.c.bf16 %v1824, %v1823
        %v1847 = vpack.c.bf16 %v1826, %v1825
        %v1848 = vpack.c.bf16 %v1828, %v1827
        %v1849 = vpack.c.bf16 %v1830, %v1829
        %v1850 = vpack.c.bf16 %v1832, %v1831
        %v1851 = vpack.c.bf16 %v1834, %v1833
        %v1852 = vpack.c.bf16 %v1836, %v1835
        %v1853 = vpack.c.bf16 %v1704, %v1702
        %v1854 = vpack.c.bf16 %v1709, %v1707
        %v1855 = vpack.c.bf16 %v1714, %v1712
        %v1856 = vpack.c.bf16 %v1719, %v1717
        %v1857 = vpack.c.bf16 %v1724, %v1722
        %v1858 = vpack.c.bf16 %v1729, %v1727
        %v1859 = vpack.c.bf16 %v1734, %v1732
        %v1860 = vpack.c.bf16 %v1739, %v1737
        %vm1861 = vcmask 261120
        %v1863 = vsel %vm1861, %v1837, 0
        %v1866 = vsel %vm1861, %v1838, 0
        %v1869 = vsel %vm1861, %v1839, 0
        %v1872 = vsel %vm1861, %v1840, 0
        %v1875 = vsel %vm1861, %v1841, 0
        %v1878 = vsel %vm1861, %v1842, 0
        %v1881 = vsel %vm1861, %v1843, 0
        %v1884 = vsel %vm1861, %v1844, 0
        %v1887 = vsel %vm1861, %v1845, 0
        %v1890 = vsel %vm1861, %v1846, 0
        %v1893 = vsel %vm1861, %v1847, 0
        %v1896 = vsel %vm1861, %v1848, 0
        %v1899 = vsel %vm1861, %v1849, 0
        %v1902 = vsel %vm1861, %v1850, 0
        %v1905 = vsel %vm1861, %v1851, 0
        %v1908 = vsel %vm1861, %v1852, 0
        %1910 = vmatpush.bf16.xpose.msra.mxu0 %v1908
        %1911 = vmatpush.bf16.xpose.msra.mxu0 %v1905
        %1912 = vmatpush.bf16.xpose.msra.mxu0 %v1902
        %1913 = vmatpush.bf16.xpose.msra.mxu0 %v1899
        %1914 = vmatpush.bf16.xpose.msra.mxu0 %v1896
        %1915 = vmatpush.bf16.xpose.msra.mxu0 %v1893
        %1916 = vmatpush.bf16.xpose.msra.mxu0 %v1890
        %1917 = vmatpush.bf16.xpose.msra.mxu0 %v1887
        %1918 = vmatmul.bf16.gmra.mxu0 %v1863
        %v1919 = vpop.f32.mrf.mxu0
        %v1920 = vadd.f32 0.0, %v1919
        %v1921 = vpop.f32.mrf.mxu0
        %v1922 = vadd.f32 0.0, %v1921
        %1923 = vmatmul.bf16.gmra.mxu0 %v1866
        %v1924 = vpop.f32.mrf.mxu0
        %v1925 = vadd.f32 0.0, %v1924
        %v1926 = vpop.f32.mrf.mxu0
        %v1927 = vadd.f32 0.0, %v1926
        %1928 = vmatmul.bf16.gmra.mxu0 %v1869
        %v1929 = vpop.f32.mrf.mxu0
        %v1930 = vadd.f32 0.0, %v1929
        %v1931 = vpop.f32.mrf.mxu0
        %v1932 = vadd.f32 0.0, %v1931
        %1933 = vmatmul.bf16.gmra.mxu0 %v1872
        %v1934 = vpop.f32.mrf.mxu0
        %v1935 = vadd.f32 0.0, %v1934
        %v1936 = vpop.f32.mrf.mxu0
        %v1937 = vadd.f32 0.0, %v1936
        %1938 = vmatmul.bf16.gmra.mxu0 %v1875
        %v1939 = vpop.f32.mrf.mxu0
        %v1940 = vadd.f32 0.0, %v1939
        %v1941 = vpop.f32.mrf.mxu0
        %v1942 = vadd.f32 0.0, %v1941
        %1943 = vmatmul.bf16.gmra.mxu0 %v1878
        %v1944 = vpop.f32.mrf.mxu0
        %v1945 = vadd.f32 0.0, %v1944
        %v1946 = vpop.f32.mrf.mxu0
        %v1947 = vadd.f32 0.0, %v1946
        %1948 = vmatmul.bf16.gmra.mxu0 %v1881
        %v1949 = vpop.f32.mrf.mxu0
        %v1950 = vadd.f32 0.0, %v1949
        %v1951 = vpop.f32.mrf.mxu0
        %v1952 = vadd.f32 0.0, %v1951
        %1953 = vmatmul.bf16.gmra.mxu0 %v1884
        %v1954 = vpop.f32.mrf.mxu0
        %v1955 = vadd.f32 0.0, %v1954
        %v1956 = vpop.f32.mrf.mxu0
        %v1957 = vadd.f32 0.0, %v1956
        %1958 = vdwg.mxu0
        %1959 = vmax.xlane.f32.xlu0 %v1920
        %v1960 = vpop.xlane.xlu0 %1959
        %1961 = vmax.xlane.f32.xlu0 %v1922
        %v1962 = vpop.xlane.xlu0 %1961
        %1963 = vmax.xlane.f32.xlu0 %v1925
        %v1964 = vpop.xlane.xlu0 %1963
        %1965 = vmax.xlane.f32.xlu0 %v1927
        %v1966 = vpop.xlane.xlu0 %1965
        %1967 = vmax.xlane.f32.xlu0 %v1930
        %v1968 = vpop.xlane.xlu0 %1967
        %1969 = vmax.xlane.f32.xlu0 %v1932
        %v1970 = vpop.xlane.xlu0 %1969
        %1971 = vmax.xlane.f32.xlu0 %v1935
        %v1972 = vpop.xlane.xlu0 %1971
        %1973 = vmax.xlane.f32.xlu0 %v1937
        %v1974 = vpop.xlane.xlu0 %1973
        %1975 = vmax.xlane.f32.xlu0 %v1940
        %v1976 = vpop.xlane.xlu0 %1975
        %1977 = vmax.xlane.f32.xlu0 %v1942
        %v1978 = vpop.xlane.xlu0 %1977
        %1979 = vmax.xlane.f32.xlu0 %v1945
        %v1980 = vpop.xlane.xlu0 %1979
        %1981 = vmax.xlane.f32.xlu0 %v1947
        %v1982 = vpop.xlane.xlu0 %1981
        %1983 = vmax.xlane.f32.xlu0 %v1950
        %v1984 = vpop.xlane.xlu0 %1983
        %1985 = vmax.xlane.f32.xlu0 %v1952
        %v1986 = vpop.xlane.xlu0 %1985
        %1987 = vmax.xlane.f32.xlu0 %v1955
        %v1988 = vpop.xlane.xlu0 %1987
        %1989 = vmax.xlane.f32.xlu0 %v1957
        %v1990 = vpop.xlane.xlu0 %1989
        %v1991 = vsub.f32 %v1920, %v1960
        %v1992 = vsub.f32 %v1922, %v1962
        %v1993 = vsub.f32 %v1925, %v1964
        %v1994 = vsub.f32 %v1927, %v1966
        %v1995 = vsub.f32 %v1930, %v1968
        %v1996 = vsub.f32 %v1932, %v1970
        %v1997 = vsub.f32 %v1935, %v1972
        %v1998 = vsub.f32 %v1937, %v1974
        %v1999 = vsub.f32 %v1940, %v1976
        %v2000 = vsub.f32 %v1942, %v1978
        %v2001 = vsub.f32 %v1945, %v1980
        %v2002 = vsub.f32 %v1947, %v1982
        %v2003 = vsub.f32 %v1950, %v1984
        %v2004 = vsub.f32 %v1952, %v1986
        %v2005 = vsub.f32 %v1955, %v1988
        %v2006 = vsub.f32 %v1957, %v1990
        %v2007 = vmul.f32 %v1991, 1.442695
        %v2008 = vpow.pop %v2007
        %v2009 = vmul.f32 %v1992, 1.442695
        %v2010 = vpow.pop %v2009
        %v2011 = vmul.f32 %v1993, 1.442695
        %v2012 = vpow.pop %v2011
        %v2013 = vmul.f32 %v1994, 1.442695
        %v2014 = vpow.pop %v2013
        %v2015 = vmul.f32 %v1995, 1.442695
        %v2016 = vpow.pop %v2015
        %v2017 = vmul.f32 %v1996, 1.442695
        %v2018 = vpow.pop %v2017
        %v2019 = vmul.f32 %v1997, 1.442695
        %v2020 = vpow.pop %v2019
        %v2021 = vmul.f32 %v1998, 1.442695
        %v2022 = vpow.pop %v2021
        %v2023 = vmul.f32 %v1999, 1.442695
        %v2024 = vpow.pop %v2023
        %v2025 = vmul.f32 %v2000, 1.442695
        %v2026 = vpow.pop %v2025
        %v2027 = vmul.f32 %v2001, 1.442695
        %v2028 = vpow.pop %v2027
        %v2029 = vmul.f32 %v2002, 1.442695
        %v2030 = vpow.pop %v2029
        %v2031 = vmul.f32 %v2003, 1.442695
        %v2032 = vpow.pop %v2031
        %v2033 = vmul.f32 %v2004, 1.442695
        %v2034 = vpow.pop %v2033
        %v2035 = vmul.f32 %v2005, 1.442695
        %v2036 = vpow.pop %v2035
        %v2037 = vmul.f32 %v2006, 1.442695
        %v2038 = vpow.pop %v2037
        %v2039 = vpack.c.bf16 %v2010, %v2008
        %v2040 = vpack.c.bf16 %v2014, %v2012
        %v2041 = vpack.c.bf16 %v2018, %v2016
        %v2042 = vpack.c.bf16 %v2022, %v2020
        %v2043 = vpack.c.bf16 %v2026, %v2024
        %v2044 = vpack.c.bf16 %v2030, %v2028
        %v2045 = vpack.c.bf16 %v2034, %v2032
        %v2046 = vpack.c.bf16 %v2038, %v2036
        %2047 = vmatpush.bf16.msra.mxu0 %v1860
        %2048 = vmatpush.bf16.msra.mxu0 %v1859
        %2049 = vmatpush.bf16.msra.mxu0 %v1858
        %2050 = vmatpush.bf16.msra.mxu0 %v1857
        %2051 = vmatpush.bf16.msra.mxu0 %v1856
        %2052 = vmatpush.bf16.msra.mxu0 %v1855
        %2053 = vmatpush.bf16.msra.mxu0 %v1854
        %2054 = vmatpush.bf16.msra.mxu0 %v1853
        %2055 = vmatmul.bf16.gmra.mxu0 %v2039
        %v2056 = vpop.f32.mrf.mxu0
        %v2057 = vadd.f32 0.0, %v2056
        %v2058 = vpop.f32.mrf.mxu0
        %v2059 = vadd.f32 0.0, %v2058
        %2060 = vmatmul.bf16.gmra.mxu0 %v2040
        %v2061 = vpop.f32.mrf.mxu0
        %v2062 = vadd.f32 0.0, %v2061
        %v2063 = vpop.f32.mrf.mxu0
        %v2064 = vadd.f32 0.0, %v2063
        %2065 = vmatmul.bf16.gmra.mxu0 %v2041
        %v2066 = vpop.f32.mrf.mxu0
        %v2067 = vadd.f32 0.0, %v2066
        %v2068 = vpop.f32.mrf.mxu0
        %v2069 = vadd.f32 0.0, %v2068
        %2070 = vmatmul.bf16.gmra.mxu0 %v2042
        %v2071 = vpop.f32.mrf.mxu0
        %v2072 = vadd.f32 0.0, %v2071
        %v2073 = vpop.f32.mrf.mxu0
        %v2074 = vadd.f32 0.0, %v2073
        %2075 = vmatmul.bf16.gmra.mxu0 %v2043
        %v2076 = vpop.f32.mrf.mxu0
        %v2077 = vadd.f32 0.0, %v2076
        %v2078 = vpop.f32.mrf.mxu0
        %v2079 = vadd.f32 0.0, %v2078
        %2080 = vmatmul.bf16.gmra.mxu0 %v2044
        %v2081 = vpop.f32.mrf.mxu0
        %v2082 = vadd.f32 0.0, %v2081
        %v2083 = vpop.f32.mrf.mxu0
        %v2084 = vadd.f32 0.0, %v2083
        %2085 = vmatmul.bf16.gmra.mxu0 %v2045
        %v2086 = vpop.f32.mrf.mxu0
        %v2087 = vadd.f32 0.0, %v2086
        %v2088 = vpop.f32.mrf.mxu0
        %v2089 = vadd.f32 0.0, %v2088
        %2090 = vmatmul.bf16.gmra.mxu0 %v2046
        %v2091 = vpop.f32.mrf.mxu0
        %v2092 = vadd.f32 0.0, %v2091
        %v2093 = vpop.f32.mrf.mxu0
        %v2094 = vadd.f32 0.0, %v2093
        %2095 = vdwg.mxu0
        %2096 = vadd.xlane.f32.xlu0 %v2008
        %v2097 = vpop.xlane.xlu0 %2096
        %2098 = vadd.xlane.f32.xlu0 %v2010
        %v2099 = vpop.xlane.xlu0 %2098
        %2100 = vadd.xlane.f32.xlu0 %v2012
        %v2101 = vpop.xlane.xlu0 %2100
        %2102 = vadd.xlane.f32.xlu0 %v2014
        %v2103 = vpop.xlane.xlu0 %2102
        %2104 = vadd.xlane.f32.xlu0 %v2016
        %v2105 = vpop.xlane.xlu0 %2104
        %2106 = vadd.xlane.f32.xlu0 %v2018
        %v2107 = vpop.xlane.xlu0 %2106
        %2108 = vadd.xlane.f32.xlu0 %v2020
        %v2109 = vpop.xlane.xlu0 %2108
        %2110 = vadd.xlane.f32.xlu0 %v2022
        %v2111 = vpop.xlane.xlu0 %2110
        %2112 = vadd.xlane.f32.xlu0 %v2024
        %v2113 = vpop.xlane.xlu0 %2112
        %2114 = vadd.xlane.f32.xlu0 %v2026
        %v2115 = vpop.xlane.xlu0 %2114
        %2116 = vadd.xlane.f32.xlu0 %v2028
        %v2117 = vpop.xlane.xlu0 %2116
        %2118 = vadd.xlane.f32.xlu0 %v2030
        %v2119 = vpop.xlane.xlu0 %2118
        %2120 = vadd.xlane.f32.xlu0 %v2032
        %v2121 = vpop.xlane.xlu0 %2120
        %2122 = vadd.xlane.f32.xlu0 %v2034
        %v2123 = vpop.xlane.xlu0 %2122
        %2124 = vadd.xlane.f32.xlu0 %v2036
        %v2125 = vpop.xlane.xlu0 %2124
        %2126 = vadd.xlane.f32.xlu0 %v2038
        %v2127 = vpop.xlane.xlu0 %2126
        %v2128 = vrcp.pop %v2097
        %v2129 = vrcp.pop %v2099
        %v2130 = vrcp.pop %v2101
        %v2131 = vrcp.pop %v2103
        %v2132 = vrcp.pop %v2105
        %v2133 = vrcp.pop %v2107
        %v2134 = vrcp.pop %v2109
        %v2135 = vrcp.pop %v2111
        %v2136 = vrcp.pop %v2113
        %v2137 = vrcp.pop %v2115
        %v2138 = vrcp.pop %v2117
        %v2139 = vrcp.pop %v2119
        %v2140 = vrcp.pop %v2121
        %v2141 = vrcp.pop %v2123
        %v2142 = vrcp.pop %v2125
        %v2143 = vrcp.pop %v2127
        %v2144 = vmul.f32 %v2057, %v2128
        %v2145 = vmul.f32 %v2059, %v2129
        %v2146 = vmul.f32 %v2062, %v2130
        %v2147 = vmul.f32 %v2064, %v2131
        %v2148 = vmul.f32 %v2067, %v2132
        %v2149 = vmul.f32 %v2069, %v2133
        %v2150 = vmul.f32 %v2072, %v2134
        %v2151 = vmul.f32 %v2074, %v2135
        %v2152 = vmul.f32 %v2077, %v2136
        %v2153 = vmul.f32 %v2079, %v2137
        %v2154 = vmul.f32 %v2082, %v2138
        %v2155 = vmul.f32 %v2084, %v2139
        %v2156 = vmul.f32 %v2087, %v2140
        %v2157 = vmul.f32 %v2089, %v2141
        %v2158 = vmul.f32 %v2092, %v2142
        %v2159 = vmul.f32 %v2094, %v2143
        %2160 = vst.msk [vmem:[#allocation3] sm:$0xff] %vm1861, %v2144
        %2161 = vst.msk [vmem:[#allocation3 + $0x8] sm:$0xff] %vm1861, %v2145
        %2162 = vst.msk [vmem:[#allocation3 + $0x10] sm:$0xff] %vm1861, %v2146
        %2163 = vst.msk [vmem:[#allocation3 + $0x18] sm:$0xff] %vm1861, %v2147
        %2164 = vst.msk [vmem:[#allocation3 + $0x20] sm:$0xff] %vm1861, %v2148
        %2165 = vst.msk [vmem:[#allocation3 + $0x28] sm:$0xff] %vm1861, %v2149
        %2166 = vst.msk [vmem:[#allocation3 + $0x30] sm:$0xff] %vm1861, %v2150
        %2167 = vst.msk [vmem:[#allocation3 + $0x38] sm:$0xff] %vm1861, %v2151
        %2168 = vst.msk [vmem:[#allocation3 + $0x40] sm:$0xff] %vm1861, %v2152
        %2169 = vst.msk [vmem:[#allocation3 + $0x48] sm:$0xff] %vm1861, %v2153
        %2170 = vst.msk [vmem:[#allocation3 + $0x50] sm:$0xff] %vm1861, %v2154
        %2171 = vst.msk [vmem:[#allocation3 + $0x58] sm:$0xff] %vm1861, %v2155
        %2172 = vst.msk [vmem:[#allocation3 + $0x60] sm:$0xff] %vm1861, %v2156
        %2173 = vst.msk [vmem:[#allocation3 + $0x68] sm:$0xff] %vm1861, %v2157
        %2174 = vst.msk [vmem:[#allocation3 + $0x70] sm:$0xff] %vm1861, %v2158
        %2175 = vst.msk [vmem:[#allocation3 + $0x78] sm:$0xff] %vm1861, %v2159
        %2184 = vrot.lane.b32.xlu0 %v1837, 96
        %v2185 = vpop.permute.xlu0 %2184
        %2186 = vrot.lane.b32.xlu0 %v1838, 96
        %v2187 = vpop.permute.xlu0 %2186
        %2188 = vrot.lane.b32.xlu0 %v1839, 96
        %v2189 = vpop.permute.xlu0 %2188
        %2190 = vrot.lane.b32.xlu0 %v1840, 96
        %v2191 = vpop.permute.xlu0 %2190
        %2192 = vrot.lane.b32.xlu0 %v1841, 96
        %v2193 = vpop.permute.xlu0 %2192
        %2194 = vrot.lane.b32.xlu0 %v1842, 96
        %v2195 = vpop.permute.xlu0 %2194
        %2196 = vrot.lane.b32.xlu0 %v1843, 96
        %v2197 = vpop.permute.xlu0 %2196
        %2198 = vrot.lane.b32.xlu0 %v1844, 96
        %v2199 = vpop.permute.xlu0 %2198
        %2208 = vrot.lane.b32.xlu0 %v1845, 96
        %v2209 = vpop.permute.xlu0 %2208
        %2210 = vrot.lane.b32.xlu0 %v1846, 96
        %v2211 = vpop.permute.xlu0 %2210
        %2212 = vrot.lane.b32.xlu0 %v1847, 96
        %v2213 = vpop.permute.xlu0 %2212
        %2214 = vrot.lane.b32.xlu0 %v1848, 96
        %v2215 = vpop.permute.xlu0 %2214
        %2216 = vrot.lane.b32.xlu0 %v1849, 96
        %v2217 = vpop.permute.xlu0 %2216
        %2218 = vrot.lane.b32.xlu0 %v1850, 96
        %v2219 = vpop.permute.xlu0 %2218
        %2220 = vrot.lane.b32.xlu0 %v1851, 96
        %v2221 = vpop.permute.xlu0 %2220
        %2222 = vrot.lane.b32.xlu0 %v1852, 96
        %v2223 = vpop.permute.xlu0 %2222
        %v2225 = vsel %vm1861, %v2185, 0
        %v2228 = vsel %vm1861, %v2187, 0
        %v2231 = vsel %vm1861, %v2189, 0
        %v2234 = vsel %vm1861, %v2191, 0
        %v2237 = vsel %vm1861, %v2193, 0
        %v2240 = vsel %vm1861, %v2195, 0
        %v2243 = vsel %vm1861, %v2197, 0
        %v2246 = vsel %vm1861, %v2199, 0
        %v2249 = vsel %vm1861, %v2209, 0
        %v2252 = vsel %vm1861, %v2211, 0
        %v2255 = vsel %vm1861, %v2213, 0
        %v2258 = vsel %vm1861, %v2215, 0
        %v2261 = vsel %vm1861, %v2217, 0
        %v2264 = vsel %vm1861, %v2219, 0
        %v2267 = vsel %vm1861, %v2221, 0
        %v2270 = vsel %vm1861, %v2223, 0
        %2272 = vmatpush.bf16.xpose.msra.mxu0 %v2270
        %2273 = vmatpush.bf16.xpose.msra.mxu0 %v2267
        %2274 = vmatpush.bf16.xpose.msra.mxu0 %v2264
        %2275 = vmatpush.bf16.xpose.msra.mxu0 %v2261
        %2276 = vmatpush.bf16.xpose.msra.mxu0 %v2258
        %2277 = vmatpush.bf16.xpose.msra.mxu0 %v2255
        %2278 = vmatpush.bf16.xpose.msra.mxu0 %v2252
        %2279 = vmatpush.bf16.xpose.msra.mxu0 %v2249
        %2280 = vmatmul.bf16.gmra.mxu0 %v2225
        %v2281 = vpop.f32.mrf.mxu0
        %v2282 = vadd.f32 0.0, %v2281
        %v2283 = vpop.f32.mrf.mxu0
        %v2284 = vadd.f32 0.0, %v2283
        %2285 = vmatmul.bf16.gmra.mxu0 %v2228
        %v2286 = vpop.f32.mrf.mxu0
        %v2287 = vadd.f32 0.0, %v2286
        %v2288 = vpop.f32.mrf.mxu0
        %v2289 = vadd.f32 0.0, %v2288
        %2290 = vmatmul.bf16.gmra.mxu0 %v2231
        %v2291 = vpop.f32.mrf.mxu0
        %v2292 = vadd.f32 0.0, %v2291
        %v2293 = vpop.f32.mrf.mxu0
        %v2294 = vadd.f32 0.0, %v2293
        %2295 = vmatmul.bf16.gmra.mxu0 %v2234
        %v2296 = vpop.f32.mrf.mxu0
        %v2297 = vadd.f32 0.0, %v2296
        %v2298 = vpop.f32.mrf.mxu0
        %v2299 = vadd.f32 0.0, %v2298
        %2300 = vmatmul.bf16.gmra.mxu0 %v2237
        %v2301 = vpop.f32.mrf.mxu0
        %v2302 = vadd.f32 0.0, %v2301
        %v2303 = vpop.f32.mrf.mxu0
        %v2304 = vadd.f32 0.0, %v2303
        %2305 = vmatmul.bf16.gmra.mxu0 %v2240
        %v2306 = vpop.f32.mrf.mxu0
        %v2307 = vadd.f32 0.0, %v2306
        %v2308 = vpop.f32.mrf.mxu0
        %v2309 = vadd.f32 0.0, %v2308
        %2310 = vmatmul.bf16.gmra.mxu0 %v2243
        %v2311 = vpop.f32.mrf.mxu0
        %v2312 = vadd.f32 0.0, %v2311
        %v2313 = vpop.f32.mrf.mxu0
        %v2314 = vadd.f32 0.0, %v2313
        %2315 = vmatmul.bf16.gmra.mxu0 %v2246
        %v2316 = vpop.f32.mrf.mxu0
        %v2317 = vadd.f32 0.0, %v2316
        %v2318 = vpop.f32.mrf.mxu0
        %v2319 = vadd.f32 0.0, %v2318
        %2320 = vdwg.mxu0
        %2321 = vmax.xlane.f32.xlu0 %v2282
        %v2322 = vpop.xlane.xlu0 %2321
        %2323 = vmax.xlane.f32.xlu0 %v2284
        %v2324 = vpop.xlane.xlu0 %2323
        %2325 = vmax.xlane.f32.xlu0 %v2287
        %v2326 = vpop.xlane.xlu0 %2325
        %2327 = vmax.xlane.f32.xlu0 %v2289
        %v2328 = vpop.xlane.xlu0 %2327
        %2329 = vmax.xlane.f32.xlu0 %v2292
        %v2330 = vpop.xlane.xlu0 %2329
        %2331 = vmax.xlane.f32.xlu0 %v2294
        %v2332 = vpop.xlane.xlu0 %2331
        %2333 = vmax.xlane.f32.xlu0 %v2297
        %v2334 = vpop.xlane.xlu0 %2333
        %2335 = vmax.xlane.f32.xlu0 %v2299
        %v2336 = vpop.xlane.xlu0 %2335
        %2337 = vmax.xlane.f32.xlu0 %v2302
        %v2338 = vpop.xlane.xlu0 %2337
        %2339 = vmax.xlane.f32.xlu0 %v2304
        %v2340 = vpop.xlane.xlu0 %2339
        %2341 = vmax.xlane.f32.xlu0 %v2307
        %v2342 = vpop.xlane.xlu0 %2341
        %2343 = vmax.xlane.f32.xlu0 %v2309
        %v2344 = vpop.xlane.xlu0 %2343
        %2345 = vmax.xlane.f32.xlu0 %v2312
        %v2346 = vpop.xlane.xlu0 %2345
        %2347 = vmax.xlane.f32.xlu0 %v2314
        %v2348 = vpop.xlane.xlu0 %2347
        %2349 = vmax.xlane.f32.xlu0 %v2317
        %v2350 = vpop.xlane.xlu0 %2349
        %2351 = vmax.xlane.f32.xlu0 %v2319
        %v2352 = vpop.xlane.xlu0 %2351
        %v2353 = vsub.f32 %v2282, %v2322
        %v2354 = vsub.f32 %v2284, %v2324
        %v2355 = vsub.f32 %v2287, %v2326
        %v2356 = vsub.f32 %v2289, %v2328
        %v2357 = vsub.f32 %v2292, %v2330
        %v2358 = vsub.f32 %v2294, %v2332
        %v2359 = vsub.f32 %v2297, %v2334
        %v2360 = vsub.f32 %v2299, %v2336
        %v2361 = vsub.f32 %v2302, %v2338
        %v2362 = vsub.f32 %v2304, %v2340
        %v2363 = vsub.f32 %v2307, %v2342
        %v2364 = vsub.f32 %v2309, %v2344
        %v2365 = vsub.f32 %v2312, %v2346
        %v2366 = vsub.f32 %v2314, %v2348
        %v2367 = vsub.f32 %v2317, %v2350
        %v2368 = vsub.f32 %v2319, %v2352
        %v2369 = vmul.f32 %v2353, 1.442695
        %v2370 = vpow.pop %v2369
        %v2371 = vmul.f32 %v2354, 1.442695
        %v2372 = vpow.pop %v2371
        %v2373 = vmul.f32 %v2355, 1.442695
        %v2374 = vpow.pop %v2373
        %v2375 = vmul.f32 %v2356, 1.442695
        %v2376 = vpow.pop %v2375
        %v2377 = vmul.f32 %v2357, 1.442695
        %v2378 = vpow.pop %v2377
        %v2379 = vmul.f32 %v2358, 1.442695
        %v2380 = vpow.pop %v2379
        %v2381 = vmul.f32 %v2359, 1.442695
        %v2382 = vpow.pop %v2381
        %v2383 = vmul.f32 %v2360, 1.442695
        %v2384 = vpow.pop %v2383
        %v2385 = vmul.f32 %v2361, 1.442695
        %v2386 = vpow.pop %v2385
        %v2387 = vmul.f32 %v2362, 1.442695
        %v2388 = vpow.pop %v2387
        %v2389 = vmul.f32 %v2363, 1.442695
        %v2390 = vpow.pop %v2389
        %v2391 = vmul.f32 %v2364, 1.442695
        %v2392 = vpow.pop %v2391
        %v2393 = vmul.f32 %v2365, 1.442695
        %v2394 = vpow.pop %v2393
        %v2395 = vmul.f32 %v2366, 1.442695
        %v2396 = vpow.pop %v2395
        %v2397 = vmul.f32 %v2367, 1.442695
        %v2398 = vpow.pop %v2397
        %v2399 = vmul.f32 %v2368, 1.442695
        %v2400 = vpow.pop %v2399
        %v2401 = vpack.c.bf16 %v2372, %v2370
        %v2402 = vpack.c.bf16 %v2376, %v2374
        %v2403 = vpack.c.bf16 %v2380, %v2378
        %v2404 = vpack.c.bf16 %v2384, %v2382
        %v2405 = vpack.c.bf16 %v2388, %v2386
        %v2406 = vpack.c.bf16 %v2392, %v2390
        %v2407 = vpack.c.bf16 %v2396, %v2394
        %v2408 = vpack.c.bf16 %v2400, %v2398
        %2417 = vrot.lane.b32.xlu0 %v1853, 96
        %v2418 = vpop.permute.xlu0 %2417
        %2419 = vrot.lane.b32.xlu0 %v1854, 96
        %v2420 = vpop.permute.xlu0 %2419
        %2421 = vrot.lane.b32.xlu0 %v1855, 96
        %v2422 = vpop.permute.xlu0 %2421
        %2423 = vrot.lane.b32.xlu0 %v1856, 96
        %v2424 = vpop.permute.xlu0 %2423
        %2425 = vrot.lane.b32.xlu0 %v1857, 96
        %v2426 = vpop.permute.xlu0 %2425
        %2427 = vrot.lane.b32.xlu0 %v1858, 96
        %v2428 = vpop.permute.xlu0 %2427
        %2429 = vrot.lane.b32.xlu0 %v1859, 96
        %v2430 = vpop.permute.xlu0 %2429
        %2431 = vrot.lane.b32.xlu0 %v1860, 96
        %v2432 = vpop.permute.xlu0 %2431
        %2441 = vmatpush.bf16.msra.mxu0 %v2432
        %2442 = vmatpush.bf16.msra.mxu0 %v2430
        %2443 = vmatpush.bf16.msra.mxu0 %v2428
        %2444 = vmatpush.bf16.msra.mxu0 %v2426
        %2445 = vmatpush.bf16.msra.mxu0 %v2424
        %2446 = vmatpush.bf16.msra.mxu0 %v2422
        %2447 = vmatpush.bf16.msra.mxu0 %v2420
        %2448 = vmatpush.bf16.msra.mxu0 %v2418
        %2449 = vmatmul.bf16.gmra.mxu0 %v2401
        %v2450 = vpop.f32.mrf.mxu0
        %v2451 = vadd.f32 0.0, %v2450
        %v2452 = vpop.f32.mrf.mxu0
        %v2453 = vadd.f32 0.0, %v2452
        %2454 = vmatmul.bf16.gmra.mxu0 %v2402
        %v2455 = vpop.f32.mrf.mxu0
        %v2456 = vadd.f32 0.0, %v2455
        %v2457 = vpop.f32.mrf.mxu0
        %v2458 = vadd.f32 0.0, %v2457
        %2459 = vmatmul.bf16.gmra.mxu0 %v2403
        %v2460 = vpop.f32.mrf.mxu0
        %v2461 = vadd.f32 0.0, %v2460
        %v2462 = vpop.f32.mrf.mxu0
        %v2463 = vadd.f32 0.0, %v2462
        %2464 = vmatmul.bf16.gmra.mxu0 %v2404
        %v2465 = vpop.f32.mrf.mxu0
        %v2466 = vadd.f32 0.0, %v2465
        %v2467 = vpop.f32.mrf.mxu0
        %v2468 = vadd.f32 0.0, %v2467
        %2469 = vmatmul.bf16.gmra.mxu0 %v2405
        %v2470 = vpop.f32.mrf.mxu0
        %v2471 = vadd.f32 0.0, %v2470
        %v2472 = vpop.f32.mrf.mxu0
        %v2473 = vadd.f32 0.0, %v2472
        %2474 = vmatmul.bf16.gmra.mxu0 %v2406
        %v2475 = vpop.f32.mrf.mxu0
        %v2476 = vadd.f32 0.0, %v2475
        %v2477 = vpop.f32.mrf.mxu0
        %v2478 = vadd.f32 0.0, %v2477
        %2479 = vmatmul.bf16.gmra.mxu0 %v2407
        %v2480 = vpop.f32.mrf.mxu0
        %v2481 = vadd.f32 0.0, %v2480
        %v2482 = vpop.f32.mrf.mxu0
        %v2483 = vadd.f32 0.0, %v2482
        %2484 = vmatmul.bf16.gmra.mxu0 %v2408
        %v2485 = vpop.f32.mrf.mxu0
        %v2486 = vadd.f32 0.0, %v2485
        %v2487 = vpop.f32.mrf.mxu0
        %v2488 = vadd.f32 0.0, %v2487
        %2489 = vdwg.mxu0
        %2490 = vadd.xlane.f32.xlu0 %v2370
        %v2491 = vpop.xlane.xlu0 %2490
        %2492 = vadd.xlane.f32.xlu0 %v2372
        %v2493 = vpop.xlane.xlu0 %2492
        %2494 = vadd.xlane.f32.xlu0 %v2374
        %v2495 = vpop.xlane.xlu0 %2494
        %2496 = vadd.xlane.f32.xlu0 %v2376
        %v2497 = vpop.xlane.xlu0 %2496
        %2498 = vadd.xlane.f32.xlu0 %v2378
        %v2499 = vpop.xlane.xlu0 %2498
        %2500 = vadd.xlane.f32.xlu0 %v2380
        %v2501 = vpop.xlane.xlu0 %2500
        %2502 = vadd.xlane.f32.xlu0 %v2382
        %v2503 = vpop.xlane.xlu0 %2502
        %2504 = vadd.xlane.f32.xlu0 %v2384
        %v2505 = vpop.xlane.xlu0 %2504
        %2506 = vadd.xlane.f32.xlu0 %v2386
        %v2507 = vpop.xlane.xlu0 %2506
        %2508 = vadd.xlane.f32.xlu0 %v2388
        %v2509 = vpop.xlane.xlu0 %2508
        %2510 = vadd.xlane.f32.xlu0 %v2390
        %v2511 = vpop.xlane.xlu0 %2510
        %2512 = vadd.xlane.f32.xlu0 %v2392
        %v2513 = vpop.xlane.xlu0 %2512
        %2514 = vadd.xlane.f32.xlu0 %v2394
        %v2515 = vpop.xlane.xlu0 %2514
        %2516 = vadd.xlane.f32.xlu0 %v2396
        %v2517 = vpop.xlane.xlu0 %2516
        %2518 = vadd.xlane.f32.xlu0 %v2398
        %v2519 = vpop.xlane.xlu0 %2518
        %2520 = vadd.xlane.f32.xlu0 %v2400
        %v2521 = vpop.xlane.xlu0 %2520
        %v2522 = vrcp.pop %v2491
        %v2523 = vrcp.pop %v2493
        %v2524 = vrcp.pop %v2495
        %v2525 = vrcp.pop %v2497
        %v2526 = vrcp.pop %v2499
        %v2527 = vrcp.pop %v2501
        %v2528 = vrcp.pop %v2503
        %v2529 = vrcp.pop %v2505
        %v2530 = vrcp.pop %v2507
        %v2531 = vrcp.pop %v2509
        %v2532 = vrcp.pop %v2511
        %v2533 = vrcp.pop %v2513
        %v2534 = vrcp.pop %v2515
        %v2535 = vrcp.pop %v2517
        %v2536 = vrcp.pop %v2519
        %v2537 = vrcp.pop %v2521
        %v2538 = vmul.f32 %v2451, %v2522
        %v2539 = vmul.f32 %v2453, %v2523
        %v2540 = vmul.f32 %v2456, %v2524
        %v2541 = vmul.f32 %v2458, %v2525
        %v2542 = vmul.f32 %v2461, %v2526
        %v2543 = vmul.f32 %v2463, %v2527
        %v2544 = vmul.f32 %v2466, %v2528
        %v2545 = vmul.f32 %v2468, %v2529
        %v2546 = vmul.f32 %v2471, %v2530
        %v2547 = vmul.f32 %v2473, %v2531
        %v2548 = vmul.f32 %v2476, %v2532
        %v2549 = vmul.f32 %v2478, %v2533
        %v2550 = vmul.f32 %v2481, %v2534
        %v2551 = vmul.f32 %v2483, %v2535
        %v2552 = vmul.f32 %v2486, %v2536
        %v2553 = vmul.f32 %v2488, %v2537
        %2570 = vrot.lane.b32.xlu0 %v2538, 32
        %v2571 = vpop.permute.xlu0 %2570
        %2572 = vrot.lane.b32.xlu0 %v2539, 32
        %v2573 = vpop.permute.xlu0 %2572
        %2574 = vrot.lane.b32.xlu0 %v2540, 32
        %v2575 = vpop.permute.xlu0 %2574
        %2576 = vrot.lane.b32.xlu0 %v2541, 32
        %v2577 = vpop.permute.xlu0 %2576
        %2578 = vrot.lane.b32.xlu0 %v2542, 32
        %v2579 = vpop.permute.xlu0 %2578
        %2580 = vrot.lane.b32.xlu0 %v2543, 32
        %v2581 = vpop.permute.xlu0 %2580
        %2582 = vrot.lane.b32.xlu0 %v2544, 32
        %v2583 = vpop.permute.xlu0 %2582
        %2584 = vrot.lane.b32.xlu0 %v2545, 32
        %v2585 = vpop.permute.xlu0 %2584
        %2586 = vrot.lane.b32.xlu0 %v2546, 32
        %v2587 = vpop.permute.xlu0 %2586
        %2588 = vrot.lane.b32.xlu0 %v2547, 32
        %v2589 = vpop.permute.xlu0 %2588
        %2590 = vrot.lane.b32.xlu0 %v2548, 32
        %v2591 = vpop.permute.xlu0 %2590
        %2592 = vrot.lane.b32.xlu0 %v2549, 32
        %v2593 = vpop.permute.xlu0 %2592
        %2594 = vrot.lane.b32.xlu0 %v2550, 32
        %v2595 = vpop.permute.xlu0 %2594
        %2596 = vrot.lane.b32.xlu0 %v2551, 32
        %v2597 = vpop.permute.xlu0 %2596
        %2598 = vrot.lane.b32.xlu0 %v2552, 32
        %v2599 = vpop.permute.xlu0 %2598
        %2600 = vrot.lane.b32.xlu0 %v2553, 32
        %v2601 = vpop.permute.xlu0 %2600
        %vm2618 = vcmask 523520
        %2619 = vst.msk [vmem:[#allocation3] sm:$0xff] %vm2618, %v2571
        %2620 = vst.msk [vmem:[#allocation3 + $0x8] sm:$0xff] %vm2618, %v2573
        %2621 = vst.msk [vmem:[#allocation3 + $0x10] sm:$0xff] %vm2618, %v2575
        %2622 = vst.msk [vmem:[#allocation3 + $0x18] sm:$0xff] %vm2618, %v2577
        %2623 = vst.msk [vmem:[#allocation3 + $0x20] sm:$0xff] %vm2618, %v2579
        %2624 = vst.msk [vmem:[#allocation3 + $0x28] sm:$0xff] %vm2618, %v2581
        %2625 = vst.msk [vmem:[#allocation3 + $0x30] sm:$0xff] %vm2618, %v2583
        %2626 = vst.msk [vmem:[#allocation3 + $0x38] sm:$0xff] %vm2618, %v2585
        %2627 = vst.msk [vmem:[#allocation3 + $0x40] sm:$0xff] %vm2618, %v2587
        %2628 = vst.msk [vmem:[#allocation3 + $0x48] sm:$0xff] %vm2618, %v2589
        %2629 = vst.msk [vmem:[#allocation3 + $0x50] sm:$0xff] %vm2618, %v2591
        %2630 = vst.msk [vmem:[#allocation3 + $0x58] sm:$0xff] %vm2618, %v2593
        %2631 = vst.msk [vmem:[#allocation3 + $0x60] sm:$0xff] %vm2618, %v2595
        %2632 = vst.msk [vmem:[#allocation3 + $0x68] sm:$0xff] %vm2618, %v2597
        %2633 = vst.msk [vmem:[#allocation3 + $0x70] sm:$0xff] %vm2618, %v2599
        %2634 = vst.msk [vmem:[#allocation3 + $0x78] sm:$0xff] %vm2618, %v2601
        %2635 = vrot.lane.b32.xlu0 %v1837, 64
        %v2636 = vpop.permute.xlu0 %2635
        %2637 = vrot.lane.b32.xlu0 %v1838, 64
        %v2638 = vpop.permute.xlu0 %2637
        %2639 = vrot.lane.b32.xlu0 %v1839, 64
        %v2640 = vpop.permute.xlu0 %2639
        %2641 = vrot.lane.b32.xlu0 %v1840, 64
        %v2642 = vpop.permute.xlu0 %2641
        %2643 = vrot.lane.b32.xlu0 %v1841, 64
        %v2644 = vpop.permute.xlu0 %2643
        %2645 = vrot.lane.b32.xlu0 %v1842, 64
        %v2646 = vpop.permute.xlu0 %2645
        %2647 = vrot.lane.b32.xlu0 %v1843, 64
        %v2648 = vpop.permute.xlu0 %2647
        %2649 = vrot.lane.b32.xlu0 %v1844, 64
        %v2650 = vpop.permute.xlu0 %2649
        %2651 = vrot.lane.b32.xlu0 %v1845, 64
        %v2652 = vpop.permute.xlu0 %2651
        %2653 = vrot.lane.b32.xlu0 %v1846, 64
        %v2654 = vpop.permute.xlu0 %2653
        %2655 = vrot.lane.b32.xlu0 %v1847, 64
        %v2656 = vpop.permute.xlu0 %2655
        %2657 = vrot.lane.b32.xlu0 %v1848, 64
        %v2658 = vpop.permute.xlu0 %2657
        %2659 = vrot.lane.b32.xlu0 %v1849, 64
        %v2660 = vpop.permute.xlu0 %2659
        %2661 = vrot.lane.b32.xlu0 %v1850, 64
        %v2662 = vpop.permute.xlu0 %2661
        %2663 = vrot.lane.b32.xlu0 %v1851, 64
        %v2664 = vpop.permute.xlu0 %2663
        %2665 = vrot.lane.b32.xlu0 %v1852, 64
        %v2666 = vpop.permute.xlu0 %2665
        %v2668 = vsel %vm1861, %v2636, 0
        %v2671 = vsel %vm1861, %v2638, 0
        %v2674 = vsel %vm1861, %v2640, 0
        %v2677 = vsel %vm1861, %v2642, 0
        %v2680 = vsel %vm1861, %v2644, 0
        %v2683 = vsel %vm1861, %v2646, 0
        %v2686 = vsel %vm1861, %v2648, 0
        %v2689 = vsel %vm1861, %v2650, 0
        %v2692 = vsel %vm1861, %v2652, 0
        %v2695 = vsel %vm1861, %v2654, 0
        %v2698 = vsel %vm1861, %v2656, 0
        %v2701 = vsel %vm1861, %v2658, 0
        %v2704 = vsel %vm1861, %v2660, 0
        %v2707 = vsel %vm1861, %v2662, 0
        %v2710 = vsel %vm1861, %v2664, 0
        %v2713 = vsel %vm1861, %v2666, 0
        %2715 = vmatpush.bf16.xpose.msra.mxu0 %v2713
        %2716 = vmatpush.bf16.xpose.msra.mxu0 %v2710
        %2717 = vmatpush.bf16.xpose.msra.mxu0 %v2707
        %2718 = vmatpush.bf16.xpose.msra.mxu0 %v2704
        %2719 = vmatpush.bf16.xpose.msra.mxu0 %v2701
        %2720 = vmatpush.bf16.xpose.msra.mxu0 %v2698
        %2721 = vmatpush.bf16.xpose.msra.mxu0 %v2695
        %2722 = vmatpush.bf16.xpose.msra.mxu0 %v2692
        %2723 = vmatmul.bf16.gmra.mxu0 %v2668
        %v2724 = vpop.f32.mrf.mxu0
        %v2725 = vadd.f32 0.0, %v2724
        %v2726 = vpop.f32.mrf.mxu0
        %v2727 = vadd.f32 0.0, %v2726
        %2728 = vmatmul.bf16.gmra.mxu0 %v2671
        %v2729 = vpop.f32.mrf.mxu0
        %v2730 = vadd.f32 0.0, %v2729
        %v2731 = vpop.f32.mrf.mxu0
        %v2732 = vadd.f32 0.0, %v2731
        %2733 = vmatmul.bf16.gmra.mxu0 %v2674
        %v2734 = vpop.f32.mrf.mxu0
        %v2735 = vadd.f32 0.0, %v2734
        %v2736 = vpop.f32.mrf.mxu0
        %v2737 = vadd.f32 0.0, %v2736
        %2738 = vmatmul.bf16.gmra.mxu0 %v2677
        %v2739 = vpop.f32.mrf.mxu0
        %v2740 = vadd.f32 0.0, %v2739
        %v2741 = vpop.f32.mrf.mxu0
        %v2742 = vadd.f32 0.0, %v2741
        %2743 = vmatmul.bf16.gmra.mxu0 %v2680
        %v2744 = vpop.f32.mrf.mxu0
        %v2745 = vadd.f32 0.0, %v2744
        %v2746 = vpop.f32.mrf.mxu0
        %v2747 = vadd.f32 0.0, %v2746
        %2748 = vmatmul.bf16.gmra.mxu0 %v2683
        %v2749 = vpop.f32.mrf.mxu0
        %v2750 = vadd.f32 0.0, %v2749
        %v2751 = vpop.f32.mrf.mxu0
        %v2752 = vadd.f32 0.0, %v2751
        %2753 = vmatmul.bf16.gmra.mxu0 %v2686
        %v2754 = vpop.f32.mrf.mxu0
        %v2755 = vadd.f32 0.0, %v2754
        %v2756 = vpop.f32.mrf.mxu0
        %v2757 = vadd.f32 0.0, %v2756
        %2758 = vmatmul.bf16.gmra.mxu0 %v2689
        %v2759 = vpop.f32.mrf.mxu0
        %v2760 = vadd.f32 0.0, %v2759
        %v2761 = vpop.f32.mrf.mxu0
        %v2762 = vadd.f32 0.0, %v2761
        %2763 = vdwg.mxu0
        %2764 = vmax.xlane.f32.xlu0 %v2725
        %v2765 = vpop.xlane.xlu0 %2764
        %2766 = vmax.xlane.f32.xlu0 %v2727
        %v2767 = vpop.xlane.xlu0 %2766
        %2768 = vmax.xlane.f32.xlu0 %v2730
        %v2769 = vpop.xlane.xlu0 %2768
        %2770 = vmax.xlane.f32.xlu0 %v2732
        %v2771 = vpop.xlane.xlu0 %2770
        %2772 = vmax.xlane.f32.xlu0 %v2735
        %v2773 = vpop.xlane.xlu0 %2772
        %2774 = vmax.xlane.f32.xlu0 %v2737
        %v2775 = vpop.xlane.xlu0 %2774
        %2776 = vmax.xlane.f32.xlu0 %v2740
        %v2777 = vpop.xlane.xlu0 %2776
        %2778 = vmax.xlane.f32.xlu0 %v2742
        %v2779 = vpop.xlane.xlu0 %2778
        %2780 = vmax.xlane.f32.xlu0 %v2745
        %v2781 = vpop.xlane.xlu0 %2780
        %2782 = vmax.xlane.f32.xlu0 %v2747
        %v2783 = vpop.xlane.xlu0 %2782
        %2784 = vmax.xlane.f32.xlu0 %v2750
        %v2785 = vpop.xlane.xlu0 %2784
        %2786 = vmax.xlane.f32.xlu0 %v2752
        %v2787 = vpop.xlane.xlu0 %2786
        %2788 = vmax.xlane.f32.xlu0 %v2755
        %v2789 = vpop.xlane.xlu0 %2788
        %2790 = vmax.xlane.f32.xlu0 %v2757
        %v2791 = vpop.xlane.xlu0 %2790
        %2792 = vmax.xlane.f32.xlu0 %v2760
        %v2793 = vpop.xlane.xlu0 %2792
        %2794 = vmax.xlane.f32.xlu0 %v2762
        %v2795 = vpop.xlane.xlu0 %2794
        %v2796 = vsub.f32 %v2725, %v2765
        %v2797 = vsub.f32 %v2727, %v2767
        %v2798 = vsub.f32 %v2730, %v2769
        %v2799 = vsub.f32 %v2732, %v2771
        %v2800 = vsub.f32 %v2735, %v2773
        %v2801 = vsub.f32 %v2737, %v2775
        %v2802 = vsub.f32 %v2740, %v2777
        %v2803 = vsub.f32 %v2742, %v2779
        %v2804 = vsub.f32 %v2745, %v2781
        %v2805 = vsub.f32 %v2747, %v2783
        %v2806 = vsub.f32 %v2750, %v2785
        %v2807 = vsub.f32 %v2752, %v2787
        %v2808 = vsub.f32 %v2755, %v2789
        %v2809 = vsub.f32 %v2757, %v2791
        %v2810 = vsub.f32 %v2760, %v2793
        %v2811 = vsub.f32 %v2762, %v2795
        %v2812 = vmul.f32 %v2796, 1.442695
        %v2813 = vpow.pop %v2812
        %v2814 = vmul.f32 %v2797, 1.442695
        %v2815 = vpow.pop %v2814
        %v2816 = vmul.f32 %v2798, 1.442695
        %v2817 = vpow.pop %v2816
        %v2818 = vmul.f32 %v2799, 1.442695
        %v2819 = vpow.pop %v2818
        %v2820 = vmul.f32 %v2800, 1.442695
        %v2821 = vpow.pop %v2820
        %v2822 = vmul.f32 %v2801, 1.442695
        %v2823 = vpow.pop %v2822
        %v2824 = vmul.f32 %v2802, 1.442695
        %v2825 = vpow.pop %v2824
        %v2826 = vmul.f32 %v2803, 1.442695
        %v2827 = vpow.pop %v2826
        %v2828 = vmul.f32 %v2804, 1.442695
        %v2829 = vpow.pop %v2828
        %v2830 = vmul.f32 %v2805, 1.442695
        %v2831 = vpow.pop %v2830
        %v2832 = vmul.f32 %v2806, 1.442695
        %v2833 = vpow.pop %v2832
        %v2834 = vmul.f32 %v2807, 1.442695
        %v2835 = vpow.pop %v2834
        %v2836 = vmul.f32 %v2808, 1.442695
        %v2837 = vpow.pop %v2836
        %v2838 = vmul.f32 %v2809, 1.442695
        %v2839 = vpow.pop %v2838
        %v2840 = vmul.f32 %v2810, 1.442695
        %v2841 = vpow.pop %v2840
        %v2842 = vmul.f32 %v2811, 1.442695
        %v2843 = vpow.pop %v2842
        %v2844 = vpack.c.bf16 %v2815, %v2813
        %v2845 = vpack.c.bf16 %v2819, %v2817
        %v2846 = vpack.c.bf16 %v2823, %v2821
        %v2847 = vpack.c.bf16 %v2827, %v2825
        %v2848 = vpack.c.bf16 %v2831, %v2829
        %v2849 = vpack.c.bf16 %v2835, %v2833
        %v2850 = vpack.c.bf16 %v2839, %v2837
        %v2851 = vpack.c.bf16 %v2843, %v2841
        %2852 = vrot.lane.b32.xlu0 %v1853, 64
        %v2853 = vpop.permute.xlu0 %2852
        %2854 = vrot.lane.b32.xlu0 %v1854, 64
        %v2855 = vpop.permute.xlu0 %2854
        %2856 = vrot.lane.b32.xlu0 %v1855, 64
        %v2857 = vpop.permute.xlu0 %2856
        %2858 = vrot.lane.b32.xlu0 %v1856, 64
        %v2859 = vpop.permute.xlu0 %2858
        %2860 = vrot.lane.b32.xlu0 %v1857, 64
        %v2861 = vpop.permute.xlu0 %2860
        %2862 = vrot.lane.b32.xlu0 %v1858, 64
        %v2863 = vpop.permute.xlu0 %2862
        %2864 = vrot.lane.b32.xlu0 %v1859, 64
        %v2865 = vpop.permute.xlu0 %2864
        %2866 = vrot.lane.b32.xlu0 %v1860, 64
        %v2867 = vpop.permute.xlu0 %2866
        %2876 = vmatpush.bf16.msra.mxu0 %v2867
        %2877 = vmatpush.bf16.msra.mxu0 %v2865
        %2878 = vmatpush.bf16.msra.mxu0 %v2863
        %2879 = vmatpush.bf16.msra.mxu0 %v2861
        %2880 = vmatpush.bf16.msra.mxu0 %v2859
        %2881 = vmatpush.bf16.msra.mxu0 %v2857
        %2882 = vmatpush.bf16.msra.mxu0 %v2855
        %2883 = vmatpush.bf16.msra.mxu0 %v2853
        %2884 = vmatmul.bf16.gmra.mxu0 %v2844
        %v2885 = vpop.f32.mrf.mxu0
        %v2886 = vadd.f32 0.0, %v2885
        %v2887 = vpop.f32.mrf.mxu0
        %v2888 = vadd.f32 0.0, %v2887
        %2889 = vmatmul.bf16.gmra.mxu0 %v2845
        %v2890 = vpop.f32.mrf.mxu0
        %v2891 = vadd.f32 0.0, %v2890
        %v2892 = vpop.f32.mrf.mxu0
        %v2893 = vadd.f32 0.0, %v2892
        %2894 = vmatmul.bf16.gmra.mxu0 %v2846
        %v2895 = vpop.f32.mrf.mxu0
        %v2896 = vadd.f32 0.0, %v2895
        %v2897 = vpop.f32.mrf.mxu0
        %v2898 = vadd.f32 0.0, %v2897
        %2899 = vmatmul.bf16.gmra.mxu0 %v2847
        %v2900 = vpop.f32.mrf.mxu0
        %v2901 = vadd.f32 0.0, %v2900
        %v2902 = vpop.f32.mrf.mxu0
        %v2903 = vadd.f32 0.0, %v2902
        %2904 = vmatmul.bf16.gmra.mxu0 %v2848
        %v2905 = vpop.f32.mrf.mxu0
        %v2906 = vadd.f32 0.0, %v2905
        %v2907 = vpop.f32.mrf.mxu0
        %v2908 = vadd.f32 0.0, %v2907
        %2909 = vmatmul.bf16.gmra.mxu0 %v2849
        %v2910 = vpop.f32.mrf.mxu0
        %v2911 = vadd.f32 0.0, %v2910
        %v2912 = vpop.f32.mrf.mxu0
        %v2913 = vadd.f32 0.0, %v2912
        %2914 = vmatmul.bf16.gmra.mxu0 %v2850
        %v2915 = vpop.f32.mrf.mxu0
        %v2916 = vadd.f32 0.0, %v2915
        %v2917 = vpop.f32.mrf.mxu0
        %v2918 = vadd.f32 0.0, %v2917
        %2919 = vmatmul.bf16.gmra.mxu0 %v2851
        %v2920 = vpop.f32.mrf.mxu0
        %v2921 = vadd.f32 0.0, %v2920
        %v2922 = vpop.f32.mrf.mxu0
        %v2923 = vadd.f32 0.0, %v2922
        %2924 = vdwg.mxu0
        %2925 = vadd.xlane.f32.xlu0 %v2813
        %v2926 = vpop.xlane.xlu0 %2925
        %2927 = vadd.xlane.f32.xlu0 %v2815
        %v2928 = vpop.xlane.xlu0 %2927
        %2929 = vadd.xlane.f32.xlu0 %v2817
        %v2930 = vpop.xlane.xlu0 %2929
        %2931 = vadd.xlane.f32.xlu0 %v2819
        %v2932 = vpop.xlane.xlu0 %2931
        %2933 = vadd.xlane.f32.xlu0 %v2821
        %v2934 = vpop.xlane.xlu0 %2933
        %2935 = vadd.xlane.f32.xlu0 %v2823
        %v2936 = vpop.xlane.xlu0 %2935
        %2937 = vadd.xlane.f32.xlu0 %v2825
        %v2938 = vpop.xlane.xlu0 %2937
        %2939 = vadd.xlane.f32.xlu0 %v2827
        %v2940 = vpop.xlane.xlu0 %2939
        %2941 = vadd.xlane.f32.xlu0 %v2829
        %v2942 = vpop.xlane.xlu0 %2941
        %2943 = vadd.xlane.f32.xlu0 %v2831
        %v2944 = vpop.xlane.xlu0 %2943
        %2945 = vadd.xlane.f32.xlu0 %v2833
        %v2946 = vpop.xlane.xlu0 %2945
        %2947 = vadd.xlane.f32.xlu0 %v2835
        %v2948 = vpop.xlane.xlu0 %2947
        %2949 = vadd.xlane.f32.xlu0 %v2837
        %v2950 = vpop.xlane.xlu0 %2949
        %2951 = vadd.xlane.f32.xlu0 %v2839
        %v2952 = vpop.xlane.xlu0 %2951
        %2953 = vadd.xlane.f32.xlu0 %v2841
        %v2954 = vpop.xlane.xlu0 %2953
        %2955 = vadd.xlane.f32.xlu0 %v2843
        %v2956 = vpop.xlane.xlu0 %2955
        %v2957 = vrcp.pop %v2926
        %v2958 = vrcp.pop %v2928
        %v2959 = vrcp.pop %v2930
        %v2960 = vrcp.pop %v2932
        %v2961 = vrcp.pop %v2934
        %v2962 = vrcp.pop %v2936
        %v2963 = vrcp.pop %v2938
        %v2964 = vrcp.pop %v2940
        %v2965 = vrcp.pop %v2942
        %v2966 = vrcp.pop %v2944
        %v2967 = vrcp.pop %v2946
        %v2968 = vrcp.pop %v2948
        %v2969 = vrcp.pop %v2950
        %v2970 = vrcp.pop %v2952
        %v2971 = vrcp.pop %v2954
        %v2972 = vrcp.pop %v2956
        %v2973 = vmul.f32 %v2886, %v2957
        %v2974 = vmul.f32 %v2888, %v2958
        %v2975 = vmul.f32 %v2891, %v2959
        %v2976 = vmul.f32 %v2893, %v2960
        %v2977 = vmul.f32 %v2896, %v2961
        %v2978 = vmul.f32 %v2898, %v2962
        %v2979 = vmul.f32 %v2901, %v2963
        %v2980 = vmul.f32 %v2903, %v2964
        %v2981 = vmul.f32 %v2906, %v2965
        %v2982 = vmul.f32 %v2908, %v2966
        %v2983 = vmul.f32 %v2911, %v2967
        %v2984 = vmul.f32 %v2913, %v2968
        %v2985 = vmul.f32 %v2916, %v2969
        %v2986 = vmul.f32 %v2918, %v2970
        %v2987 = vmul.f32 %v2921, %v2971
        %v2988 = vmul.f32 %v2923, %v2972
        %3005 = vrot.lane.b32.xlu0 %v2973, 64
        %v3006 = vpop.permute.xlu0 %3005
        %3007 = vrot.lane.b32.xlu0 %v2974, 64
        %v3008 = vpop.permute.xlu0 %3007
        %3009 = vrot.lane.b32.xlu0 %v2975, 64
        %v3010 = vpop.permute.xlu0 %3009
        %3011 = vrot.lane.b32.xlu0 %v2976, 64
        %v3012 = vpop.permute.xlu0 %3011
        %3013 = vrot.lane.b32.xlu0 %v2977, 64
        %v3014 = vpop.permute.xlu0 %3013
        %3015 = vrot.lane.b32.xlu0 %v2978, 64
        %v3016 = vpop.permute.xlu0 %3015
        %3017 = vrot.lane.b32.xlu0 %v2979, 64
        %v3018 = vpop.permute.xlu0 %3017
        %3019 = vrot.lane.b32.xlu0 %v2980, 64
        %v3020 = vpop.permute.xlu0 %3019
        %3021 = vrot.lane.b32.xlu0 %v2981, 64
        %v3022 = vpop.permute.xlu0 %3021
        %3023 = vrot.lane.b32.xlu0 %v2982, 64
        %v3024 = vpop.permute.xlu0 %3023
        %3025 = vrot.lane.b32.xlu0 %v2983, 64
        %v3026 = vpop.permute.xlu0 %3025
        %3027 = vrot.lane.b32.xlu0 %v2984, 64
        %v3028 = vpop.permute.xlu0 %3027
        %3029 = vrot.lane.b32.xlu0 %v2985, 64
        %v3030 = vpop.permute.xlu0 %3029
        %3031 = vrot.lane.b32.xlu0 %v2986, 64
        %v3032 = vpop.permute.xlu0 %3031
        %3033 = vrot.lane.b32.xlu0 %v2987, 64
        %v3034 = vpop.permute.xlu0 %3033
        %3035 = vrot.lane.b32.xlu0 %v2988, 64
        %v3036 = vpop.permute.xlu0 %3035
        %vm3053 = vcmask 785920
        %3054 = vst.msk [vmem:[#allocation3] sm:$0xff] %vm3053, %v3006
        %3055 = vst.msk [vmem:[#allocation3 + $0x8] sm:$0xff] %vm3053, %v3008
        %3056 = vst.msk [vmem:[#allocation3 + $0x10] sm:$0xff] %vm3053, %v3010
        %3057 = vst.msk [vmem:[#allocation3 + $0x18] sm:$0xff] %vm3053, %v3012
        %3058 = vst.msk [vmem:[#allocation3 + $0x20] sm:$0xff] %vm3053, %v3014
        %3059 = vst.msk [vmem:[#allocation3 + $0x28] sm:$0xff] %vm3053, %v3016
        %3060 = vst.msk [vmem:[#allocation3 + $0x30] sm:$0xff] %vm3053, %v3018
        %3061 = vst.msk [vmem:[#allocation3 + $0x38] sm:$0xff] %vm3053, %v3020
        %3062 = vst.msk [vmem:[#allocation3 + $0x40] sm:$0xff] %vm3053, %v3022
        %3063 = vst.msk [vmem:[#allocation3 + $0x48] sm:$0xff] %vm3053, %v3024
        %3064 = vst.msk [vmem:[#allocation3 + $0x50] sm:$0xff] %vm3053, %v3026
        %3065 = vst.msk [vmem:[#allocation3 + $0x58] sm:$0xff] %vm3053, %v3028
        %3066 = vst.msk [vmem:[#allocation3 + $0x60] sm:$0xff] %vm3053, %v3030
        %3067 = vst.msk [vmem:[#allocation3 + $0x68] sm:$0xff] %vm3053, %v3032
        %3068 = vst.msk [vmem:[#allocation3 + $0x70] sm:$0xff] %vm3053, %v3034
        %3069 = vst.msk [vmem:[#allocation3 + $0x78] sm:$0xff] %vm3053, %v3036
        %3070 = vrot.lane.b32.xlu0 %v1837, 32
        %v3071 = vpop.permute.xlu0 %3070
        %3072 = vrot.lane.b32.xlu0 %v1838, 32
        %v3073 = vpop.permute.xlu0 %3072
        %3074 = vrot.lane.b32.xlu0 %v1839, 32
        %v3075 = vpop.permute.xlu0 %3074
        %3076 = vrot.lane.b32.xlu0 %v1840, 32
        %v3077 = vpop.permute.xlu0 %3076
        %3078 = vrot.lane.b32.xlu0 %v1841, 32
        %v3079 = vpop.permute.xlu0 %3078
        %3080 = vrot.lane.b32.xlu0 %v1842, 32
        %v3081 = vpop.permute.xlu0 %3080
        %3082 = vrot.lane.b32.xlu0 %v1843, 32
        %v3083 = vpop.permute.xlu0 %3082
        %3084 = vrot.lane.b32.xlu0 %v1844, 32
        %v3085 = vpop.permute.xlu0 %3084
        %3086 = vrot.lane.b32.xlu0 %v1845, 32
        %v3087 = vpop.permute.xlu0 %3086
        %3088 = vrot.lane.b32.xlu0 %v1846, 32
        %v3089 = vpop.permute.xlu0 %3088
        %3090 = vrot.lane.b32.xlu0 %v1847, 32
        %v3091 = vpop.permute.xlu0 %3090
        %3092 = vrot.lane.b32.xlu0 %v1848, 32
        %v3093 = vpop.permute.xlu0 %3092
        %3094 = vrot.lane.b32.xlu0 %v1849, 32
        %v3095 = vpop.permute.xlu0 %3094
        %3096 = vrot.lane.b32.xlu0 %v1850, 32
        %v3097 = vpop.permute.xlu0 %3096
        %3098 = vrot.lane.b32.xlu0 %v1851, 32
        %v3099 = vpop.permute.xlu0 %3098
        %3100 = vrot.lane.b32.xlu0 %v1852, 32
        %v3101 = vpop.permute.xlu0 %3100
        %v3103 = vsel %vm1861, %v3071, 0
        %v3106 = vsel %vm1861, %v3073, 0
        %v3109 = vsel %vm1861, %v3075, 0
        %v3112 = vsel %vm1861, %v3077, 0
        %v3115 = vsel %vm1861, %v3079, 0
        %v3118 = vsel %vm1861, %v3081, 0
        %v3121 = vsel %vm1861, %v3083, 0
        %v3124 = vsel %vm1861, %v3085, 0
        %v3127 = vsel %vm1861, %v3087, 0
        %v3130 = vsel %vm1861, %v3089, 0
        %v3133 = vsel %vm1861, %v3091, 0
        %v3136 = vsel %vm1861, %v3093, 0
        %v3139 = vsel %vm1861, %v3095, 0
        %v3142 = vsel %vm1861, %v3097, 0
        %v3145 = vsel %vm1861, %v3099, 0
        %v3148 = vsel %vm1861, %v3101, 0
        %3150 = vmatpush.bf16.xpose.msra.mxu0 %v3148
        %3151 = vmatpush.bf16.xpose.msra.mxu0 %v3145
        %3152 = vmatpush.bf16.xpose.msra.mxu0 %v3142
        %3153 = vmatpush.bf16.xpose.msra.mxu0 %v3139
        %3154 = vmatpush.bf16.xpose.msra.mxu0 %v3136
        %3155 = vmatpush.bf16.xpose.msra.mxu0 %v3133
        %3156 = vmatpush.bf16.xpose.msra.mxu0 %v3130
        %3157 = vmatpush.bf16.xpose.msra.mxu0 %v3127
        %3158 = vmatmul.bf16.gmra.mxu0 %v3103
        %v3159 = vpop.f32.mrf.mxu0
        %v3160 = vadd.f32 0.0, %v3159
        %v3161 = vpop.f32.mrf.mxu0
        %v3162 = vadd.f32 0.0, %v3161
        %3163 = vmatmul.bf16.gmra.mxu0 %v3106
        %v3164 = vpop.f32.mrf.mxu0
        %v3165 = vadd.f32 0.0, %v3164
        %v3166 = vpop.f32.mrf.mxu0
        %v3167 = vadd.f32 0.0, %v3166
        %3168 = vmatmul.bf16.gmra.mxu0 %v3109
        %v3169 = vpop.f32.mrf.mxu0
        %v3170 = vadd.f32 0.0, %v3169
        %v3171 = vpop.f32.mrf.mxu0
        %v3172 = vadd.f32 0.0, %v3171
        %3173 = vmatmul.bf16.gmra.mxu0 %v3112
        %v3174 = vpop.f32.mrf.mxu0
        %v3175 = vadd.f32 0.0, %v3174
        %v3176 = vpop.f32.mrf.mxu0
        %v3177 = vadd.f32 0.0, %v3176
        %3178 = vmatmul.bf16.gmra.mxu0 %v3115
        %v3179 = vpop.f32.mrf.mxu0
        %v3180 = vadd.f32 0.0, %v3179
        %v3181 = vpop.f32.mrf.mxu0
        %v3182 = vadd.f32 0.0, %v3181
        %3183 = vmatmul.bf16.gmra.mxu0 %v3118
        %v3184 = vpop.f32.mrf.mxu0
        %v3185 = vadd.f32 0.0, %v3184
        %v3186 = vpop.f32.mrf.mxu0
        %v3187 = vadd.f32 0.0, %v3186
        %3188 = vmatmul.bf16.gmra.mxu0 %v3121
        %v3189 = vpop.f32.mrf.mxu0
        %v3190 = vadd.f32 0.0, %v3189
        %v3191 = vpop.f32.mrf.mxu0
        %v3192 = vadd.f32 0.0, %v3191
        %3193 = vmatmul.bf16.gmra.mxu0 %v3124
        %v3194 = vpop.f32.mrf.mxu0
        %v3195 = vadd.f32 0.0, %v3194
        %v3196 = vpop.f32.mrf.mxu0
        %v3197 = vadd.f32 0.0, %v3196
        %3198 = vdwg.mxu0
        %3199 = vmax.xlane.f32.xlu0 %v3160
        %v3200 = vpop.xlane.xlu0 %3199
        %3201 = vmax.xlane.f32.xlu0 %v3162
        %v3202 = vpop.xlane.xlu0 %3201
        %3203 = vmax.xlane.f32.xlu0 %v3165
        %v3204 = vpop.xlane.xlu0 %3203
        %3205 = vmax.xlane.f32.xlu0 %v3167
        %v3206 = vpop.xlane.xlu0 %3205
        %3207 = vmax.xlane.f32.xlu0 %v3170
        %v3208 = vpop.xlane.xlu0 %3207
        %3209 = vmax.xlane.f32.xlu0 %v3172
        %v3210 = vpop.xlane.xlu0 %3209
        %3211 = vmax.xlane.f32.xlu0 %v3175
        %v3212 = vpop.xlane.xlu0 %3211
        %3213 = vmax.xlane.f32.xlu0 %v3177
        %v3214 = vpop.xlane.xlu0 %3213
        %3215 = vmax.xlane.f32.xlu0 %v3180
        %v3216 = vpop.xlane.xlu0 %3215
        %3217 = vmax.xlane.f32.xlu0 %v3182
        %v3218 = vpop.xlane.xlu0 %3217
        %3219 = vmax.xlane.f32.xlu0 %v3185
        %v3220 = vpop.xlane.xlu0 %3219
        %3221 = vmax.xlane.f32.xlu0 %v3187
        %v3222 = vpop.xlane.xlu0 %3221
        %3223 = vmax.xlane.f32.xlu0 %v3190
        %v3224 = vpop.xlane.xlu0 %3223
        %3225 = vmax.xlane.f32.xlu0 %v3192
        %v3226 = vpop.xlane.xlu0 %3225
        %3227 = vmax.xlane.f32.xlu0 %v3195
        %v3228 = vpop.xlane.xlu0 %3227
        %3229 = vmax.xlane.f32.xlu0 %v3197
        %v3230 = vpop.xlane.xlu0 %3229
        %v3231 = vsub.f32 %v3160, %v3200
        %v3232 = vsub.f32 %v3162, %v3202
        %v3233 = vsub.f32 %v3165, %v3204
        %v3234 = vsub.f32 %v3167, %v3206
        %v3235 = vsub.f32 %v3170, %v3208
        %v3236 = vsub.f32 %v3172, %v3210
        %v3237 = vsub.f32 %v3175, %v3212
        %v3238 = vsub.f32 %v3177, %v3214
        %v3239 = vsub.f32 %v3180, %v3216
        %v3240 = vsub.f32 %v3182, %v3218
        %v3241 = vsub.f32 %v3185, %v3220
        %v3242 = vsub.f32 %v3187, %v3222
        %v3243 = vsub.f32 %v3190, %v3224
        %v3244 = vsub.f32 %v3192, %v3226
        %v3245 = vsub.f32 %v3195, %v3228
        %v3246 = vsub.f32 %v3197, %v3230
        %v3247 = vmul.f32 %v3231, 1.442695
        %v3248 = vpow.pop %v3247
        %v3249 = vmul.f32 %v3232, 1.442695
        %v3250 = vpow.pop %v3249
        %v3251 = vmul.f32 %v3233, 1.442695
        %v3252 = vpow.pop %v3251
        %v3253 = vmul.f32 %v3234, 1.442695
        %v3254 = vpow.pop %v3253
        %v3255 = vmul.f32 %v3235, 1.442695
        %v3256 = vpow.pop %v3255
        %v3257 = vmul.f32 %v3236, 1.442695
        %v3258 = vpow.pop %v3257
        %v3259 = vmul.f32 %v3237, 1.442695
        %v3260 = vpow.pop %v3259
        %v3261 = vmul.f32 %v3238, 1.442695
        %v3262 = vpow.pop %v3261
        %v3263 = vmul.f32 %v3239, 1.442695
        %v3264 = vpow.pop %v3263
        %v3265 = vmul.f32 %v3240, 1.442695
        %v3266 = vpow.pop %v3265
        %v3267 = vmul.f32 %v3241, 1.442695
        %v3268 = vpow.pop %v3267
        %v3269 = vmul.f32 %v3242, 1.442695
        %v3270 = vpow.pop %v3269
        %v3271 = vmul.f32 %v3243, 1.442695
        %v3272 = vpow.pop %v3271
        %v3273 = vmul.f32 %v3244, 1.442695
        %v3274 = vpow.pop %v3273
        %v3275 = vmul.f32 %v3245, 1.442695
        %v3276 = vpow.pop %v3275
        %v3277 = vmul.f32 %v3246, 1.442695
        %v3278 = vpow.pop %v3277
        %v3279 = vpack.c.bf16 %v3250, %v3248
        %v3280 = vpack.c.bf16 %v3254, %v3252
        %v3281 = vpack.c.bf16 %v3258, %v3256
        %v3282 = vpack.c.bf16 %v3262, %v3260
        %v3283 = vpack.c.bf16 %v3266, %v3264
        %v3284 = vpack.c.bf16 %v3270, %v3268
        %v3285 = vpack.c.bf16 %v3274, %v3272
        %v3286 = vpack.c.bf16 %v3278, %v3276
        %3287 = vrot.lane.b32.xlu0 %v1853, 32
        %v3288 = vpop.permute.xlu0 %3287
        %3289 = vrot.lane.b32.xlu0 %v1854, 32
        %v3290 = vpop.permute.xlu0 %3289
        %3291 = vrot.lane.b32.xlu0 %v1855, 32
        %v3292 = vpop.permute.xlu0 %3291
        %3293 = vrot.lane.b32.xlu0 %v1856, 32
        %v3294 = vpop.permute.xlu0 %3293
        %3295 = vrot.lane.b32.xlu0 %v1857, 32
        %v3296 = vpop.permute.xlu0 %3295
        %3297 = vrot.lane.b32.xlu0 %v1858, 32
        %v3298 = vpop.permute.xlu0 %3297
        %3299 = vrot.lane.b32.xlu0 %v1859, 32
        %v3300 = vpop.permute.xlu0 %3299
        %3301 = vrot.lane.b32.xlu0 %v1860, 32
        %v3302 = vpop.permute.xlu0 %3301
        %3311 = vmatpush.bf16.msra.mxu0 %v3302
        %3312 = vmatpush.bf16.msra.mxu0 %v3300
        %3313 = vmatpush.bf16.msra.mxu0 %v3298
        %3314 = vmatpush.bf16.msra.mxu0 %v3296
        %3315 = vmatpush.bf16.msra.mxu0 %v3294
        %3316 = vmatpush.bf16.msra.mxu0 %v3292
        %3317 = vmatpush.bf16.msra.mxu0 %v3290
        %3318 = vmatpush.bf16.msra.mxu0 %v3288
        %3319 = vmatmul.bf16.gmra.mxu0 %v3279
        %v3320 = vpop.f32.mrf.mxu0
        %v3321 = vadd.f32 0.0, %v3320
        %v3322 = vpop.f32.mrf.mxu0
        %v3323 = vadd.f32 0.0, %v3322
        %3324 = vmatmul.bf16.gmra.mxu0 %v3280
        %v3325 = vpop.f32.mrf.mxu0
        %v3326 = vadd.f32 0.0, %v3325
        %v3327 = vpop.f32.mrf.mxu0
        %v3328 = vadd.f32 0.0, %v3327
        %3329 = vmatmul.bf16.gmra.mxu0 %v3281
        %v3330 = vpop.f32.mrf.mxu0
        %v3331 = vadd.f32 0.0, %v3330
        %v3332 = vpop.f32.mrf.mxu0
        %v3333 = vadd.f32 0.0, %v3332
        %3334 = vmatmul.bf16.gmra.mxu0 %v3282
        %v3335 = vpop.f32.mrf.mxu0
        %v3336 = vadd.f32 0.0, %v3335
        %v3337 = vpop.f32.mrf.mxu0
        %v3338 = vadd.f32 0.0, %v3337
        %3339 = vmatmul.bf16.gmra.mxu0 %v3283
        %v3340 = vpop.f32.mrf.mxu0
        %v3341 = vadd.f32 0.0, %v3340
        %v3342 = vpop.f32.mrf.mxu0
        %v3343 = vadd.f32 0.0, %v3342
        %3344 = vmatmul.bf16.gmra.mxu0 %v3284
        %v3345 = vpop.f32.mrf.mxu0
        %v3346 = vadd.f32 0.0, %v3345
        %v3347 = vpop.f32.mrf.mxu0
        %v3348 = vadd.f32 0.0, %v3347
        %3349 = vmatmul.bf16.gmra.mxu0 %v3285
        %v3350 = vpop.f32.mrf.mxu0
        %v3351 = vadd.f32 0.0, %v3350
        %v3352 = vpop.f32.mrf.mxu0
        %v3353 = vadd.f32 0.0, %v3352
        %3354 = vmatmul.bf16.gmra.mxu0 %v3286
        %v3355 = vpop.f32.mrf.mxu0
        %v3356 = vadd.f32 0.0, %v3355
        %v3357 = vpop.f32.mrf.mxu0
        %v3358 = vadd.f32 0.0, %v3357
        %3359 = vdwg.mxu0
        %3360 = vadd.xlane.f32.xlu0 %v3248
        %v3361 = vpop.xlane.xlu0 %3360
        %3362 = vadd.xlane.f32.xlu0 %v3250
        %v3363 = vpop.xlane.xlu0 %3362
        %3364 = vadd.xlane.f32.xlu0 %v3252
        %v3365 = vpop.xlane.xlu0 %3364
        %3366 = vadd.xlane.f32.xlu0 %v3254
        %v3367 = vpop.xlane.xlu0 %3366
        %3368 = vadd.xlane.f32.xlu0 %v3256
        %v3369 = vpop.xlane.xlu0 %3368
        %3370 = vadd.xlane.f32.xlu0 %v3258
        %v3371 = vpop.xlane.xlu0 %3370
        %3372 = vadd.xlane.f32.xlu0 %v3260
        %v3373 = vpop.xlane.xlu0 %3372
        %3374 = vadd.xlane.f32.xlu0 %v3262
        %v3375 = vpop.xlane.xlu0 %3374
        %3376 = vadd.xlane.f32.xlu0 %v3264
        %v3377 = vpop.xlane.xlu0 %3376
        %3378 = vadd.xlane.f32.xlu0 %v3266
        %v3379 = vpop.xlane.xlu0 %3378
        %3380 = vadd.xlane.f32.xlu0 %v3268
        %v3381 = vpop.xlane.xlu0 %3380
        %3382 = vadd.xlane.f32.xlu0 %v3270
        %v3383 = vpop.xlane.xlu0 %3382
        %3384 = vadd.xlane.f32.xlu0 %v3272
        %v3385 = vpop.xlane.xlu0 %3384
        %3386 = vadd.xlane.f32.xlu0 %v3274
        %v3387 = vpop.xlane.xlu0 %3386
        %3388 = vadd.xlane.f32.xlu0 %v3276
        %v3389 = vpop.xlane.xlu0 %3388
        %3390 = vadd.xlane.f32.xlu0 %v3278
        %v3391 = vpop.xlane.xlu0 %3390
        %v3392 = vrcp.pop %v3361
        %v3393 = vrcp.pop %v3363
        %v3394 = vrcp.pop %v3365
        %v3395 = vrcp.pop %v3367
        %v3396 = vrcp.pop %v3369
        %v3397 = vrcp.pop %v3371
        %v3398 = vrcp.pop %v3373
        %v3399 = vrcp.pop %v3375
        %v3400 = vrcp.pop %v3377
        %v3401 = vrcp.pop %v3379
        %v3402 = vrcp.pop %v3381
        %v3403 = vrcp.pop %v3383
        %v3404 = vrcp.pop %v3385
        %v3405 = vrcp.pop %v3387
        %v3406 = vrcp.pop %v3389
        %v3407 = vrcp.pop %v3391
        %v3408 = vmul.f32 %v3321, %v3392
        %v3409 = vmul.f32 %v3323, %v3393
        %v3410 = vmul.f32 %v3326, %v3394
        %v3411 = vmul.f32 %v3328, %v3395
        %v3412 = vmul.f32 %v3331, %v3396
        %v3413 = vmul.f32 %v3333, %v3397
        %v3414 = vmul.f32 %v3336, %v3398
        %v3415 = vmul.f32 %v3338, %v3399
        %v3416 = vmul.f32 %v3341, %v3400
        %v3417 = vmul.f32 %v3343, %v3401
        %v3418 = vmul.f32 %v3346, %v3402
        %v3419 = vmul.f32 %v3348, %v3403
        %v3420 = vmul.f32 %v3351, %v3404
        %v3421 = vmul.f32 %v3353, %v3405
        %v3422 = vmul.f32 %v3356, %v3406
        %v3423 = vmul.f32 %v3358, %v3407
        %3440 = vrot.lane.b32.xlu0 %v3408, 96
        %v3441 = vpop.permute.xlu0 %3440
        %3442 = vrot.lane.b32.xlu0 %v3409, 96
        %v3443 = vpop.permute.xlu0 %3442
        %3444 = vrot.lane.b32.xlu0 %v3410, 96
        %v3445 = vpop.permute.xlu0 %3444
        %3446 = vrot.lane.b32.xlu0 %v3411, 96
        %v3447 = vpop.permute.xlu0 %3446
        %3448 = vrot.lane.b32.xlu0 %v3412, 96
        %v3449 = vpop.permute.xlu0 %3448
        %3450 = vrot.lane.b32.xlu0 %v3413, 96
        %v3451 = vpop.permute.xlu0 %3450
        %3452 = vrot.lane.b32.xlu0 %v3414, 96
        %v3453 = vpop.permute.xlu0 %3452
        %3454 = vrot.lane.b32.xlu0 %v3415, 96
        %v3455 = vpop.permute.xlu0 %3454
        %3456 = vrot.lane.b32.xlu0 %v3416, 96
        %v3457 = vpop.permute.xlu0 %3456
        %3458 = vrot.lane.b32.xlu0 %v3417, 96
        %v3459 = vpop.permute.xlu0 %3458
        %3460 = vrot.lane.b32.xlu0 %v3418, 96
        %v3461 = vpop.permute.xlu0 %3460
        %3462 = vrot.lane.b32.xlu0 %v3419, 96
        %v3463 = vpop.permute.xlu0 %3462
        %3464 = vrot.lane.b32.xlu0 %v3420, 96
        %v3465 = vpop.permute.xlu0 %3464
        %3466 = vrot.lane.b32.xlu0 %v3421, 96
        %v3467 = vpop.permute.xlu0 %3466
        %3468 = vrot.lane.b32.xlu0 %v3422, 96
        %v3469 = vpop.permute.xlu0 %3468
        %3470 = vrot.lane.b32.xlu0 %v3423, 96
        %v3471 = vpop.permute.xlu0 %3470
        %vm3488 = vcmask 1048320
        %3489 = vst.msk [vmem:[#allocation3] sm:$0xff] %vm3488, %v3441
        %3490 = vst.msk [vmem:[#allocation3 + $0x8] sm:$0xff] %vm3488, %v3443
        %3491 = vst.msk [vmem:[#allocation3 + $0x10] sm:$0xff] %vm3488, %v3445
        %3492 = vst.msk [vmem:[#allocation3 + $0x18] sm:$0xff] %vm3488, %v3447
        %3493 = vst.msk [vmem:[#allocation3 + $0x20] sm:$0xff] %vm3488, %v3449
        %3494 = vst.msk [vmem:[#allocation3 + $0x28] sm:$0xff] %vm3488, %v3451
        %3495 = vst.msk [vmem:[#allocation3 + $0x30] sm:$0xff] %vm3488, %v3453
        %3496 = vst.msk [vmem:[#allocation3 + $0x38] sm:$0xff] %vm3488, %v3455
        %3497 = vst.msk [vmem:[#allocation3 + $0x40] sm:$0xff] %vm3488, %v3457
        %3498 = vst.msk [vmem:[#allocation3 + $0x48] sm:$0xff] %vm3488, %v3459
        %3499 = vst.msk [vmem:[#allocation3 + $0x50] sm:$0xff] %vm3488, %v3461
        %3500 = vst.msk [vmem:[#allocation3 + $0x58] sm:$0xff] %vm3488, %v3463
        %3501 = vst.msk [vmem:[#allocation3 + $0x60] sm:$0xff] %vm3488, %v3465
        %3502 = vst.msk [vmem:[#allocation3 + $0x68] sm:$0xff] %vm3488, %v3467
        %3503 = vst.msk [vmem:[#allocation3 + $0x70] sm:$0xff] %vm3488, %v3469
        %3504 = vst.msk [vmem:[#allocation3 + $0x78] sm:$0xff] %vm3488, %v3471
        %v3505 = vld [vmem:[#allocation3] sm:$0xff]
        %v3506 = vld [vmem:[#allocation3 + $0x8] sm:$0xff]
        %v3507 = vld [vmem:[#allocation3 + $0x10] sm:$0xff]
        %v3508 = vld [vmem:[#allocation3 + $0x18] sm:$0xff]
        %v3509 = vld [vmem:[#allocation3 + $0x20] sm:$0xff]
        %v3510 = vld [vmem:[#allocation3 + $0x28] sm:$0xff]
        %v3511 = vld [vmem:[#allocation3 + $0x30] sm:$0xff]
        %v3512 = vld [vmem:[#allocation3 + $0x38] sm:$0xff]
        %v3513 = vld [vmem:[#allocation3 + $0x40] sm:$0xff]
        %v3514 = vld [vmem:[#allocation3 + $0x48] sm:$0xff]
        %v3515 = vld [vmem:[#allocation3 + $0x50] sm:$0xff]
        %v3516 = vld [vmem:[#allocation3 + $0x58] sm:$0xff]
        %v3517 = vld [vmem:[#allocation3 + $0x60] sm:$0xff]
        %v3518 = vld [vmem:[#allocation3 + $0x68] sm:$0xff]
        %v3519 = vld [vmem:[#allocation3 + $0x70] sm:$0xff]
        %v3520 = vld [vmem:[#allocation3 + $0x78] sm:$0xff]
        %v3521 = vpack.c.bf16 %v3506, %v3505
        %v3522 = vpack.c.bf16 %v3508, %v3507
        %v3523 = vpack.c.bf16 %v3510, %v3509
        %v3524 = vpack.c.bf16 %v3512, %v3511
        %v3525 = vpack.c.bf16 %v3514, %v3513
        %v3526 = vpack.c.bf16 %v3516, %v3515
        %v3527 = vpack.c.bf16 %v3518, %v3517
        %v3528 = vpack.c.bf16 %v3520, %v3519
        %s3529 = smul.u32 %s45, 16
        %s3530 = smul.addr %s3529, 4
        %s3531 = scalar_lea.vmem [#allocation15], %s3530
        %v3532 = vld [vmem:[%s3531] sm:$0xf]
        %v3533 = vld [vmem:[%s3531 + $0x4] sm:$0xf]
        %v3534 = vld [vmem:[%s3531 + $0x8] sm:$0xf]
        %v3535 = vld [vmem:[%s3531 + $0xc] sm:$0xf]
        %v3536 = vld [vmem:[%s3531 + $0x10] sm:$0xf]
        %v3537 = vld [vmem:[%s3531 + $0x14] sm:$0xf]
        %v3538 = vld [vmem:[%s3531 + $0x18] sm:$0xf]
        %v3539 = vld [vmem:[%s3531 + $0x1c] sm:$0xf]
        %v3540 = vld [vmem:[%s3531 + $0x20] sm:$0xf]
        %v3541 = vld [vmem:[%s3531 + $0x24] sm:$0xf]
        %v3542 = vld [vmem:[%s3531 + $0x28] sm:$0xf]
        %v3543 = vld [vmem:[%s3531 + $0x2c] sm:$0xf]
        %v3544 = vld [vmem:[%s3531 + $0x30] sm:$0xf]
        %v3545 = vld [vmem:[%s3531 + $0x34] sm:$0xf]
        %v3546 = vld [vmem:[%s3531 + $0x38] sm:$0xf]
        %v3547 = vld [vmem:[%s3531 + $0x3c] sm:$0xf]
        %v3564 = vunpack.c.l.b16 %v3532
        %v3565 = vunpack.c.l.b16 %v3533
        %v3566 = vunpack.c.l.b16 %v3534
        %v3567 = vunpack.c.l.b16 %v3535
        %v3568 = vunpack.c.l.b16 %v3536
        %v3569 = vunpack.c.l.b16 %v3537
        %v3570 = vunpack.c.l.b16 %v3538
        %v3571 = vunpack.c.l.b16 %v3539
        %v3572 = vunpack.c.l.b16 %v3540
        %v3573 = vunpack.c.l.b16 %v3541
        %v3574 = vunpack.c.l.b16 %v3542
        %v3575 = vunpack.c.l.b16 %v3543
        %v3576 = vunpack.c.l.b16 %v3544
        %v3577 = vunpack.c.l.b16 %v3545
        %v3578 = vunpack.c.l.b16 %v3546
        %v3579 = vunpack.c.l.b16 %v3547
        %v3580 = vpack.c.b16 %v3565, %v3564
        %v3581 = vpack.c.b16 %v3567, %v3566
        %v3582 = vpack.c.b16 %v3569, %v3568
        %v3583 = vpack.c.b16 %v3571, %v3570
        %v3584 = vpack.c.b16 %v3573, %v3572
        %v3585 = vpack.c.b16 %v3575, %v3574
        %v3586 = vpack.c.b16 %v3577, %v3576
        %v3587 = vpack.c.b16 %v3579, %v3578
        %3596 = vmatpush.bf16.msra.mxu0 %v3587
        %3597 = vmatpush.bf16.msra.mxu0 %v3586
        %3598 = vmatpush.bf16.msra.mxu0 %v3585
        %3599 = vmatpush.bf16.msra.mxu0 %v3584
        %3600 = vmatpush.bf16.msra.mxu0 %v3583
        %3601 = vmatpush.bf16.msra.mxu0 %v3582
        %3602 = vmatpush.bf16.msra.mxu0 %v3581
        %3603 = vmatpush.bf16.msra.mxu0 %v3580
        %3604 = vmatmul.bf16.gmra.mxu0 %v3521
        %v3605 = vpop.f32.mrf.mxu0
        %v3606 = vadd.f32 0.0, %v3605
        %v3607 = vpop.f32.mrf.mxu0
        %v3608 = vadd.f32 0.0, %v3607
        %3609 = vmatmul.bf16.gmra.mxu0 %v3522
        %v3610 = vpop.f32.mrf.mxu0
        %v3611 = vadd.f32 0.0, %v3610
        %v3612 = vpop.f32.mrf.mxu0
        %v3613 = vadd.f32 0.0, %v3612
        %3614 = vmatmul.bf16.gmra.mxu0 %v3523
        %v3615 = vpop.f32.mrf.mxu0
        %v3616 = vadd.f32 0.0, %v3615
        %v3617 = vpop.f32.mrf.mxu0
        %v3618 = vadd.f32 0.0, %v3617
        %3619 = vmatmul.bf16.gmra.mxu0 %v3524
        %v3620 = vpop.f32.mrf.mxu0
        %v3621 = vadd.f32 0.0, %v3620
        %v3622 = vpop.f32.mrf.mxu0
        %v3623 = vadd.f32 0.0, %v3622
        %3624 = vmatmul.bf16.gmra.mxu0 %v3525
        %v3625 = vpop.f32.mrf.mxu0
        %v3626 = vadd.f32 0.0, %v3625
        %v3627 = vpop.f32.mrf.mxu0
        %v3628 = vadd.f32 0.0, %v3627
        %3629 = vmatmul.bf16.gmra.mxu0 %v3526
        %v3630 = vpop.f32.mrf.mxu0
        %v3631 = vadd.f32 0.0, %v3630
        %v3632 = vpop.f32.mrf.mxu0
        %v3633 = vadd.f32 0.0, %v3632
        %3634 = vmatmul.bf16.gmra.mxu0 %v3527
        %v3635 = vpop.f32.mrf.mxu0
        %v3636 = vadd.f32 0.0, %v3635
        %v3637 = vpop.f32.mrf.mxu0
        %v3638 = vadd.f32 0.0, %v3637
        %3639 = vmatmul.bf16.gmra.mxu0 %v3528
        %v3640 = vpop.f32.mrf.mxu0
        %v3641 = vadd.f32 0.0, %v3640
        %v3642 = vpop.f32.mrf.mxu0
        %v3643 = vadd.f32 0.0, %v3642
        %3644 = vdwg.mxu0
        %v3645 = vadd.f32 %v798, %v3606
        %v3646 = vadd.f32 %v799, %v3608
        %v3647 = vadd.f32 %v800, %v3611
        %v3648 = vadd.f32 %v801, %v3613
        %v3649 = vadd.f32 %v802, %v3616
        %v3650 = vadd.f32 %v803, %v3618
        %v3651 = vadd.f32 %v804, %v3621
        %v3652 = vadd.f32 %v805, %v3623
        %v3653 = vadd.f32 %v806, %v3626
        %v3654 = vadd.f32 %v807, %v3628
        %v3655 = vadd.f32 %v808, %v3631
        %v3656 = vadd.f32 %v809, %v3633
        %v3657 = vadd.f32 %v810, %v3636
        %v3658 = vadd.f32 %v811, %v3638
        %v3659 = vadd.f32 %v812, %v3641
        %v3660 = vadd.f32 %v813, %v3643
        %s3661 = scalar_lea.vmem [#allocation16], %s45
        %v3662 = vld [vmem:[%s3661] sm:$0x1]
        %v3664 = vperm.slane %v3662, 0
        %v3666 = vadd.f32 %v3645, %v3664
        %v3667 = vadd.f32 %v3646, %v3664
        %v3668 = vadd.f32 %v3647, %v3664
        %v3669 = vadd.f32 %v3648, %v3664
        %v3670 = vadd.f32 %v3649, %v3664
        %v3671 = vadd.f32 %v3650, %v3664
        %v3672 = vadd.f32 %v3651, %v3664
        %v3673 = vadd.f32 %v3652, %v3664
        %v3674 = vadd.f32 %v3653, %v3664
        %v3675 = vadd.f32 %v3654, %v3664
        %v3676 = vadd.f32 %v3655, %v3664
        %v3677 = vadd.f32 %v3656, %v3664
        %v3678 = vadd.f32 %v3657, %v3664
        %v3679 = vadd.f32 %v3658, %v3664
        %v3680 = vadd.f32 %v3659, %v3664
        %v3681 = vadd.f32 %v3660, %v3664
        %s3682 = scalar_lea.vmem %s9, %s45
        %v3683 = vld [vmem:[%s3682] sm:$0x1]
        %s3684 = scalar_lea.vmem [#allocation18], %s45
        %v3685 = vld [vmem:[%s3684] sm:$0x1]
        %3686 = vadd.xlane.f32.xlu0 %v3666
        %v3687 = vpop.xlane.xlu0 %3686
        %3688 = vadd.xlane.f32.xlu0 %v3667
        %v3689 = vpop.xlane.xlu0 %3688
        %3690 = vadd.xlane.f32.xlu0 %v3668
        %v3691 = vpop.xlane.xlu0 %3690
        %3692 = vadd.xlane.f32.xlu0 %v3669
        %v3693 = vpop.xlane.xlu0 %3692
        %3694 = vadd.xlane.f32.xlu0 %v3670
        %v3695 = vpop.xlane.xlu0 %3694
        %3696 = vadd.xlane.f32.xlu0 %v3671
        %v3697 = vpop.xlane.xlu0 %3696
        %3698 = vadd.xlane.f32.xlu0 %v3672
        %v3699 = vpop.xlane.xlu0 %3698
        %3700 = vadd.xlane.f32.xlu0 %v3673
        %v3701 = vpop.xlane.xlu0 %3700
        %3702 = vadd.xlane.f32.xlu0 %v3674
        %v3703 = vpop.xlane.xlu0 %3702
        %3704 = vadd.xlane.f32.xlu0 %v3675
        %v3705 = vpop.xlane.xlu0 %3704
        %3706 = vadd.xlane.f32.xlu0 %v3676
        %v3707 = vpop.xlane.xlu0 %3706
        %3708 = vadd.xlane.f32.xlu0 %v3677
        %v3709 = vpop.xlane.xlu0 %3708
        %3710 = vadd.xlane.f32.xlu0 %v3678
        %v3711 = vpop.xlane.xlu0 %3710
        %3712 = vadd.xlane.f32.xlu0 %v3679
        %v3713 = vpop.xlane.xlu0 %3712
        %3714 = vadd.xlane.f32.xlu0 %v3680
        %v3715 = vpop.xlane.xlu0 %3714
        %3716 = vadd.xlane.f32.xlu0 %v3681
        %v3717 = vpop.xlane.xlu0 %3716
        %v3718 = vmul.f32 %v3687, %v888
        %v3719 = vmul.f32 %v3689, %v888
        %v3720 = vmul.f32 %v3691, %v888
        %v3721 = vmul.f32 %v3693, %v888
        %v3722 = vmul.f32 %v3695, %v888
        %v3723 = vmul.f32 %v3697, %v888
        %v3724 = vmul.f32 %v3699, %v888
        %v3725 = vmul.f32 %v3701, %v888
        %v3726 = vmul.f32 %v3703, %v888
        %v3727 = vmul.f32 %v3705, %v888
        %v3728 = vmul.f32 %v3707, %v888
        %v3729 = vmul.f32 %v3709, %v888
        %v3730 = vmul.f32 %v3711, %v888
        %v3731 = vmul.f32 %v3713, %v888
        %v3732 = vmul.f32 %v3715, %v888
        %v3733 = vmul.f32 %v3717, %v888
        %v3734 = vsub.f32 %v3666, %v3718
        %v3735 = vsub.f32 %v3667, %v3719
        %v3736 = vsub.f32 %v3668, %v3720
        %v3737 = vsub.f32 %v3669, %v3721
        %v3738 = vsub.f32 %v3670, %v3722
        %v3739 = vsub.f32 %v3671, %v3723
        %v3740 = vsub.f32 %v3672, %v3724
        %v3741 = vsub.f32 %v3673, %v3725
        %v3742 = vsub.f32 %v3674, %v3726
        %v3743 = vsub.f32 %v3675, %v3727
        %v3744 = vsub.f32 %v3676, %v3728
        %v3745 = vsub.f32 %v3677, %v3729
        %v3746 = vsub.f32 %v3678, %v3730
        %v3747 = vsub.f32 %v3679, %v3731
        %v3748 = vsub.f32 %v3680, %v3732
        %v3749 = vsub.f32 %v3681, %v3733
        %v3750 = vmul.f32 %v3734, %v3734
        %v3751 = vmul.f32 %v3735, %v3735
        %v3752 = vmul.f32 %v3736, %v3736
        %v3753 = vmul.f32 %v3737, %v3737
        %v3754 = vmul.f32 %v3738, %v3738
        %v3755 = vmul.f32 %v3739, %v3739
        %v3756 = vmul.f32 %v3740, %v3740
        %v3757 = vmul.f32 %v3741, %v3741
        %v3758 = vmul.f32 %v3742, %v3742
        %v3759 = vmul.f32 %v3743, %v3743
        %v3760 = vmul.f32 %v3744, %v3744
        %v3761 = vmul.f32 %v3745, %v3745
        %v3762 = vmul.f32 %v3746, %v3746
        %v3763 = vmul.f32 %v3747, %v3747
        %v3764 = vmul.f32 %v3748, %v3748
        %v3765 = vmul.f32 %v3749, %v3749
        %3766 = vadd.xlane.f32.xlu0 %v3750
        %v3767 = vpop.xlane.xlu0 %3766
        %3768 = vadd.xlane.f32.xlu0 %v3751
        %v3769 = vpop.xlane.xlu0 %3768
        %3770 = vadd.xlane.f32.xlu0 %v3752
        %v3771 = vpop.xlane.xlu0 %3770
        %3772 = vadd.xlane.f32.xlu0 %v3753
        %v3773 = vpop.xlane.xlu0 %3772
        %3774 = vadd.xlane.f32.xlu0 %v3754
        %v3775 = vpop.xlane.xlu0 %3774
        %3776 = vadd.xlane.f32.xlu0 %v3755
        %v3777 = vpop.xlane.xlu0 %3776
        %3778 = vadd.xlane.f32.xlu0 %v3756
        %v3779 = vpop.xlane.xlu0 %3778
        %3780 = vadd.xlane.f32.xlu0 %v3757
        %v3781 = vpop.xlane.xlu0 %3780
        %3782 = vadd.xlane.f32.xlu0 %v3758
        %v3783 = vpop.xlane.xlu0 %3782
        %3784 = vadd.xlane.f32.xlu0 %v3759
        %v3785 = vpop.xlane.xlu0 %3784
        %3786 = vadd.xlane.f32.xlu0 %v3760
        %v3787 = vpop.xlane.xlu0 %3786
        %3788 = vadd.xlane.f32.xlu0 %v3761
        %v3789 = vpop.xlane.xlu0 %3788
        %3790 = vadd.xlane.f32.xlu0 %v3762
        %v3791 = vpop.xlane.xlu0 %3790
        %3792 = vadd.xlane.f32.xlu0 %v3763
        %v3793 = vpop.xlane.xlu0 %3792
        %3794 = vadd.xlane.f32.xlu0 %v3764
        %v3795 = vpop.xlane.xlu0 %3794
        %3796 = vadd.xlane.f32.xlu0 %v3765
        %v3797 = vpop.xlane.xlu0 %3796
        %v3798 = vmul.f32 %v3767, %v888
        %v3799 = vmul.f32 %v3769, %v888
        %v3800 = vmul.f32 %v3771, %v888
        %v3801 = vmul.f32 %v3773, %v888
        %v3802 = vmul.f32 %v3775, %v888
        %v3803 = vmul.f32 %v3777, %v888
        %v3804 = vmul.f32 %v3779, %v888
        %v3805 = vmul.f32 %v3781, %v888
        %v3806 = vmul.f32 %v3783, %v888
        %v3807 = vmul.f32 %v3785, %v888
        %v3808 = vmul.f32 %v3787, %v888
        %v3809 = vmul.f32 %v3789, %v888
        %v3810 = vmul.f32 %v3791, %v888
        %v3811 = vmul.f32 %v3793, %v888
        %v3812 = vmul.f32 %v3795, %v888
        %v3813 = vmul.f32 %v3797, %v888
        %v3814 = vadd.f32 %v3798, 1e-05
        %v3815 = vadd.f32 %v3799, 1e-05
        %v3816 = vadd.f32 %v3800, 1e-05
        %v3817 = vadd.f32 %v3801, 1e-05
        %v3818 = vadd.f32 %v3802, 1e-05
        %v3819 = vadd.f32 %v3803, 1e-05
        %v3820 = vadd.f32 %v3804, 1e-05
        %v3821 = vadd.f32 %v3805, 1e-05
        %v3822 = vadd.f32 %v3806, 1e-05
        %v3823 = vadd.f32 %v3807, 1e-05
        %v3824 = vadd.f32 %v3808, 1e-05
        %v3825 = vadd.f32 %v3809, 1e-05
        %v3826 = vadd.f32 %v3810, 1e-05
        %v3827 = vadd.f32 %v3811, 1e-05
        %v3828 = vadd.f32 %v3812, 1e-05
        %v3829 = vadd.f32 %v3813, 1e-05
        %v3830 = vrsqrt.pop %v3814
        %v3831 = vmul.f32 %v3830, %v3814
        %v3832 = vmul.f32 %v3831, %v3830
        %v3833 = vmul.f32 0.5, %v3832
        %v3834 = vsub.f32 1.5, %v3833
        %v3835 = vmul.f32 %v3830, %v3834
        %vm3836 = vweird.f32 %v3814
        %vm3837 = vweird.f32 %v3830
        %vm3838 = vmor %vm3836, %vm3837
        %v3839 = vsel %vm3838, %v3830, %v3835
        %v3840 = vrsqrt.pop %v3815
        %v3841 = vmul.f32 %v3840, %v3815
        %v3842 = vmul.f32 %v3841, %v3840
        %v3843 = vmul.f32 0.5, %v3842
        %v3844 = vsub.f32 1.5, %v3843
        %v3845 = vmul.f32 %v3840, %v3844
        %vm3846 = vweird.f32 %v3815
        %vm3847 = vweird.f32 %v3840
        %vm3848 = vmor %vm3846, %vm3847
        %v3849 = vsel %vm3848, %v3840, %v3845
        %v3850 = vrsqrt.pop %v3816
        %v3851 = vmul.f32 %v3850, %v3816
        %v3852 = vmul.f32 %v3851, %v3850
        %v3853 = vmul.f32 0.5, %v3852
        %v3854 = vsub.f32 1.5, %v3853
        %v3855 = vmul.f32 %v3850, %v3854
        %vm3856 = vweird.f32 %v3816
        %vm3857 = vweird.f32 %v3850
        %vm3858 = vmor %vm3856, %vm3857
        %v3859 = vsel %vm3858, %v3850, %v3855
        %v3860 = vrsqrt.pop %v3817
        %v3861 = vmul.f32 %v3860, %v3817
        %v3862 = vmul.f32 %v3861, %v3860
        %v3863 = vmul.f32 0.5, %v3862
        %v3864 = vsub.f32 1.5, %v3863
        %v3865 = vmul.f32 %v3860, %v3864
        %vm3866 = vweird.f32 %v3817
        %vm3867 = vweird.f32 %v3860
        %vm3868 = vmor %vm3866, %vm3867
        %v3869 = vsel %vm3868, %v3860, %v3865
        %v3870 = vrsqrt.pop %v3818
        %v3871 = vmul.f32 %v3870, %v3818
        %v3872 = vmul.f32 %v3871, %v3870
        %v3873 = vmul.f32 0.5, %v3872
        %v3874 = vsub.f32 1.5, %v3873
        %v3875 = vmul.f32 %v3870, %v3874
        %vm3876 = vweird.f32 %v3818
        %vm3877 = vweird.f32 %v3870
        %vm3878 = vmor %vm3876, %vm3877
        %v3879 = vsel %vm3878, %v3870, %v3875
        %v3880 = vrsqrt.pop %v3819
        %v3881 = vmul.f32 %v3880, %v3819
        %v3882 = vmul.f32 %v3881, %v3880
        %v3883 = vmul.f32 0.5, %v3882
        %v3884 = vsub.f32 1.5, %v3883
        %v3885 = vmul.f32 %v3880, %v3884
        %vm3886 = vweird.f32 %v3819
        %vm3887 = vweird.f32 %v3880
        %vm3888 = vmor %vm3886, %vm3887
        %v3889 = vsel %vm3888, %v3880, %v3885
        %v3890 = vrsqrt.pop %v3820
        %v3891 = vmul.f32 %v3890, %v3820
        %v3892 = vmul.f32 %v3891, %v3890
        %v3893 = vmul.f32 0.5, %v3892
        %v3894 = vsub.f32 1.5, %v3893
        %v3895 = vmul.f32 %v3890, %v3894
        %vm3896 = vweird.f32 %v3820
        %vm3897 = vweird.f32 %v3890
        %vm3898 = vmor %vm3896, %vm3897
        %v3899 = vsel %vm3898, %v3890, %v3895
        %v3900 = vrsqrt.pop %v3821
        %v3901 = vmul.f32 %v3900, %v3821
        %v3902 = vmul.f32 %v3901, %v3900
        %v3903 = vmul.f32 0.5, %v3902
        %v3904 = vsub.f32 1.5, %v3903
        %v3905 = vmul.f32 %v3900, %v3904
        %vm3906 = vweird.f32 %v3821
        %vm3907 = vweird.f32 %v3900
        %vm3908 = vmor %vm3906, %vm3907
        %v3909 = vsel %vm3908, %v3900, %v3905
        %v3910 = vrsqrt.pop %v3822
        %v3911 = vmul.f32 %v3910, %v3822
        %v3912 = vmul.f32 %v3911, %v3910
        %v3913 = vmul.f32 0.5, %v3912
        %v3914 = vsub.f32 1.5, %v3913
        %v3915 = vmul.f32 %v3910, %v3914
        %vm3916 = vweird.f32 %v3822
        %vm3917 = vweird.f32 %v3910
        %vm3918 = vmor %vm3916, %vm3917
        %v3919 = vsel %vm3918, %v3910, %v3915
        %v3920 = vrsqrt.pop %v3823
        %v3921 = vmul.f32 %v3920, %v3823
        %v3922 = vmul.f32 %v3921, %v3920
        %v3923 = vmul.f32 0.5, %v3922
        %v3924 = vsub.f32 1.5, %v3923
        %v3925 = vmul.f32 %v3920, %v3924
        %vm3926 = vweird.f32 %v3823
        %vm3927 = vweird.f32 %v3920
        %vm3928 = vmor %vm3926, %vm3927
        %v3929 = vsel %vm3928, %v3920, %v3925
        %v3930 = vrsqrt.pop %v3824
        %v3931 = vmul.f32 %v3930, %v3824
        %v3932 = vmul.f32 %v3931, %v3930
        %v3933 = vmul.f32 0.5, %v3932
        %v3934 = vsub.f32 1.5, %v3933
        %v3935 = vmul.f32 %v3930, %v3934
        %vm3936 = vweird.f32 %v3824
        %vm3937 = vweird.f32 %v3930
        %vm3938 = vmor %vm3936, %vm3937
        %v3939 = vsel %vm3938, %v3930, %v3935
        %v3940 = vrsqrt.pop %v3825
        %v3941 = vmul.f32 %v3940, %v3825
        %v3942 = vmul.f32 %v3941, %v3940
        %v3943 = vmul.f32 0.5, %v3942
        %v3944 = vsub.f32 1.5, %v3943
        %v3945 = vmul.f32 %v3940, %v3944
        %vm3946 = vweird.f32 %v3825
        %vm3947 = vweird.f32 %v3940
        %vm3948 = vmor %vm3946, %vm3947
        %v3949 = vsel %vm3948, %v3940, %v3945
        %v3950 = vrsqrt.pop %v3826
        %v3951 = vmul.f32 %v3950, %v3826
        %v3952 = vmul.f32 %v3951, %v3950
        %v3953 = vmul.f32 0.5, %v3952
        %v3954 = vsub.f32 1.5, %v3953
        %v3955 = vmul.f32 %v3950, %v3954
        %vm3956 = vweird.f32 %v3826
        %vm3957 = vweird.f32 %v3950
        %vm3958 = vmor %vm3956, %vm3957
        %v3959 = vsel %vm3958, %v3950, %v3955
        %v3960 = vrsqrt.pop %v3827
        %v3961 = vmul.f32 %v3960, %v3827
        %v3962 = vmul.f32 %v3961, %v3960
        %v3963 = vmul.f32 0.5, %v3962
        %v3964 = vsub.f32 1.5, %v3963
        %v3965 = vmul.f32 %v3960, %v3964
        %vm3966 = vweird.f32 %v3827
        %vm3967 = vweird.f32 %v3960
        %vm3968 = vmor %vm3966, %vm3967
        %v3969 = vsel %vm3968, %v3960, %v3965
        %v3970 = vrsqrt.pop %v3828
        %v3971 = vmul.f32 %v3970, %v3828
        %v3972 = vmul.f32 %v3971, %v3970
        %v3973 = vmul.f32 0.5, %v3972
        %v3974 = vsub.f32 1.5, %v3973
        %v3975 = vmul.f32 %v3970, %v3974
        %vm3976 = vweird.f32 %v3828
        %vm3977 = vweird.f32 %v3970
        %vm3978 = vmor %vm3976, %vm3977
        %v3979 = vsel %vm3978, %v3970, %v3975
        %v3980 = vrsqrt.pop %v3829
        %v3981 = vmul.f32 %v3980, %v3829
        %v3982 = vmul.f32 %v3981, %v3980
        %v3983 = vmul.f32 0.5, %v3982
        %v3984 = vsub.f32 1.5, %v3983
        %v3985 = vmul.f32 %v3980, %v3984
        %vm3986 = vweird.f32 %v3829
        %vm3987 = vweird.f32 %v3980
        %vm3988 = vmor %vm3986, %vm3987
        %v3989 = vsel %vm3988, %v3980, %v3985
        %v3990 = vmul.f32 %v3734, %v3839
        %v3991 = vmul.f32 %v3735, %v3849
        %v3992 = vmul.f32 %v3736, %v3859
        %v3993 = vmul.f32 %v3737, %v3869
        %v3994 = vmul.f32 %v3738, %v3879
        %v3995 = vmul.f32 %v3739, %v3889
        %v3996 = vmul.f32 %v3740, %v3899
        %v3997 = vmul.f32 %v3741, %v3909
        %v3998 = vmul.f32 %v3742, %v3919
        %v3999 = vmul.f32 %v3743, %v3929
        %v4000 = vmul.f32 %v3744, %v3939
        %v4001 = vmul.f32 %v3745, %v3949
        %v4002 = vmul.f32 %v3746, %v3959
        %v4003 = vmul.f32 %v3747, %v3969
        %v4004 = vmul.f32 %v3748, %v3979
        %v4005 = vmul.f32 %v3749, %v3989
        %v4007 = vperm.slane %v3683, 0
        %v4009 = vmul.f32 %v3990, %v4007
        %v4010 = vmul.f32 %v3991, %v4007
        %v4011 = vmul.f32 %v3992, %v4007
        %v4012 = vmul.f32 %v3993, %v4007
        %v4013 = vmul.f32 %v3994, %v4007
        %v4014 = vmul.f32 %v3995, %v4007
        %v4015 = vmul.f32 %v3996, %v4007
        %v4016 = vmul.f32 %v3997, %v4007
        %v4017 = vmul.f32 %v3998, %v4007
        %v4018 = vmul.f32 %v3999, %v4007
        %v4019 = vmul.f32 %v4000, %v4007
        %v4020 = vmul.f32 %v4001, %v4007
        %v4021 = vmul.f32 %v4002, %v4007
        %v4022 = vmul.f32 %v4003, %v4007
        %v4023 = vmul.f32 %v4004, %v4007
        %v4024 = vmul.f32 %v4005, %v4007
        %v4026 = vperm.slane %v3685, 0
        %v4028 = vadd.f32 %v4009, %v4026
        %v4029 = vadd.f32 %v4010, %v4026
        %v4030 = vadd.f32 %v4011, %v4026
        %v4031 = vadd.f32 %v4012, %v4026
        %v4032 = vadd.f32 %v4013, %v4026
        %v4033 = vadd.f32 %v4014, %v4026
        %v4034 = vadd.f32 %v4015, %v4026
        %v4035 = vadd.f32 %v4016, %v4026
        %v4036 = vadd.f32 %v4017, %v4026
        %v4037 = vadd.f32 %v4018, %v4026
        %v4038 = vadd.f32 %v4019, %v4026
        %v4039 = vadd.f32 %v4020, %v4026
        %v4040 = vadd.f32 %v4021, %v4026
        %v4041 = vadd.f32 %v4022, %v4026
        %v4042 = vadd.f32 %v4023, %v4026
        %v4043 = vadd.f32 %v4024, %v4026
        %v4044 = vpack.c.bf16 %v4029, %v4028
        %v4045 = vpack.c.bf16 %v4031, %v4030
        %v4046 = vpack.c.bf16 %v4033, %v4032
        %v4047 = vpack.c.bf16 %v4035, %v4034
        %v4048 = vpack.c.bf16 %v4037, %v4036
        %v4049 = vpack.c.bf16 %v4039, %v4038
        %v4050 = vpack.c.bf16 %v4041, %v4040
        %v4051 = vpack.c.bf16 %v4043, %v4042
        %s4052 = smul.u32 %s45, 32
        %s4053 = smul.addr %s4052, 4
        %s4054 = scalar_lea.vmem [#allocation19], %s4053
        %v4055 = vld [vmem:[%s4054] sm:$0xff]
        %v4056 = vld [vmem:[%s4054 + $0x8] sm:$0xff]
        %v4057 = vld [vmem:[%s4054 + $0x10] sm:$0xff]
        %v4058 = vld [vmem:[%s4054 + $0x18] sm:$0xff]
        %v4059 = vld [vmem:[%s4054 + $0x20] sm:$0xff]
        %v4060 = vld [vmem:[%s4054 + $0x28] sm:$0xff]
        %v4061 = vld [vmem:[%s4054 + $0x30] sm:$0xff]
        %v4062 = vld [vmem:[%s4054 + $0x38] sm:$0xff]
        %v4063 = vld [vmem:[%s4054 + $0x40] sm:$0xff]
        %v4064 = vld [vmem:[%s4054 + $0x48] sm:$0xff]
        %v4065 = vld [vmem:[%s4054 + $0x50] sm:$0xff]
        %v4066 = vld [vmem:[%s4054 + $0x58] sm:$0xff]
        %v4067 = vld [vmem:[%s4054 + $0x60] sm:$0xff]
        %v4068 = vld [vmem:[%s4054 + $0x68] sm:$0xff]
        %v4069 = vld [vmem:[%s4054 + $0x70] sm:$0xff]
        %v4070 = vld [vmem:[%s4054 + $0x78] sm:$0xff]
        %s4071 = smul.u32 %s45, 2
        %s4072 = scalar_lea.vmem %s12, %s4071
        %v4073 = vld [vmem:[%s4072] sm:$0x3]
        %v4075 = vperm.slane %v4073, 0
        %v4076 = vperm.slane %v4073, 1
        %v4095 = vunpack.c.l.b16 %v4055
        %v4096 = vunpack.c.h.b16 %v4055
        %v4097 = vunpack.c.l.b16 %v4056
        %v4098 = vunpack.c.h.b16 %v4056
        %v4099 = vunpack.c.l.b16 %v4057
        %v4100 = vunpack.c.h.b16 %v4057
        %v4101 = vunpack.c.l.b16 %v4058
        %v4102 = vunpack.c.h.b16 %v4058
        %v4103 = vunpack.c.l.b16 %v4059
        %v4104 = vunpack.c.h.b16 %v4059
        %v4105 = vunpack.c.l.b16 %v4060
        %v4106 = vunpack.c.h.b16 %v4060
        %v4107 = vunpack.c.l.b16 %v4061
        %v4108 = vunpack.c.h.b16 %v4061
        %v4109 = vunpack.c.l.b16 %v4062
        %v4110 = vunpack.c.h.b16 %v4062
        %v4111 = vunpack.c.l.b16 %v4063
        %v4112 = vunpack.c.h.b16 %v4063
        %v4113 = vunpack.c.l.b16 %v4064
        %v4114 = vunpack.c.h.b16 %v4064
        %v4115 = vunpack.c.l.b16 %v4065
        %v4116 = vunpack.c.h.b16 %v4065
        %v4117 = vunpack.c.l.b16 %v4066
        %v4118 = vunpack.c.h.b16 %v4066
        %v4119 = vunpack.c.l.b16 %v4067
        %v4120 = vunpack.c.h.b16 %v4067
        %v4121 = vunpack.c.l.b16 %v4068
        %v4122 = vunpack.c.h.b16 %v4068
        %v4123 = vunpack.c.l.b16 %v4069
        %v4124 = vunpack.c.h.b16 %v4069
        %v4125 = vunpack.c.l.b16 %v4070
        %v4126 = vunpack.c.h.b16 %v4070
        %v4127 = vpack.c.b16 %v4097, %v4095
        %v4128 = vpack.c.b16 %v4098, %v4096
        %v4129 = vpack.c.b16 %v4101, %v4099
        %v4130 = vpack.c.b16 %v4102, %v4100
        %v4131 = vpack.c.b16 %v4105, %v4103
        %v4132 = vpack.c.b16 %v4106, %v4104
        %v4133 = vpack.c.b16 %v4109, %v4107
        %v4134 = vpack.c.b16 %v4110, %v4108
        %v4135 = vpack.c.b16 %v4113, %v4111
        %v4136 = vpack.c.b16 %v4114, %v4112
        %v4137 = vpack.c.b16 %v4117, %v4115
        %v4138 = vpack.c.b16 %v4118, %v4116
        %v4139 = vpack.c.b16 %v4121, %v4119
        %v4140 = vpack.c.b16 %v4122, %v4120
        %v4141 = vpack.c.b16 %v4125, %v4123
        %v4142 = vpack.c.b16 %v4126, %v4124
        %4159 = vmatpush.bf16.msra.mxu0 %v4141
        %4160 = vmatpush.bf16.msra.mxu0 %v4139
        %4161 = vmatpush.bf16.msra.mxu0 %v4137
        %4162 = vmatpush.bf16.msra.mxu0 %v4135
        %4163 = vmatpush.bf16.msra.mxu0 %v4133
        %4164 = vmatpush.bf16.msra.mxu0 %v4131
        %4165 = vmatpush.bf16.msra.mxu0 %v4129
        %4166 = vmatpush.bf16.msra.mxu0 %v4127
        %4167 = vmatmul.bf16.gmra.mxu0 %v4044
        %v4168 = vpop.f32.mrf.mxu0
        %v4169 = vadd.f32 %v4075, %v4168
        %v4170 = vpop.f32.mrf.mxu0
        %v4171 = vadd.f32 %v4075, %v4170
        %4172 = vmatmul.bf16.gmra.mxu0 %v4045
        %v4173 = vpop.f32.mrf.mxu0
        %v4174 = vadd.f32 %v4075, %v4173
        %v4175 = vpop.f32.mrf.mxu0
        %v4176 = vadd.f32 %v4075, %v4175
        %4177 = vmatmul.bf16.gmra.mxu0 %v4046
        %v4178 = vpop.f32.mrf.mxu0
        %v4179 = vadd.f32 %v4075, %v4178
        %v4180 = vpop.f32.mrf.mxu0
        %v4181 = vadd.f32 %v4075, %v4180
        %4182 = vmatmul.bf16.gmra.mxu0 %v4047
        %v4183 = vpop.f32.mrf.mxu0
        %v4184 = vadd.f32 %v4075, %v4183
        %v4185 = vpop.f32.mrf.mxu0
        %v4186 = vadd.f32 %v4075, %v4185
        %4187 = vmatmul.bf16.gmra.mxu0 %v4048
        %v4188 = vpop.f32.mrf.mxu0
        %v4189 = vadd.f32 %v4075, %v4188
        %v4190 = vpop.f32.mrf.mxu0
        %v4191 = vadd.f32 %v4075, %v4190
        %4192 = vmatmul.bf16.gmra.mxu0 %v4049
        %v4193 = vpop.f32.mrf.mxu0
        %v4194 = vadd.f32 %v4075, %v4193
        %v4195 = vpop.f32.mrf.mxu0
        %v4196 = vadd.f32 %v4075, %v4195
        %4197 = vmatmul.bf16.gmra.mxu0 %v4050
        %v4198 = vpop.f32.mrf.mxu0
        %v4199 = vadd.f32 %v4075, %v4198
        %v4200 = vpop.f32.mrf.mxu0
        %v4201 = vadd.f32 %v4075, %v4200
        %4202 = vmatmul.bf16.gmra.mxu0 %v4051
        %v4203 = vpop.f32.mrf.mxu0
        %v4204 = vadd.f32 %v4075, %v4203
        %v4205 = vpop.f32.mrf.mxu0
        %v4206 = vadd.f32 %v4075, %v4205
        %4207 = vdwg.mxu0
        %4208 = vmatpush.bf16.msra.mxu0 %v4142
        %4209 = vmatpush.bf16.msra.mxu0 %v4140
        %4210 = vmatpush.bf16.msra.mxu0 %v4138
        %4211 = vmatpush.bf16.msra.mxu0 %v4136
        %4212 = vmatpush.bf16.msra.mxu0 %v4134
        %4213 = vmatpush.bf16.msra.mxu0 %v4132
        %4214 = vmatpush.bf16.msra.mxu0 %v4130
        %4215 = vmatpush.bf16.msra.mxu0 %v4128
        %4216 = vmatmul.bf16.gmra.mxu0 %v4044
        %v4217 = vpop.f32.mrf.mxu0
        %v4218 = vadd.f32 %v4076, %v4217
        %v4219 = vpop.f32.mrf.mxu0
        %v4220 = vadd.f32 %v4076, %v4219
        %4221 = vmatmul.bf16.gmra.mxu0 %v4045
        %v4222 = vpop.f32.mrf.mxu0
        %v4223 = vadd.f32 %v4076, %v4222
        %v4224 = vpop.f32.mrf.mxu0
        %v4225 = vadd.f32 %v4076, %v4224
        %4226 = vmatmul.bf16.gmra.mxu0 %v4046
        %v4227 = vpop.f32.mrf.mxu0
        %v4228 = vadd.f32 %v4076, %v4227
        %v4229 = vpop.f32.mrf.mxu0
        %v4230 = vadd.f32 %v4076, %v4229
        %4231 = vmatmul.bf16.gmra.mxu0 %v4047
        %v4232 = vpop.f32.mrf.mxu0
        %v4233 = vadd.f32 %v4076, %v4232
        %v4234 = vpop.f32.mrf.mxu0
        %v4235 = vadd.f32 %v4076, %v4234
        %4236 = vmatmul.bf16.gmra.mxu0 %v4048
        %v4237 = vpop.f32.mrf.mxu0
        %v4238 = vadd.f32 %v4076, %v4237
        %v4239 = vpop.f32.mrf.mxu0
        %v4240 = vadd.f32 %v4076, %v4239
        %4241 = vmatmul.bf16.gmra.mxu0 %v4049
        %v4242 = vpop.f32.mrf.mxu0
        %v4243 = vadd.f32 %v4076, %v4242
        %v4244 = vpop.f32.mrf.mxu0
        %v4245 = vadd.f32 %v4076, %v4244
        %4246 = vmatmul.bf16.gmra.mxu0 %v4050
        %v4247 = vpop.f32.mrf.mxu0
        %v4248 = vadd.f32 %v4076, %v4247
        %v4249 = vpop.f32.mrf.mxu0
        %v4250 = vadd.f32 %v4076, %v4249
        %4251 = vmatmul.bf16.gmra.mxu0 %v4051
        %v4252 = vpop.f32.mrf.mxu0
        %v4253 = vadd.f32 %v4076, %v4252
        %v4254 = vpop.f32.mrf.mxu0
        %v4255 = vadd.f32 %v4076, %v4254
        %4256 = vdwg.mxu0
        %v4257 = vmul.f32 %v4169, 0.5
        %v4258 = vmul.f32 %v4218, 0.5
        %v4259 = vmul.f32 %v4171, 0.5
        %v4260 = vmul.f32 %v4220, 0.5
        %v4261 = vmul.f32 %v4174, 0.5
        %v4262 = vmul.f32 %v4223, 0.5
        %v4263 = vmul.f32 %v4176, 0.5
        %v4264 = vmul.f32 %v4225, 0.5
        %v4265 = vmul.f32 %v4179, 0.5
        %v4266 = vmul.f32 %v4228, 0.5
        %v4267 = vmul.f32 %v4181, 0.5
        %v4268 = vmul.f32 %v4230, 0.5
        %v4269 = vmul.f32 %v4184, 0.5
        %v4270 = vmul.f32 %v4233, 0.5
        %v4271 = vmul.f32 %v4186, 0.5
        %v4272 = vmul.f32 %v4235, 0.5
        %v4273 = vmul.f32 %v4189, 0.5
        %v4274 = vmul.f32 %v4238, 0.5
        %v4275 = vmul.f32 %v4191, 0.5
        %v4276 = vmul.f32 %v4240, 0.5
        %v4277 = vmul.f32 %v4194, 0.5
        %v4278 = vmul.f32 %v4243, 0.5
        %v4279 = vmul.f32 %v4196, 0.5
        %v4280 = vmul.f32 %v4245, 0.5
        %v4281 = vmul.f32 %v4199, 0.5
        %v4282 = vmul.f32 %v4248, 0.5
        %v4283 = vmul.f32 %v4201, 0.5
        %v4284 = vmul.f32 %v4250, 0.5
        %v4285 = vmul.f32 %v4204, 0.5
        %v4286 = vmul.f32 %v4253, 0.5
        %v4287 = vmul.f32 %v4206, 0.5
        %v4288 = vmul.f32 %v4255, 0.5
        %v4289 = vmul.f32 %v4169, 0.044715
        %v4290 = vmul.f32 %v4218, 0.044715
        %v4291 = vmul.f32 %v4171, 0.044715
        %v4292 = vmul.f32 %v4220, 0.044715
        %v4293 = vmul.f32 %v4174, 0.044715
        %v4294 = vmul.f32 %v4223, 0.044715
        %v4295 = vmul.f32 %v4176, 0.044715
        %v4296 = vmul.f32 %v4225, 0.044715
        %v4297 = vmul.f32 %v4179, 0.044715
        %v4298 = vmul.f32 %v4228, 0.044715
        %v4299 = vmul.f32 %v4181, 0.044715
        %v4300 = vmul.f32 %v4230, 0.044715
        %v4301 = vmul.f32 %v4184, 0.044715
        %v4302 = vmul.f32 %v4233, 0.044715
        %v4303 = vmul.f32 %v4186, 0.044715
        %v4304 = vmul.f32 %v4235, 0.044715
        %v4305 = vmul.f32 %v4189, 0.044715
        %v4306 = vmul.f32 %v4238, 0.044715
        %v4307 = vmul.f32 %v4191, 0.044715
        %v4308 = vmul.f32 %v4240, 0.044715
        %v4309 = vmul.f32 %v4194, 0.044715
        %v4310 = vmul.f32 %v4243, 0.044715
        %v4311 = vmul.f32 %v4196, 0.044715
        %v4312 = vmul.f32 %v4245, 0.044715
        %v4313 = vmul.f32 %v4199, 0.044715
        %v4314 = vmul.f32 %v4248, 0.044715
        %v4315 = vmul.f32 %v4201, 0.044715
        %v4316 = vmul.f32 %v4250, 0.044715
        %v4317 = vmul.f32 %v4204, 0.044715
        %v4318 = vmul.f32 %v4253, 0.044715
        %v4319 = vmul.f32 %v4206, 0.044715
        %v4320 = vmul.f32 %v4255, 0.044715
        %v4321 = vmul.f32 %v4289, %v4169
        %v4322 = vmul.f32 %v4290, %v4218
        %v4323 = vmul.f32 %v4291, %v4171
        %v4324 = vmul.f32 %v4292, %v4220
        %v4325 = vmul.f32 %v4293, %v4174
        %v4326 = vmul.f32 %v4294, %v4223
        %v4327 = vmul.f32 %v4295, %v4176
        %v4328 = vmul.f32 %v4296, %v4225
        %v4329 = vmul.f32 %v4297, %v4179
        %v4330 = vmul.f32 %v4298, %v4228
        %v4331 = vmul.f32 %v4299, %v4181
        %v4332 = vmul.f32 %v4300, %v4230
        %v4333 = vmul.f32 %v4301, %v4184
        %v4334 = vmul.f32 %v4302, %v4233
        %v4335 = vmul.f32 %v4303, %v4186
        %v4336 = vmul.f32 %v4304, %v4235
        %v4337 = vmul.f32 %v4305, %v4189
        %v4338 = vmul.f32 %v4306, %v4238
        %v4339 = vmul.f32 %v4307, %v4191
        %v4340 = vmul.f32 %v4308, %v4240
        %v4341 = vmul.f32 %v4309, %v4194
        %v4342 = vmul.f32 %v4310, %v4243
        %v4343 = vmul.f32 %v4311, %v4196
        %v4344 = vmul.f32 %v4312, %v4245
        %v4345 = vmul.f32 %v4313, %v4199
        %v4346 = vmul.f32 %v4314, %v4248
        %v4347 = vmul.f32 %v4315, %v4201
        %v4348 = vmul.f32 %v4316, %v4250
        %v4349 = vmul.f32 %v4317, %v4204
        %v4350 = vmul.f32 %v4318, %v4253
        %v4351 = vmul.f32 %v4319, %v4206
        %v4352 = vmul.f32 %v4320, %v4255
        %v4353 = vmul.f32 %v4321, %v4169
        %v4354 = vmul.f32 %v4322, %v4218
        %v4355 = vmul.f32 %v4323, %v4171
        %v4356 = vmul.f32 %v4324, %v4220
        %v4357 = vmul.f32 %v4325, %v4174
        %v4358 = vmul.f32 %v4326, %v4223
        %v4359 = vmul.f32 %v4327, %v4176
        %v4360 = vmul.f32 %v4328, %v4225
        %v4361 = vmul.f32 %v4329, %v4179
        %v4362 = vmul.f32 %v4330, %v4228
        %v4363 = vmul.f32 %v4331, %v4181
        %v4364 = vmul.f32 %v4332, %v4230
        %v4365 = vmul.f32 %v4333, %v4184
        %v4366 = vmul.f32 %v4334, %v4233
        %v4367 = vmul.f32 %v4335, %v4186
        %v4368 = vmul.f32 %v4336, %v4235
        %v4369 = vmul.f32 %v4337, %v4189
        %v4370 = vmul.f32 %v4338, %v4238
        %v4371 = vmul.f32 %v4339, %v4191
        %v4372 = vmul.f32 %v4340, %v4240
        %v4373 = vmul.f32 %v4341, %v4194
        %v4374 = vmul.f32 %v4342, %v4243
        %v4375 = vmul.f32 %v4343, %v4196
        %v4376 = vmul.f32 %v4344, %v4245
        %v4377 = vmul.f32 %v4345, %v4199
        %v4378 = vmul.f32 %v4346, %v4248
        %v4379 = vmul.f32 %v4347, %v4201
        %v4380 = vmul.f32 %v4348, %v4250
        %v4381 = vmul.f32 %v4349, %v4204
        %v4382 = vmul.f32 %v4350, %v4253
        %v4383 = vmul.f32 %v4351, %v4206
        %v4384 = vmul.f32 %v4352, %v4255
        %v4385 = vadd.f32 %v4169, %v4353
        %v4386 = vadd.f32 %v4218, %v4354
        %v4387 = vadd.f32 %v4171, %v4355
        %v4388 = vadd.f32 %v4220, %v4356
        %v4389 = vadd.f32 %v4174, %v4357
        %v4390 = vadd.f32 %v4223, %v4358
        %v4391 = vadd.f32 %v4176, %v4359
        %v4392 = vadd.f32 %v4225, %v4360
        %v4393 = vadd.f32 %v4179, %v4361
        %v4394 = vadd.f32 %v4228, %v4362
        %v4395 = vadd.f32 %v4181, %v4363
        %v4396 = vadd.f32 %v4230, %v4364
        %v4397 = vadd.f32 %v4184, %v4365
        %v4398 = vadd.f32 %v4233, %v4366
        %v4399 = vadd.f32 %v4186, %v4367
        %v4400 = vadd.f32 %v4235, %v4368
        %v4401 = vadd.f32 %v4189, %v4369
        %v4402 = vadd.f32 %v4238, %v4370
        %v4403 = vadd.f32 %v4191, %v4371
        %v4404 = vadd.f32 %v4240, %v4372
        %v4405 = vadd.f32 %v4194, %v4373
        %v4406 = vadd.f32 %v4243, %v4374
        %v4407 = vadd.f32 %v4196, %v4375
        %v4408 = vadd.f32 %v4245, %v4376
        %v4409 = vadd.f32 %v4199, %v4377
        %v4410 = vadd.f32 %v4248, %v4378
        %v4411 = vadd.f32 %v4201, %v4379
        %v4412 = vadd.f32 %v4250, %v4380
        %v4413 = vadd.f32 %v4204, %v4381
        %v4414 = vadd.f32 %v4253, %v4382
        %v4415 = vadd.f32 %v4206, %v4383
        %v4416 = vadd.f32 %v4255, %v4384
        %v4417 = vmul.f32 %v4385, 0.7978846
        %v4418 = vmul.f32 %v4386, 0.7978846
        %v4419 = vmul.f32 %v4387, 0.7978846
        %v4420 = vmul.f32 %v4388, 0.7978846
        %v4421 = vmul.f32 %v4389, 0.7978846
        %v4422 = vmul.f32 %v4390, 0.7978846
        %v4423 = vmul.f32 %v4391, 0.7978846
        %v4424 = vmul.f32 %v4392, 0.7978846
        %v4425 = vmul.f32 %v4393, 0.7978846
        %v4426 = vmul.f32 %v4394, 0.7978846
        %v4427 = vmul.f32 %v4395, 0.7978846
        %v4428 = vmul.f32 %v4396, 0.7978846
        %v4429 = vmul.f32 %v4397, 0.7978846
        %v4430 = vmul.f32 %v4398, 0.7978846
        %v4431 = vmul.f32 %v4399, 0.7978846
        %v4432 = vmul.f32 %v4400, 0.7978846
        %v4433 = vmul.f32 %v4401, 0.7978846
        %v4434 = vmul.f32 %v4402, 0.7978846
        %v4435 = vmul.f32 %v4403, 0.7978846
        %v4436 = vmul.f32 %v4404, 0.7978846
        %v4437 = vmul.f32 %v4405, 0.7978846
        %v4438 = vmul.f32 %v4406, 0.7978846
        %v4439 = vmul.f32 %v4407, 0.7978846
        %v4440 = vmul.f32 %v4408, 0.7978846
        %v4441 = vmul.f32 %v4409, 0.7978846
        %v4442 = vmul.f32 %v4410, 0.7978846
        %v4443 = vmul.f32 %v4411, 0.7978846
        %v4444 = vmul.f32 %v4412, 0.7978846
        %v4445 = vmul.f32 %v4413, 0.7978846
        %v4446 = vmul.f32 %v4414, 0.7978846
        %v4447 = vmul.f32 %v4415, 0.7978846
        %v4448 = vmul.f32 %v4416, 0.7978846
        %v4449 = vtanh.pop %v4417
        %v4450 = vtanh.pop %v4418
        %v4451 = vtanh.pop %v4419
        %v4452 = vtanh.pop %v4420
        %v4453 = vtanh.pop %v4421
        %v4454 = vtanh.pop %v4422
        %v4455 = vtanh.pop %v4423
        %v4456 = vtanh.pop %v4424
        %v4457 = vtanh.pop %v4425
        %v4458 = vtanh.pop %v4426
        %v4459 = vtanh.pop %v4427
        %v4460 = vtanh.pop %v4428
        %v4461 = vtanh.pop %v4429
        %v4462 = vtanh.pop %v4430
        %v4463 = vtanh.pop %v4431
        %v4464 = vtanh.pop %v4432
        %v4465 = vtanh.pop %v4433
        %v4466 = vtanh.pop %v4434
        %v4467 = vtanh.pop %v4435
        %v4468 = vtanh.pop %v4436
        %v4469 = vtanh.pop %v4437
        %v4470 = vtanh.pop %v4438
        %v4471 = vtanh.pop %v4439
        %v4472 = vtanh.pop %v4440
        %v4473 = vtanh.pop %v4441
        %v4474 = vtanh.pop %v4442
        %v4475 = vtanh.pop %v4443
        %v4476 = vtanh.pop %v4444
        %v4477 = vtanh.pop %v4445
        %v4478 = vtanh.pop %v4446
        %v4479 = vtanh.pop %v4447
        %v4480 = vtanh.pop %v4448
        %v4481 = vadd.f32 %v4449, 1.0
        %v4482 = vadd.f32 %v4450, 1.0
        %v4483 = vadd.f32 %v4451, 1.0
        %v4484 = vadd.f32 %v4452, 1.0
        %v4485 = vadd.f32 %v4453, 1.0
        %v4486 = vadd.f32 %v4454, 1.0
        %v4487 = vadd.f32 %v4455, 1.0
        %v4488 = vadd.f32 %v4456, 1.0
        %v4489 = vadd.f32 %v4457, 1.0
        %v4490 = vadd.f32 %v4458, 1.0
        %v4491 = vadd.f32 %v4459, 1.0
        %v4492 = vadd.f32 %v4460, 1.0
        %v4493 = vadd.f32 %v4461, 1.0
        %v4494 = vadd.f32 %v4462, 1.0
        %v4495 = vadd.f32 %v4463, 1.0
        %v4496 = vadd.f32 %v4464, 1.0
        %v4497 = vadd.f32 %v4465, 1.0
        %v4498 = vadd.f32 %v4466, 1.0
        %v4499 = vadd.f32 %v4467, 1.0
        %v4500 = vadd.f32 %v4468, 1.0
        %v4501 = vadd.f32 %v4469, 1.0
        %v4502 = vadd.f32 %v4470, 1.0
        %v4503 = vadd.f32 %v4471, 1.0
        %v4504 = vadd.f32 %v4472, 1.0
        %v4505 = vadd.f32 %v4473, 1.0
        %v4506 = vadd.f32 %v4474, 1.0
        %v4507 = vadd.f32 %v4475, 1.0
        %v4508 = vadd.f32 %v4476, 1.0
        %v4509 = vadd.f32 %v4477, 1.0
        %v4510 = vadd.f32 %v4478, 1.0
        %v4511 = vadd.f32 %v4479, 1.0
        %v4512 = vadd.f32 %v4480, 1.0
        %v4513 = vmul.f32 %v4257, %v4481
        %v4514 = vmul.f32 %v4258, %v4482
        %v4515 = vmul.f32 %v4259, %v4483
        %v4516 = vmul.f32 %v4260, %v4484
        %v4517 = vmul.f32 %v4261, %v4485
        %v4518 = vmul.f32 %v4262, %v4486
        %v4519 = vmul.f32 %v4263, %v4487
        %v4520 = vmul.f32 %v4264, %v4488
        %v4521 = vmul.f32 %v4265, %v4489
        %v4522 = vmul.f32 %v4266, %v4490
        %v4523 = vmul.f32 %v4267, %v4491
        %v4524 = vmul.f32 %v4268, %v4492
        %v4525 = vmul.f32 %v4269, %v4493
        %v4526 = vmul.f32 %v4270, %v4494
        %v4527 = vmul.f32 %v4271, %v4495
        %v4528 = vmul.f32 %v4272, %v4496
        %v4529 = vmul.f32 %v4273, %v4497
        %v4530 = vmul.f32 %v4274, %v4498
        %v4531 = vmul.f32 %v4275, %v4499
        %v4532 = vmul.f32 %v4276, %v4500
        %v4533 = vmul.f32 %v4277, %v4501
        %v4534 = vmul.f32 %v4278, %v4502
        %v4535 = vmul.f32 %v4279, %v4503
        %v4536 = vmul.f32 %v4280, %v4504
        %v4537 = vmul.f32 %v4281, %v4505
        %v4538 = vmul.f32 %v4282, %v4506
        %v4539 = vmul.f32 %v4283, %v4507
        %v4540 = vmul.f32 %v4284, %v4508
        %v4541 = vmul.f32 %v4285, %v4509
        %v4542 = vmul.f32 %v4286, %v4510
        %v4543 = vmul.f32 %v4287, %v4511
        %v4544 = vmul.f32 %v4288, %v4512
        %v4545 = vpack.c.bf16 %v4515, %v4513
        %v4546 = vpack.c.bf16 %v4516, %v4514
        %v4547 = vpack.c.bf16 %v4519, %v4517
        %v4548 = vpack.c.bf16 %v4520, %v4518
        %v4549 = vpack.c.bf16 %v4523, %v4521
        %v4550 = vpack.c.bf16 %v4524, %v4522
        %v4551 = vpack.c.bf16 %v4527, %v4525
        %v4552 = vpack.c.bf16 %v4528, %v4526
        %v4553 = vpack.c.bf16 %v4531, %v4529
        %v4554 = vpack.c.bf16 %v4532, %v4530
        %v4555 = vpack.c.bf16 %v4535, %v4533
        %v4556 = vpack.c.bf16 %v4536, %v4534
        %v4557 = vpack.c.bf16 %v4539, %v4537
        %v4558 = vpack.c.bf16 %v4540, %v4538
        %v4559 = vpack.c.bf16 %v4543, %v4541
        %v4560 = vpack.c.bf16 %v4544, %v4542
        %s4561 = smul.addr %s4052, 4
        %s4562 = scalar_lea.vmem [#allocation21], %s4561
        %v4563 = vld [vmem:[%s4562] sm:$0xf]
        %v4564 = vld [vmem:[%s4562 + $0x4] sm:$0xf]
        %v4565 = vld [vmem:[%s4562 + $0x8] sm:$0xf]
        %v4566 = vld [vmem:[%s4562 + $0xc] sm:$0xf]
        %v4567 = vld [vmem:[%s4562 + $0x10] sm:$0xf]
        %v4568 = vld [vmem:[%s4562 + $0x14] sm:$0xf]
        %v4569 = vld [vmem:[%s4562 + $0x18] sm:$0xf]
        %v4570 = vld [vmem:[%s4562 + $0x1c] sm:$0xf]
        %v4571 = vld [vmem:[%s4562 + $0x20] sm:$0xf]
        %v4572 = vld [vmem:[%s4562 + $0x24] sm:$0xf]
        %v4573 = vld [vmem:[%s4562 + $0x28] sm:$0xf]
        %v4574 = vld [vmem:[%s4562 + $0x2c] sm:$0xf]
        %v4575 = vld [vmem:[%s4562 + $0x30] sm:$0xf]
        %v4576 = vld [vmem:[%s4562 + $0x34] sm:$0xf]
        %v4577 = vld [vmem:[%s4562 + $0x38] sm:$0xf]
        %v4578 = vld [vmem:[%s4562 + $0x3c] sm:$0xf]
        %v4579 = vld [vmem:[%s4562 + $0x40] sm:$0xf]
        %v4580 = vld [vmem:[%s4562 + $0x44] sm:$0xf]
        %v4581 = vld [vmem:[%s4562 + $0x48] sm:$0xf]
        %v4582 = vld [vmem:[%s4562 + $0x4c] sm:$0xf]
        %v4583 = vld [vmem:[%s4562 + $0x50] sm:$0xf]
        %v4584 = vld [vmem:[%s4562 + $0x54] sm:$0xf]
        %v4585 = vld [vmem:[%s4562 + $0x58] sm:$0xf]
        %v4586 = vld [vmem:[%s4562 + $0x5c] sm:$0xf]
        %v4587 = vld [vmem:[%s4562 + $0x60] sm:$0xf]
        %v4588 = vld [vmem:[%s4562 + $0x64] sm:$0xf]
        %v4589 = vld [vmem:[%s4562 + $0x68] sm:$0xf]
        %v4590 = vld [vmem:[%s4562 + $0x6c] sm:$0xf]
        %v4591 = vld [vmem:[%s4562 + $0x70] sm:$0xf]
        %v4592 = vld [vmem:[%s4562 + $0x74] sm:$0xf]
        %v4593 = vld [vmem:[%s4562 + $0x78] sm:$0xf]
        %v4594 = vld [vmem:[%s4562 + $0x7c] sm:$0xf]
        %v4627 = vunpack.c.l.b16 %v4563
        %v4628 = vunpack.c.l.b16 %v4564
        %v4629 = vunpack.c.l.b16 %v4565
        %v4630 = vunpack.c.l.b16 %v4566
        %v4631 = vunpack.c.l.b16 %v4567
        %v4632 = vunpack.c.l.b16 %v4568
        %v4633 = vunpack.c.l.b16 %v4569
        %v4634 = vunpack.c.l.b16 %v4570
        %v4635 = vunpack.c.l.b16 %v4571
        %v4636 = vunpack.c.l.b16 %v4572
        %v4637 = vunpack.c.l.b16 %v4573
        %v4638 = vunpack.c.l.b16 %v4574
        %v4639 = vunpack.c.l.b16 %v4575
        %v4640 = vunpack.c.l.b16 %v4576
        %v4641 = vunpack.c.l.b16 %v4577
        %v4642 = vunpack.c.l.b16 %v4578
        %v4643 = vunpack.c.l.b16 %v4579
        %v4644 = vunpack.c.l.b16 %v4580
        %v4645 = vunpack.c.l.b16 %v4581
        %v4646 = vunpack.c.l.b16 %v4582
        %v4647 = vunpack.c.l.b16 %v4583
        %v4648 = vunpack.c.l.b16 %v4584
        %v4649 = vunpack.c.l.b16 %v4585
        %v4650 = vunpack.c.l.b16 %v4586
        %v4651 = vunpack.c.l.b16 %v4587
        %v4652 = vunpack.c.l.b16 %v4588
        %v4653 = vunpack.c.l.b16 %v4589
        %v4654 = vunpack.c.l.b16 %v4590
        %v4655 = vunpack.c.l.b16 %v4591
        %v4656 = vunpack.c.l.b16 %v4592
        %v4657 = vunpack.c.l.b16 %v4593
        %v4658 = vunpack.c.l.b16 %v4594
        %v4659 = vpack.c.b16 %v4628, %v4627
        %v4660 = vpack.c.b16 %v4630, %v4629
        %v4661 = vpack.c.b16 %v4632, %v4631
        %v4662 = vpack.c.b16 %v4634, %v4633
        %v4663 = vpack.c.b16 %v4636, %v4635
        %v4664 = vpack.c.b16 %v4638, %v4637
        %v4665 = vpack.c.b16 %v4640, %v4639
        %v4666 = vpack.c.b16 %v4642, %v4641
        %v4667 = vpack.c.b16 %v4644, %v4643
        %v4668 = vpack.c.b16 %v4646, %v4645
        %v4669 = vpack.c.b16 %v4648, %v4647
        %v4670 = vpack.c.b16 %v4650, %v4649
        %v4671 = vpack.c.b16 %v4652, %v4651
        %v4672 = vpack.c.b16 %v4654, %v4653
        %v4673 = vpack.c.b16 %v4656, %v4655
        %v4674 = vpack.c.b16 %v4658, %v4657
        %4691 = vmatpush.bf16.msra.mxu0 %v4666
        %4692 = vmatpush.bf16.msra.mxu0 %v4665
        %4693 = vmatpush.bf16.msra.mxu0 %v4664
        %4694 = vmatpush.bf16.msra.mxu0 %v4663
        %4695 = vmatpush.bf16.msra.mxu0 %v4662
        %4696 = vmatpush.bf16.msra.mxu0 %v4661
        %4697 = vmatpush.bf16.msra.mxu0 %v4660
        %4698 = vmatpush.bf16.msra.mxu0 %v4659
        %4699 = vmatmul.bf16.gmra.mxu0 %v4545
        %v4700 = vpop.f32.mrf.mxu0
        %v4701 = vadd.f32 0.0, %v4700
        %v4702 = vpop.f32.mrf.mxu0
        %v4703 = vadd.f32 0.0, %v4702
        %4704 = vmatmul.bf16.gmra.mxu0 %v4547
        %v4705 = vpop.f32.mrf.mxu0
        %v4706 = vadd.f32 0.0, %v4705
        %v4707 = vpop.f32.mrf.mxu0
        %v4708 = vadd.f32 0.0, %v4707
        %4709 = vmatmul.bf16.gmra.mxu0 %v4549
        %v4710 = vpop.f32.mrf.mxu0
        %v4711 = vadd.f32 0.0, %v4710
        %v4712 = vpop.f32.mrf.mxu0
        %v4713 = vadd.f32 0.0, %v4712
        %4714 = vmatmul.bf16.gmra.mxu0 %v4551
        %v4715 = vpop.f32.mrf.mxu0
        %v4716 = vadd.f32 0.0, %v4715
        %v4717 = vpop.f32.mrf.mxu0
        %v4718 = vadd.f32 0.0, %v4717
        %4719 = vmatmul.bf16.gmra.mxu0 %v4553
        %v4720 = vpop.f32.mrf.mxu0
        %v4721 = vadd.f32 0.0, %v4720
        %v4722 = vpop.f32.mrf.mxu0
        %v4723 = vadd.f32 0.0, %v4722
        %4724 = vmatmul.bf16.gmra.mxu0 %v4555
        %v4725 = vpop.f32.mrf.mxu0
        %v4726 = vadd.f32 0.0, %v4725
        %v4727 = vpop.f32.mrf.mxu0
        %v4728 = vadd.f32 0.0, %v4727
        %4729 = vmatmul.bf16.gmra.mxu0 %v4557
        %v4730 = vpop.f32.mrf.mxu0
        %v4731 = vadd.f32 0.0, %v4730
        %v4732 = vpop.f32.mrf.mxu0
        %v4733 = vadd.f32 0.0, %v4732
        %4734 = vmatmul.bf16.gmra.mxu0 %v4559
        %v4735 = vpop.f32.mrf.mxu0
        %v4736 = vadd.f32 0.0, %v4735
        %v4737 = vpop.f32.mrf.mxu0
        %v4738 = vadd.f32 0.0, %v4737
        %4739 = vdwg.mxu0
        %4740 = vmatpush.bf16.msra.mxu0 %v4674
        %4741 = vmatpush.bf16.msra.mxu0 %v4673
        %4742 = vmatpush.bf16.msra.mxu0 %v4672
        %4743 = vmatpush.bf16.msra.mxu0 %v4671
        %4744 = vmatpush.bf16.msra.mxu0 %v4670
        %4745 = vmatpush.bf16.msra.mxu0 %v4669
        %4746 = vmatpush.bf16.msra.mxu0 %v4668
        %4747 = vmatpush.bf16.msra.mxu0 %v4667
        %4748 = vmatmul.bf16.gmra.mxu0 %v4546
        %v4749 = vpop.f32.mrf.mxu0
        %v4750 = vadd.f32 %v4701, %v4749
        %v4751 = vpop.f32.mrf.mxu0
        %v4752 = vadd.f32 %v4703, %v4751
        %4753 = vmatmul.bf16.gmra.mxu0 %v4548
        %v4754 = vpop.f32.mrf.mxu0
        %v4755 = vadd.f32 %v4706, %v4754
        %v4756 = vpop.f32.mrf.mxu0
        %v4757 = vadd.f32 %v4708, %v4756
        %4758 = vmatmul.bf16.gmra.mxu0 %v4550
        %v4759 = vpop.f32.mrf.mxu0
        %v4760 = vadd.f32 %v4711, %v4759
        %v4761 = vpop.f32.mrf.mxu0
        %v4762 = vadd.f32 %v4713, %v4761
        %4763 = vmatmul.bf16.gmra.mxu0 %v4552
        %v4764 = vpop.f32.mrf.mxu0
        %v4765 = vadd.f32 %v4716, %v4764
        %v4766 = vpop.f32.mrf.mxu0
        %v4767 = vadd.f32 %v4718, %v4766
        %4768 = vmatmul.bf16.gmra.mxu0 %v4554
        %v4769 = vpop.f32.mrf.mxu0
        %v4770 = vadd.f32 %v4721, %v4769
        %v4771 = vpop.f32.mrf.mxu0
        %v4772 = vadd.f32 %v4723, %v4771
        %4773 = vmatmul.bf16.gmra.mxu0 %v4556
        %v4774 = vpop.f32.mrf.mxu0
        %v4775 = vadd.f32 %v4726, %v4774
        %v4776 = vpop.f32.mrf.mxu0
        %v4777 = vadd.f32 %v4728, %v4776
        %4778 = vmatmul.bf16.gmra.mxu0 %v4558
        %v4779 = vpop.f32.mrf.mxu0
        %v4780 = vadd.f32 %v4731, %v4779
        %v4781 = vpop.f32.mrf.mxu0
        %v4782 = vadd.f32 %v4733, %v4781
        %4783 = vmatmul.bf16.gmra.mxu0 %v4560
        %v4784 = vpop.f32.mrf.mxu0
        %v4785 = vadd.f32 %v4736, %v4784
        %v4786 = vpop.f32.mrf.mxu0
        %v4787 = vadd.f32 %v4738, %v4786
        %4788 = vdwg.mxu0
        %v4789 = vadd.f32 %v3666, %v4750
        %v4790 = vadd.f32 %v3667, %v4752
        %v4791 = vadd.f32 %v3668, %v4755
        %v4792 = vadd.f32 %v3669, %v4757
        %v4793 = vadd.f32 %v3670, %v4760
        %v4794 = vadd.f32 %v3671, %v4762
        %v4795 = vadd.f32 %v3672, %v4765
        %v4796 = vadd.f32 %v3673, %v4767
        %v4797 = vadd.f32 %v3674, %v4770
        %v4798 = vadd.f32 %v3675, %v4772
        %v4799 = vadd.f32 %v3676, %v4775
        %v4800 = vadd.f32 %v3677, %v4777
        %v4801 = vadd.f32 %v3678, %v4780
        %v4802 = vadd.f32 %v3679, %v4782
        %v4803 = vadd.f32 %v3680, %v4785
        %v4804 = vadd.f32 %v3681, %v4787
        %s4805 = scalar_lea.vmem %s14, %s45
        %v4806 = vld [vmem:[%s4805] sm:$0x1]
        %v4808 = vperm.slane %v4806, 0
        %v4810 = vadd.f32 %v4789, %v4808
        %v4811 = vadd.f32 %v4790, %v4808
        %v4812 = vadd.f32 %v4791, %v4808
        %v4813 = vadd.f32 %v4792, %v4808
        %v4814 = vadd.f32 %v4793, %v4808
        %v4815 = vadd.f32 %v4794, %v4808
        %v4816 = vadd.f32 %v4795, %v4808
        %v4817 = vadd.f32 %v4796, %v4808
        %v4818 = vadd.f32 %v4797, %v4808
        %v4819 = vadd.f32 %v4798, %v4808
        %v4820 = vadd.f32 %v4799, %v4808
        %v4821 = vadd.f32 %v4800, %v4808
        %v4822 = vadd.f32 %v4801, %v4808
        %v4823 = vadd.f32 %v4802, %v4808
        %v4824 = vadd.f32 %v4803, %v4808
        %v4825 = vadd.f32 %v4804, %v4808
        %4826 = vst [vmem:[#allocation2] sm:$0xff] %v4810
        %4827 = vst [vmem:[#allocation2 + $0x8] sm:$0xff] %v4811
        %4828 = vst [vmem:[#allocation2 + $0x10] sm:$0xff] %v4812
        %4829 = vst [vmem:[#allocation2 + $0x18] sm:$0xff] %v4813
        %4830 = vst [vmem:[#allocation2 + $0x20] sm:$0xff] %v4814
        %4831 = vst [vmem:[#allocation2 + $0x28] sm:$0xff] %v4815
        %4832 = vst [vmem:[#allocation2 + $0x30] sm:$0xff] %v4816
        %4833 = vst [vmem:[#allocation2 + $0x38] sm:$0xff] %v4817
        %4834 = vst [vmem:[#allocation2 + $0x40] sm:$0xff] %v4818
        %4835 = vst [vmem:[#allocation2 + $0x48] sm:$0xff] %v4819
        %4836 = vst [vmem:[#allocation2 + $0x50] sm:$0xff] %v4820
        %4837 = vst [vmem:[#allocation2 + $0x58] sm:$0xff] %v4821
        %4838 = vst [vmem:[#allocation2 + $0x60] sm:$0xff] %v4822
        %4839 = vst [vmem:[#allocation2 + $0x68] sm:$0xff] %v4823
        %4840 = vst [vmem:[#allocation2 + $0x70] sm:$0xff] %v4824
        %4841 = vst [vmem:[#allocation2 + $0x78] sm:$0xff] %v4825
        %p4842 = scmp.eq.s32.totalorder %s45, 1
        // Predicated region
        $region141: #{tpu_custom_call.1} parent=87 // pred_check
          %p4843 = pneg %p4842
        $region142: #{tpu_custom_call.1} parent=87 // pred_check_branch
          %4845 = sbr.rel (%p4843) target = $region144
        $region143: #{tpu_custom_call.1} parent=87 // pred_region
          %v4846 = vadd.f32 %v4810, %v4811
          %v4847 = vadd.f32 %v4846, %v4812
          %v4848 = vadd.f32 %v4847, %v4813
          %v4849 = vadd.f32 %v4848, %v4814
          %v4850 = vadd.f32 %v4849, %v4815
          %v4851 = vadd.f32 %v4850, %v4816
          %v4852 = vadd.f32 %v4851, %v4817
          %v4853 = vadd.f32 %v4852, %v4818
          %v4854 = vadd.f32 %v4853, %v4819
          %v4855 = vadd.f32 %v4854, %v4820
          %v4856 = vadd.f32 %v4855, %v4821
          %v4857 = vadd.f32 %v4856, %v4822
          %v4858 = vadd.f32 %v4857, %v4823
          %v4859 = vadd.f32 %v4858, %v4824
          %v4860 = vadd.f32 %v4859, %v4825
          %v4861 = vrot.slane %v4860, 4
          %v4862 = vadd.f32 %v4860, %v4861
          %v4863 = vrot.slane %v4862, 2
          %v4864 = vadd.f32 %v4862, %v4863
          %v4865 = vrot.slane %v4864, 1
          %v4866 = vadd.f32 %v4864, %v4865
          %v4867 = vmul.f32 %v4866, 0.0078125
          %v4868 = vld [vmem:[#allocation22] sm:$0xff]
          %v4869 = vld [vmem:[#allocation22 + $0x8] sm:$0xff]
          %v4870 = vld [vmem:[#allocation22 + $0x10] sm:$0xff]
          %v4871 = vld [vmem:[#allocation22 + $0x18] sm:$0xff]
          %v4872 = vld [vmem:[#allocation22 + $0x20] sm:$0xff]
          %v4873 = vld [vmem:[#allocation22 + $0x28] sm:$0xff]
          %v4874 = vld [vmem:[#allocation22 + $0x30] sm:$0xff]
          %v4875 = vld [vmem:[#allocation22 + $0x38] sm:$0xff]
          %v4876 = vld [vmem:[#allocation22 + $0x40] sm:$0xff]
          %v4877 = vld [vmem:[#allocation22 + $0x48] sm:$0xff]
          %v4878 = vld [vmem:[#allocation22 + $0x50] sm:$0xff]
          %v4879 = vld [vmem:[#allocation22 + $0x58] sm:$0xff]
          %v4880 = vld [vmem:[#allocation22 + $0x60] sm:$0xff]
          %v4881 = vld [vmem:[#allocation22 + $0x68] sm:$0xff]
          %v4882 = vld [vmem:[#allocation22 + $0x70] sm:$0xff]
          %v4883 = vld [vmem:[#allocation22 + $0x78] sm:$0xff]
          %v4884 = vld [vmem:[%s16] sm:$0x1]
          %4885 = vmatpush.msra.mxu0 %v4883
          %4886 = vmatpush.msra.mxu0 %v4882
          %4887 = vmatpush.msra.mxu0 %v4881
          %4888 = vmatpush.msra.mxu0 %v4880
          %4889 = vmatpush.msra.mxu0 %v4879
          %4890 = vmatpush.msra.mxu0 %v4878
          %4891 = vmatpush.msra.mxu0 %v4877
          %4892 = vmatpush.msra.mxu0 %v4876
          %4893 = vmatpush.msra.mxu0 %v4875
          %4894 = vmatpush.msra.mxu0 %v4874
          %4895 = vmatpush.msra.mxu0 %v4873
          %4896 = vmatpush.msra.mxu0 %v4872
          %4897 = vmatpush.msra.mxu0 %v4871
          %4898 = vmatpush.msra.mxu0 %v4870
          %4899 = vmatpush.msra.mxu0 %v4869
          %4900 = vmatpush.msra.mxu0 %v4868
          %4901 = vmatmul.f32.gmra.mxu0 %v4867
          %v4902 = vpop.f32.mrf.mxu0
          %v4903 = vadd.f32 %v4884, %v4902
          %4904 = vdwg.mxu0
          %4905 = vst [vmem:[%s761] sm:$0x1] %v4903
        $region144: #{tpu_custom_call.1} parent=87 // pred_fallthru
          _
        %s4906 = sand.u32 %s422, 1
        %s4907 = scalar_lea.sflag [#allocation6], %s4906
        %s4908 = sand.u32 %s422, 1
        %s4909 = scalar_lea.vmem [#allocation24], %s4908
        // Predicated region
        $region145: #{tpu_custom_call.1} parent=87 // pred_check
          %p4910 = pneg %p432
        $region146: #{tpu_custom_call.1} parent=87 // pred_check_branch
          %4912 = sbr.rel (%p4910) target = $region148
        $region147: #{tpu_custom_call.1} parent=87 // pred_region
          %4914 = vsyncadd %s4907, 0
          %s4915 = scalar_lea.hbm %s17, %s44
          %s4917 = sshll.u32 %s4909, 4
          %s4918 = int_to_ptr.vmem [resolvable:$true] %s4917
          %s4919 = sshll.u32 %s4915, 4
          %s4920 = int_to_ptr.hbm [resolvable:$true] %s4919
          %4922 = dma.vmem_to_hbm [thread:$0]  %s4918, 16, %s4920, %s4907
        $region148: #{tpu_custom_call.1} parent=87 // pred_fallthru
          _
      $region88: #{tpu_custom_call.1} parent=5 // pred_fallthru
        _
      %p4923 = scmp.le.s32.totalorder 2, %s35
      // Predicated region
      $region149: #{tpu_custom_call.1} parent=5 // pred_check
        %p4924 = pneg %p4923
      $region150: #{tpu_custom_call.1} parent=5 // pred_check_branch
        %4926 = sbr.rel (%p4924) target = $region152
      $region151: #{tpu_custom_call.1} parent=5 // pred_region
        %s4927 = ssub.s32 %s35, 2
        // Predicated region
        $region153: #{tpu_custom_call.1} parent=151 // pred_check
          %p4928 = pneg %p438
        $region154: #{tpu_custom_call.1} parent=151 // pred_check_branch
          %4930 = sbr.rel (%p4928) target = $region156
        $region155: #{tpu_custom_call.1} parent=151 // pred_region
          %s4931 = sand.u32 %s423, 1
          %s4932 = scalar_lea.sflag [#allocation6], %s4931
          %s4933 = sand.u32 %s423, 1
          %s4934 = scalar_lea.vmem [#allocation24], %s4933
          %4936 = dma.done %s4932, 16
        $region156: #{tpu_custom_call.1} parent=151 // pred_fallthru
          _
      $region152: #{tpu_custom_call.1} parent=5 // pred_fallthru
        _
    $region6: #{tpu_custom_call.1} parent=1 // loop_footer
      %s39 = sadd.s32 1, %s35
    $region7: #{tpu_custom_call.1} parent=1 // loop_footer_branch
      %34 = sbr.rel target = $region3
    $region8: #{tpu_custom_call.1} parent=1 // loop_exit
      _
    %4937 = vsyncpa [#allocation5], 1
    %s4938 = scalar_lea.sflag [#allocation5], 1
    %4939 = vsyncpa %s4938, 1
    %4940 = vsyncpa [#allocation8], 1
    %4941 = vsyncpa [#allocation11], 1
    %4942 = vsyncpa [#allocation14], 1
    %4943 = vsyncpa [#allocation17], 1
    %4944 = vsyncpa [#allocation20], 1
    %4945 = vsyncpa [#allocation23], 1
    %4946 = vsyncpa [#allocation6], 1
    %s4947 = scalar_lea.sflag [#allocation6], 1
    %4948 = vsyncpa %s4947, 1

</llo_original>
